<compile_context>
chip_gen: v7x
topology: tpu7x:2x2x1
jax: 0.10.0
libtpu: 0.0.40
codegen_flags: <defaults>
</compile_context>

<pallas_src>
import functools

import jax
import jax.numpy as jnp
from jax.experimental import pallas as pl
from jax.experimental.pallas import tpu as pltpu


def _round_up(x, m):
    return ((x + m - 1) // m) * m


# ------------------------------ Pallas GEMM ---------------------------------

def _gemm_kernel(a_ref, b_ref, bias_ref, o_ref, *, relu, input_relu):
    a = a_ref[...]
    if input_relu:
        a = jnp.maximum(a, 0)
    acc = jnp.dot(a, b_ref[...], preferred_element_type=jnp.float32)
    acc = acc + bias_ref[...]
    if relu:
        acc = jnp.maximum(acc, 0.0)
    o_ref[...] = acc


def _gemm_res_kernel(a_ref, b_ref, bias_ref, r_ref, o_ref, *, relu, input_relu):
    a = a_ref[...]
    if input_relu:
        a = jnp.maximum(a, 0)
    acc = jnp.dot(a, b_ref[...], preferred_element_type=jnp.float32)
    acc = acc + bias_ref[...] + r_ref[...]
    if relu:
        acc = jnp.maximum(acc, 0.0)
    o_ref[...] = acc


def _pick_tiles(M, Np):
    # Adaptive sublane tile: tiny-M layers stay lane-dense without padding M
    # up to 128; large M uses 512-row tiles (a few MiB double-buffered, safe
    # even on v7x's 64 MiB VMEM).  256-wide N tiles when Cout allows it.
    Mp = _round_up(M, 8)
    if Mp <= 512:
        tm = Mp
    else:
        tm = 512
        Mp = _round_up(M, tm)
    tn = 256 if Np % 256 == 0 else 128
    return Mp, tm, tn


def matmul_bias(a, w, bias, relu=False, input_relu=False, residual=None):
    """a: (M, Kp) bf16 (K already padded), w: (Kp, Np) bf16, bias: (1, Np) f32.
    Optional residual: (M, N<=Np) f32 added in the epilogue.
    Returns padded (Mp, Np) f32 (caller slices)."""
    M, Kp = a.shape
    _, Np = w.shape
    Mp, tm, tn = _pick_tiles(M, Np)
    if Mp != M:
        a = jnp.pad(a, ((0, Mp - M), (0, 0)))

    in_specs = [pl.BlockSpec((tm, Kp), lambda i, j: (i, 0)),
                pl.BlockSpec((Kp, tn), lambda i, j: (0, j)),
                pl.BlockSpec((1, tn), lambda i, j: (0, j))]
    args = [a, w, bias]
    if residual is not None:
        r = residual.astype(jnp.float32)
        rM, rN = r.shape
        if (Mp - rM) or (Np - rN):
            r = jnp.pad(r, ((0, Mp - rM), (0, Np - rN)))
        in_specs.append(pl.BlockSpec((tm, tn), lambda i, j: (i, j)))
        args.append(r)
        kern = functools.partial(_gemm_res_kernel, relu=relu,
                                 input_relu=input_relu)
    else:
        kern = functools.partial(_gemm_kernel, relu=relu, input_relu=input_relu)

    return pl.pallas_call(
        kern,
        out_shape=jax.ShapeDtypeStruct((Mp, Np), jnp.float32),
        grid=(Mp // tm, Np // tn),
        in_specs=in_specs,
        out_specs=pl.BlockSpec((tm, tn), lambda i, j: (i, j)),
        compiler_params=pltpu.CompilerParams(
            dimension_semantics=("parallel", "parallel")),
    )(*args)


# --------------------------- Pallas vector quantizer ------------------------

def _vq_kernel(z_ref, e_ref, e2_ref, zq_ref, counts_ref, sse_ref, *,
               n_valid, k_valid, tile):
    i = pl.program_id(0)
    z = z_ref[...]                                           # (tile, Dp) f32
    e = e_ref[...]                                           # (Kcp, Dp) f32
    # argmin_k ||z-e_k||^2 == argmin_k (||e_k||^2 - 2 z.e_k): the per-row
    # ||z||^2 term is argmin-invariant and dropped; ||e||^2 is precomputed.
    ze = jax.lax.dot_general(z.astype(jnp.bfloat16), e.astype(jnp.bfloat16),
                             (((1,), (1,)), ((), ())),
                             preferred_element_type=jnp.float32)  # (tile, Kcp)
    d = e2_ref[...] - 2.0 * ze
    col = jax.lax.broadcasted_iota(jnp.int32, d.shape, 1)
    d = jnp.where(col < k_valid, d, 1e30)                    # mask padded codes
    idx = jnp.argmin(d, axis=1, keepdims=True).astype(jnp.int32)
    onehot = (col == idx).astype(jnp.float32)                # (tile, Kcp)
    zq = jnp.dot(onehot, e, preferred_element_type=jnp.float32)  # f32 gather
    zq_ref[...] = zq

    row = jax.lax.broadcasted_iota(jnp.int32, (tile, 1), 0) + i * tile
    rvalid = (row < n_valid).astype(jnp.float32)             # mask padded rows
    counts_row = jnp.sum(onehot * rvalid, axis=0, keepdims=True)   # (1, Kcp)
    rows8 = jax.lax.broadcasted_iota(jnp.int32, counts_ref.shape, 0)
    counts_ref[...] = counts_row * (rows8 == 0).astype(jnp.float32)

    diff = (zq - z) * rvalid
    sse_val = jnp.sum(diff * diff)
    ir = jax.lax.broadcasted_iota(jnp.int32, sse_ref.shape, 0)
    ic = jax.lax.broadcasted_iota(jnp.int32, sse_ref.shape, 1)
    sse_ref[...] = sse_val * ((ir == 0) & (ic == 0)).astype(jnp.float32)


def vector_quantize(vq, z_e, beta):
    """z_e: (B, H, W, D) NHWC -> (embedding_loss, z_q NHWC, perplexity)."""
    B, H, W, D = z_e.shape
    Kc, Dm = vq["n_codes"], vq["dim"]
    e_p, e_sq = vq["e"], vq["e_sq"]
    Kcp, Dp = e_p.shape
    z_flat = z_e.reshape(-1, D)
    Nv = z_flat.shape[0]
    TILE = 128
    Nvp = _round_up(Nv, TILE)
    n_tiles = Nvp // TILE
    z_p = jnp.pad(z_flat, ((0, Nvp - Nv), (0, Dp - D)))

    zq_p, counts, sse = pl.pallas_call(
        functools.partial(_vq_kernel, n_valid=Nv, k_valid=Kc, tile=TILE),
        out_shape=(jax.ShapeDtypeStruct((Nvp, Dp), jnp.float32),
                   jax.ShapeDtypeStruct((8 * n_tiles, Kcp), jnp.float32),
                   jax.ShapeDtypeStruct((8 * n_tiles, 128), jnp.float32)),
        grid=(n_tiles,),
        in_specs=[pl.BlockSpec((TILE, Dp), lambda i: (i, 0)),
                  pl.BlockSpec((Kcp, Dp), lambda i: (0, 0)),
                  pl.BlockSpec((1, Kcp), lambda i: (0, 0))],
        out_specs=(pl.BlockSpec((TILE, Dp), lambda i: (i, 0)),
                   pl.BlockSpec((8, Kcp), lambda i: (i, 0)),
                   pl.BlockSpec((8, 128), lambda i: (i, 0))),
        compiler_params=pltpu.CompilerParams(
            dimension_semantics=("parallel",)),
    )(z_p, e_p, e_sq)

    zq_flat = zq_p[:Nv, :D]
    mse = jnp.sum(sse) / (Nv * D)
    # Forward-value parity with PyTorch: mean((sg[zq]-z)^2) + beta*mean((zq-sg[z])^2).
    embedding_loss = mse + beta * mse
    e_mean = jnp.sum(counts, axis=0)[:Kc] / Nv
    perplexity = jnp.exp(-jnp.sum(e_mean * jnp.log(e_mean + 1e-10)))
    z_q = zq_flat.reshape(B, H, W, D)
    z_q = z_e + jax.lax.stop_gradient(z_q - z_e)   # straight-through
    return embedding_loss, z_q, perplexity


# ------------------------- weight preparation (once) ------------------------

def _prep_conv(w, b, stride, padding):
    """w: (Cout, Cin, kh, kw) PyTorch conv layout -> GEMM-ready layer dict."""
    Cout, Cin, kh, kw = w.shape
    K = kh * kw * Cin
    Kp, Np = _round_up(K, 128), _round_up(Cout, 128)
    wmat = jnp.transpose(w, (2, 3, 1, 0)).reshape(K, Cout)
    wmat = jnp.pad(wmat, ((0, Kp - K), (0, Np - Cout))).astype(jnp.bfloat16)
    bias = jnp.pad(b, (0, Np - Cout)).reshape(1, Np).astype(jnp.float32)
    pad = ((padding, padding), (padding, padding)) if isinstance(padding, int) \
        else padding
    return {"w": wmat, "b": bias, "kh": kh, "kw": kw, "stride": stride,
            "pad": pad, "cout": Cout}


def _prep_convT_s1(w, b, padding):
    """PyTorch ConvTranspose2d stride=1; w: (Cin, Cout, kh, kw)."""
    kh = w.shape[2]
    w_conv = jnp.transpose(jnp.flip(w, axis=(2, 3)), (1, 0, 2, 3))
    return _prep_conv(w_conv, b, 1, kh - 1 - padding)


def _prep_convT_s2(w, b):
    """PyTorch ConvTranspose2d stride=2, kernel=4, padding=1, decomposed into
    4 sub-pixel phases, each a 2x2 stride-1 conv (no zero-dilated input)."""
    ksel = {0: (3, 1), 1: (2, 0)}      # output parity -> kernel taps
    padsel = {0: (1, 0), 1: (0, 1)}    # output parity -> (pad_before, pad_after)
    phases = []
    for a in (0, 1):
        for c in (0, 1):
            sub = w[:, :, jnp.array(ksel[a]), :]            # (Cin,Cout,2,4)
            sub = sub[:, :, :, jnp.array(ksel[c])]          # (Cin,Cout,2,2)
            sub = jnp.transpose(sub, (1, 0, 2, 3))          # (Cout,Cin,2,2)
            phases.append(_prep_conv(sub, b, 1, (padsel[a], padsel[c])))
    return phases                       # order (0,0),(0,1),(1,0),(1,1)


def prepare_params(raw):
    """Run once (outside jit): all weight transforms, pads and bf16 casts."""
    def zeros_b(w):
        return jnp.zeros((w.shape[0],), jnp.float32)

    p = {
        "enc1": _prep_conv(raw["enc_w1"], raw["enc_b1"], 2, 1),
        "enc2": _prep_conv(raw["enc_w2"], raw["enc_b2"], 2, 1),
        "enc3": _prep_conv(raw["enc_w3"], raw["enc_b3"], 1, 1),
        "enc_res": [(_prep_conv(w1, zeros_b(w1), 1, 1),
                     _prep_conv(w2, zeros_b(w2), 1, 0))
                    for (w1, w2) in raw["enc_res"]],
        "pre": _prep_conv(raw["pre_w"], raw["pre_b"], 1, 0),
        "dec0": _prep_convT_s1(raw["dec_wt0"], raw["dec_bt0"], padding=1),
        "dec_res": [(_prep_conv(w1, zeros_b(w1), 1, 1),
                     _prep_conv(w2, zeros_b(w2), 1, 0))
                    for (w1, w2) in raw["dec_res"]],
        "dec1": _prep_convT_s2(raw["dec_wt1"], raw["dec_bt1"]),
        "dec2": _prep_convT_s2(raw["dec_wt2"], raw["dec_bt2"]),
    }
    emb = raw["embedding"].astype(jnp.float32)
    Kc, D = emb.shape
    Kcp, Dp = _round_up(Kc, 128), _round_up(D, 128)
    e_p = jnp.pad(emb, ((0, Kcp - Kc), (0, Dp - D)))
    p["vq"] = {"e": e_p, "e_sq": jnp.sum(e_p * e_p, axis=1).reshape(1, Kcp),
               "n_codes": Kc, "dim": D}
    return p


# ----------------------------- conv / pooling glue --------------------------

def conv2d_nhwc(x, layer, relu=False, input_relu=False, residual=None):
    """x: (B,H,W,Cin) f32 NHWC.  layer: prepared dict.  -> (B,Ho,Wo,Cout) f32."""
    B, H, W, Cin = x.shape
    kh, kw, stride = layer["kh"], layer["kw"], layer["stride"]
    (pt, pb), (pleft, pright) = layer["pad"]
    Cout = layer["cout"]
    Kp = layer["w"].shape[0]
    Ho = (H + pt + pb - kh) // stride + 1
    Wo = (W + pleft + pright - kw) // stride + 1

    # bf16 cast + K-pad folded into the shifted-slice concat: the inflated
    # patches tensor is written once, in bf16, at its final padded K width.
    xb = x.astype(jnp.bfloat16)
    if pt or pb or pleft or pright:
        xb = jnp.pad(xb, ((0, 0), (pt, pb), (pleft, pright), (0, 0)))
    cols = []
    for i in range(kh):
        for j in range(kw):
            cols.append(xb[:, i:i + (Ho - 1) * stride + 1:stride,
                               j:j + (Wo - 1) * stride + 1:stride, :])
    kpad = Kp - kh * kw * Cin
    if kpad:
        cols.append(jnp.zeros((B, Ho, Wo, kpad), jnp.bfloat16))
    patches = jnp.concatenate(cols, axis=-1).reshape(B * Ho * Wo, Kp)

    M = B * Ho * Wo
    res_flat = residual.reshape(M, Cout) if residual is not None else None
    out = matmul_bias(patches, layer["w"], layer["b"], relu=relu,
                      input_relu=input_relu, residual=res_flat)
    return out[:M, :Cout].reshape(B, Ho, Wo, Cout)


def _interleave_2x2(p00, p01, p10, p11):
    """out[:, 2i+r, 2j+c, :] = p_rc[:, i, j, :]   (channels stay minor)."""
    B, H, W, C = p00.shape
    row0 = jnp.stack([p00, p01], axis=3)           # (B,H,W,2,C)
    row1 = jnp.stack([p10, p11], axis=3)
    full = jnp.stack([row0, row1], axis=2)         # (B,H,2,W,2,C)
    return full.reshape(B, 2 * H, 2 * W, C)


def conv_transpose2d_s2_nhwc(x, phase_layers, relu=False):
    outs = [conv2d_nhwc(x, lyr, relu=relu) for lyr in phase_layers]
    return _interleave_2x2(outs[0], outs[1], outs[2], outs[3])


def max_pool_2x2_with_pos(x):
    """Strided-slice compare form (lane-aligned VPU work, no 6-D transpose)."""
    a = x[:, 0::2, 0::2, :]
    b = x[:, 0::2, 1::2, :]
    c = x[:, 1::2, 0::2, :]
    d = x[:, 1::2, 1::2, :]
    vals = jnp.maximum(jnp.maximum(a, b), jnp.maximum(c, d))
    # within-window position, row-major, first-occurrence tie-break
    pos = jnp.where(a == vals, 0,
          jnp.where(b == vals, 1,
          jnp.where(c == vals, 2, 3))).astype(jnp.int32)
    return vals, pos


def max_unpool_2x2(x, pos):
    phases = [jnp.where(pos == k, x, 0.0) for k in range(4)]
    return _interleave_2x2(*phases)


# --------------------------------- model ------------------------------------

def residual_stack(x, res_layers):
    # ResidualLayer: x + Conv1x1(ReLU(Conv3x3(ReLU(x)))); final ReLU after stack.
    # Leading ReLU is applied to the GEMM A operand in-kernel (pre-activation x
    # is preserved for the residual); the residual add (+ trailing stack ReLU on
    # the last layer) is fused into the 1x1 conv epilogue.
    n = len(res_layers)
    for li, (l1, l2) in enumerate(res_layers):
        h = conv2d_nhwc(x, l1, relu=True, input_relu=True)
        x = conv2d_nhwc(h, l2, relu=(li == n - 1), residual=x)
    if n == 0:
        x = jnp.maximum(x, 0.0)
    return x


def encoder_forward(p, x):
    h = conv2d_nhwc(x, p["enc1"], relu=True)
    h = conv2d_nhwc(h, p["enc2"], relu=True)
    h = conv2d_nhwc(h, p["enc3"])
    h = residual_stack(h, p["enc_res"])
    z_e, indices = max_pool_2x2_with_pos(h)
    return z_e, indices


def decoder_forward(p, z_q, indices):
    h = conv2d_nhwc(z_q, p["dec0"])
    h = max_unpool_2x2(h, indices)
    h = residual_stack(h, p["dec_res"])
    h = conv_transpose2d_s2_nhwc(h, p["dec1"], relu=True)
    x_hat = conv_transpose2d_s2_nhwc(h, p["dec2"])
    return x_hat


def vqvae_forward(p, x, beta=0.25):
    # Single NCHW -> NHWC transpose at the boundary; everything inside is NHWC.
    x = jnp.transpose(x, (0, 2, 3, 1))
    z_e, indices = encoder_forward(p, x)
    z_e = conv2d_nhwc(z_e, p["pre"])
    embedding_loss, z_q, perplexity = vector_quantize(p["vq"], z_e, beta)
    x_hat = decoder_forward(p, z_q, indices)
    x_hat = jnp.transpose(x_hat, (0, 3, 1, 2))
    z_q_nchw = jnp.transpose(z_q, (0, 3, 1, 2))
    return embedding_loss, x_hat, perplexity, z_q_nchw


def init_params(key, in_chan, h_dim, res_h_dim, n_res_layers, n_embeddings,
                embedding_dim):
    keys = iter(jax.random.split(key, 64))

    def w(shape, scale=0.05):
        return scale * jax.random.normal(next(keys), shape, jnp.float32)

    def res_stack():
        return [(w((res_h_dim, h_dim, 3, 3)), w((h_dim, res_h_dim, 1, 1)))
                for _ in range(n_res_layers)]

    return {
        "enc_w1": w((h_dim // 2, in_chan, 4, 4)), "enc_b1": w((h_dim // 2,)),
        "enc_w2": w((h_dim, h_dim // 2, 4, 4)), "enc_b2": w((h_dim,)),
        "enc_w3": w((h_dim, h_dim, 3, 3)), "enc_b3": w((h_dim,)),
        "enc_res": res_stack(),
        "pre_w": w((embedding_dim, h_dim, 1, 1)), "pre_b": w((embedding_dim,)),
        "embedding": w((n_embeddings, embedding_dim), 1.0 / n_embeddings),
        "dec_wt0": w((embedding_dim, h_dim, 3, 3)), "dec_bt0": w((h_dim,)),
        "dec_res": res_stack(),
        "dec_wt1": w((h_dim, h_dim // 2, 4, 4)), "dec_bt1": w((h_dim // 2,)),
        "dec_wt2": w((h_dim // 2, in_chan, 4, 4)), "dec_bt2": w((in_chan,)),
    }


if __name__ == "__main__":
    # Small but structurally faithful configuration.
    in_chan, h_dim, res_h_dim = 3, 32, 16
    n_res_layers, n_embeddings, embedding_dim, beta = 2, 64, 32, 0.25

    key = jax.random.PRNGKey(0)
    x = jax.random.normal(key, (2, in_chan, 16, 16), jnp.float32)
    raw_params = init_params(jax.random.PRNGKey(42), in_chan, h_dim, res_h_dim,
                             n_res_layers, n_embeddings, embedding_dim)
    # One-time weight prep (transpose/flip/reshape/pad/bf16) outside the jit.
    prepared = prepare_params(raw_params)

    fwd = jax.jit(lambda xx: vqvae_forward(prepared, xx, beta=beta))
    embedding_loss, x_hat, perplexity, z_q = fwd(x)
    jax.block_until_ready((embedding_loss, x_hat, perplexity, z_q))

    assert x_hat.shape == x.shape
    assert z_q.shape == (2, embedding_dim, 2, 2)
    print("KERNEL_OK")
</pallas_src>

<mosaic_0001>
module attributes {stable_mosaic.version = 11 : i64} {
  func.func @_gemm_kernel(%arg0: i32, %arg1: i32, %arg2: memref<128x128xbf16, #tpu.memory_space<vmem>>, %arg3: memref<128x128xbf16, #tpu.memory_space<vmem>>, %arg4: memref<1x128xf32, #tpu.memory_space<vmem>>, %arg5: memref<128x128xf32, #tpu.memory_space<vmem>>) attributes {dimension_semantics = [#tpu.dimension_semantics<parallel>, #tpu.dimension_semantics<parallel>], iteration_bounds = array<i64: 1, 1>, scalar_prefetch = 0 : i64, scratch_operands = 0 : i64, tpu.core_type = #tpu.core_type<tc>, window_params = [{transform_indices = @transform_0, window_bounds = array<i64: 128, 128>}, {transform_indices = @transform_1, window_bounds = array<i64: 128, 128>}, {transform_indices = @transform_2, window_bounds = array<i64: 1, 128>}, {transform_indices = @transform_3, window_bounds = array<i64: 128, 128>}]} {
    %c0 = arith.constant 0 : index
    %c0_0 = arith.constant 0 : index
    %0 = vector.load %arg2[%c0, %c0_0] : memref<128x128xbf16, #tpu.memory_space<vmem>>, vector<128x128xbf16>
    %c0_1 = arith.constant 0 : index
    %c0_2 = arith.constant 0 : index
    %1 = vector.load %arg3[%c0_1, %c0_2] : memref<128x128xbf16, #tpu.memory_space<vmem>>, vector<128x128xbf16>
    %cst = arith.constant dense<0.000000e+00> : vector<128x128xf32>
    %2 = tpu.matmul %0, %1, %cst {dimension_numbers = #tpu.dot_dimension_numbers<[1], [0], [0], [1], [0, 0, 1, 1], [], []>} : vector<128x128xbf16>, vector<128x128xbf16>, vector<128x128xf32> -> vector<128x128xf32>
    %c0_3 = arith.constant 0 : index
    %c0_4 = arith.constant 0 : index
    %3 = vector.load %arg4[%c0_3, %c0_4] : memref<1x128xf32, #tpu.memory_space<vmem>>, vector<1x128xf32>
    %4 = vector.broadcast %3 : vector<1x128xf32> to vector<128x128xf32>
    %5 = arith.addf %2, %4 : vector<128x128xf32>
    %cst_5 = arith.constant 0.000000e+00 : f32
    %6 = vector.broadcast %cst_5 : f32 to vector<128x128xf32>
    %7 = arith.maximumf %5, %6 : vector<128x128xf32>
    %c0_6 = arith.constant 0 : index
    %c0_7 = arith.constant 0 : index
    %8 = vector.load %arg5[%c0_6, %c0_7] : memref<128x128xf32, #tpu.memory_space<vmem>>, vector<128x128xf32>
    tpu.vector_store %arg5[%c0_6, %c0_7], %7 {strides = array<i32>} : memref<128x128xf32, #tpu.memory_space<vmem>>, vector<128x128xf32>,
    return
  }
  func.func @transform_0(%arg0: i32, %arg1: i32) -> (i32, i32) {
    %c0_i32 = arith.constant 0 : i32
    %c0_i32_0 = arith.constant 0 : i32
    return %arg0, %c0_i32 : i32, i32
  }
  func.func @transform_1(%arg0: i32, %arg1: i32) -> (i32, i32) {
    %c0_i32 = arith.constant 0 : i32
    %c0_i32_0 = arith.constant 0 : i32
    return %c0_i32, %arg1 : i32, i32
  }
  func.func @transform_2(%arg0: i32, %arg1: i32) -> (i32, i32) {
    %c0_i32 = arith.constant 0 : i32
    %c0_i32_0 = arith.constant 0 : i32
    return %c0_i32, %arg1 : i32, i32
  }
  func.func @transform_3(%arg0: i32, %arg1: i32) -> (i32, i32) {
    %c0_i32 = arith.constant 0 : i32
    return %arg0, %arg1 : i32, i32
  }
}

module attributes {stable_mosaic.version = 11 : i64} {
  func.func @_gemm_kernel(%arg0: i32, %arg1: i32, %arg2: memref<32x256xbf16, #tpu.memory_space<vmem>>, %arg3: memref<256x128xbf16, #tpu.memory_space<vmem>>, %arg4: memref<1x128xf32, #tpu.memory_space<vmem>>, %arg5: memref<32x128xf32, #tpu.memory_space<vmem>>) attributes {dimension_semantics = [#tpu.dimension_semantics<parallel>, #tpu.dimension_semantics<parallel>], iteration_bounds = array<i64: 1, 1>, scalar_prefetch = 0 : i64, scratch_operands = 0 : i64, tpu.core_type = #tpu.core_type<tc>, window_params = [{transform_indices = @transform_0, window_bounds = array<i64: 32, 256>}, {transform_indices = @transform_1, window_bounds = array<i64: 256, 128>}, {transform_indices = @transform_2, window_bounds = array<i64: 1, 128>}, {transform_indices = @transform_3, window_bounds = array<i64: 32, 128>}]} {
    %c0 = arith.constant 0 : index
    %c0_0 = arith.constant 0 : index
    %0 = vector.load %arg2[%c0, %c0_0] : memref<32x256xbf16, #tpu.memory_space<vmem>>, vector<32x256xbf16>
    %c0_1 = arith.constant 0 : index
    %c0_2 = arith.constant 0 : index
    %1 = vector.load %arg3[%c0_1, %c0_2] : memref<256x128xbf16, #tpu.memory_space<vmem>>, vector<256x128xbf16>
    %cst = arith.constant dense<0.000000e+00> : vector<32x128xf32>
    %2 = tpu.matmul %0, %1, %cst {dimension_numbers = #tpu.dot_dimension_numbers<[1], [0], [0], [1], [0, 0, 1, 1], [], []>} : vector<32x256xbf16>, vector<256x128xbf16>, vector<32x128xf32> -> vector<32x128xf32>
    %c0_3 = arith.constant 0 : index
    %c0_4 = arith.constant 0 : index
    %3 = vector.load %arg4[%c0_3, %c0_4] : memref<1x128xf32, #tpu.memory_space<vmem>>, vector<1x128xf32>
    %4 = vector.broadcast %3 : vector<1x128xf32> to vector<32x128xf32>
    %5 = arith.addf %2, %4 : vector<32x128xf32>
    %cst_5 = arith.constant 0.000000e+00 : f32
    %6 = vector.broadcast %cst_5 : f32 to vector<32x128xf32>
    %7 = arith.maximumf %5, %6 : vector<32x128xf32>
    %c0_6 = arith.constant 0 : index
    %c0_7 = arith.constant 0 : index
    %8 = vector.load %arg5[%c0_6, %c0_7] : memref<32x128xf32, #tpu.memory_space<vmem>>, vector<32x128xf32>
    tpu.vector_store %arg5[%c0_6, %c0_7], %7 {strides = array<i32>} : memref<32x128xf32, #tpu.memory_space<vmem>>, vector<32x128xf32>,
    return
  }
  func.func @transform_0(%arg0: i32, %arg1: i32) -> (i32, i32) {
    %c0_i32 = arith.constant 0 : i32
    %c0_i32_0 = arith.constant 0 : i32
    return %arg0, %c0_i32 : i32, i32
  }
  func.func @transform_1(%arg0: i32, %arg1: i32) -> (i32, i32) {
    %c0_i32 = arith.constant 0 : i32
    %c0_i32_0 = arith.constant 0 : i32
    return %c0_i32, %arg1 : i32, i32
  }
  func.func @transform_2(%arg0: i32, %arg1: i32) -> (i32, i32) {
    %c0_i32 = arith.constant 0 : i32
    %c0_i32_0 = arith.constant 0 : i32
    return %c0_i32, %arg1 : i32, i32
  }
  func.func @transform_3(%arg0: i32, %arg1: i32) -> (i32, i32) {
    %c0_i32 = arith.constant 0 : i32
    return %arg0, %arg1 : i32, i32
  }
}

module attributes {stable_mosaic.version = 11 : i64} {
  func.func @_gemm_kernel(%arg0: i32, %arg1: i32, %arg2: memref<32x384xbf16, #tpu.memory_space<vmem>>, %arg3: memref<384x128xbf16, #tpu.memory_space<vmem>>, %arg4: memref<1x128xf32, #tpu.memory_space<vmem>>, %arg5: memref<32x128xf32, #tpu.memory_space<vmem>>) attributes {dimension_semantics = [#tpu.dimension_semantics<parallel>, #tpu.dimension_semantics<parallel>], iteration_bounds = array<i64: 1, 1>, scalar_prefetch = 0 : i64, scratch_operands = 0 : i64, tpu.core_type = #tpu.core_type<tc>, window_params = [{transform_indices = @transform_0, window_bounds = array<i64: 32, 384>}, {transform_indices = @transform_1, window_bounds = array<i64: 384, 128>}, {transform_indices = @transform_2, window_bounds = array<i64: 1, 128>}, {transform_indices = @transform_3, window_bounds = array<i64: 32, 128>}]} {
    %c0 = arith.constant 0 : index
    %c0_0 = arith.constant 0 : index
    %0 = vector.load %arg2[%c0, %c0_0] : memref<32x384xbf16, #tpu.memory_space<vmem>>, vector<32x384xbf16>
    %cst = arith.constant 0.000000e+00 : bf16
    %1 = vector.broadcast %cst : bf16 to vector<32x384xbf16>
    %2 = arith.maximumf %0, %1 : vector<32x384xbf16>
    %c0_1 = arith.constant 0 : index
    %c0_2 = arith.constant 0 : index
    %3 = vector.load %arg3[%c0_1, %c0_2] : memref<384x128xbf16, #tpu.memory_space<vmem>>, vector<384x128xbf16>
    %cst_3 = arith.constant dense<0.000000e+00> : vector<32x128xf32>
    %4 = tpu.matmul %2, %3, %cst_3 {dimension_numbers = #tpu.dot_dimension_numbers<[1], [0], [0], [1], [0, 0, 1, 1], [], []>} : vector<32x384xbf16>, vector<384x128xbf16>, vector<32x128xf32> -> vector<32x128xf32>
    %c0_4 = arith.constant 0 : index
    %c0_5 = arith.constant 0 : index
    %5 = vector.load %arg4[%c0_4, %c0_5] : memref<1x128xf32, #tpu.memory_space<vmem>>, vector<1x128xf32>
    %6 = vector.broadcast %5 : vector<1x128xf32> to vector<32x128xf32>
    %7 = arith.addf %4, %6 : vector<32x128xf32>
    %cst_6 = arith.constant 0.000000e+00 : f32
    %8 = vector.broadcast %cst_6 : f32 to vector<32x128xf32>
    %9 = arith.maximumf %7, %8 : vector<32x128xf32>
    %c0_7 = arith.constant 0 : index
    %c0_8 = arith.constant 0 : index
    %10 = vector.load %arg5[%c0_7, %c0_8] : memref<32x128xf32, #tpu.memory_space<vmem>>, vector<32x128xf32>
    tpu.vector_store %arg5[%c0_7, %c0_8], %9 {strides = array<i32>} : memref<32x128xf32, #tpu.memory_space<vmem>>, vector<32x128xf32>,
    return
  }
  func.func @transform_0(%arg0: i32, %arg1: i32) -> (i32, i32) {
    %c0_i32 = arith.constant 0 : i32
    %c0_i32_0 = arith.constant 0 : i32
    return %arg0, %c0_i32 : i32, i32
  }
  func.func @transform_1(%arg0: i32, %arg1: i32) -> (i32, i32) {
    %c0_i32 = arith.constant 0 : i32
    %c0_i32_0 = arith.constant 0 : i32
    return %c0_i32, %arg1 : i32, i32
  }
  func.func @transform_2(%arg0: i32, %arg1: i32) -> (i32, i32) {
    %c0_i32 = arith.constant 0 : i32
    %c0_i32_0 = arith.constant 0 : i32
    return %c0_i32, %arg1 : i32, i32
  }
  func.func @transform_3(%arg0: i32, %arg1: i32) -> (i32, i32) {
    %c0_i32 = arith.constant 0 : i32
    return %arg0, %arg1 : i32, i32
  }
}

module attributes {stable_mosaic.version = 11 : i64} {
  func.func @_gemm_kernel(%arg0: i32, %arg1: i32, %arg2: memref<32x384xbf16, #tpu.memory_space<vmem>>, %arg3: memref<384x128xbf16, #tpu.memory_space<vmem>>, %arg4: memref<1x128xf32, #tpu.memory_space<vmem>>, %arg5: memref<32x128xf32, #tpu.memory_space<vmem>>) attributes {dimension_semantics = [#tpu.dimension_semantics<parallel>, #tpu.dimension_semantics<parallel>], iteration_bounds = array<i64: 1, 1>, scalar_prefetch = 0 : i64, scratch_operands = 0 : i64, tpu.core_type = #tpu.core_type<tc>, window_params = [{transform_indices = @transform_0, window_bounds = array<i64: 32, 384>}, {transform_indices = @transform_1, window_bounds = array<i64: 384, 128>}, {transform_indices = @transform_2, window_bounds = array<i64: 1, 128>}, {transform_indices = @transform_3, window_bounds = array<i64: 32, 128>}]} {
    %c0 = arith.constant 0 : index
    %c0_0 = arith.constant 0 : index
    %0 = vector.load %arg2[%c0, %c0_0] : memref<32x384xbf16, #tpu.memory_space<vmem>>, vector<32x384xbf16>
    %c0_1 = arith.constant 0 : index
    %c0_2 = arith.constant 0 : index
    %1 = vector.load %arg3[%c0_1, %c0_2] : memref<384x128xbf16, #tpu.memory_space<vmem>>, vector<384x128xbf16>
    %cst = arith.constant dense<0.000000e+00> : vector<32x128xf32>
    %2 = tpu.matmul %0, %1, %cst {dimension_numbers = #tpu.dot_dimension_numbers<[1], [0], [0], [1], [0, 0, 1, 1], [], []>} : vector<32x384xbf16>, vector<384x128xbf16>, vector<32x128xf32> -> vector<32x128xf32>
    %c0_3 = arith.constant 0 : index
    %c0_4 = arith.constant 0 : index
    %3 = vector.load %arg4[%c0_3, %c0_4] : memref<1x128xf32, #tpu.memory_space<vmem>>, vector<1x128xf32>
    %4 = vector.broadcast %3 : vector<1x128xf32> to vector<32x128xf32>
    %5 = arith.addf %2, %4 : vector<32x128xf32>
    %c0_5 = arith.constant 0 : index
    %c0_6 = arith.constant 0 : index
    %6 = vector.load %arg5[%c0_5, %c0_6] : memref<32x128xf32, #tpu.memory_space<vmem>>, vector<32x128xf32>
    tpu.vector_store %arg5[%c0_5, %c0_6], %5 {strides = array<i32>} : memref<32x128xf32, #tpu.memory_space<vmem>>, vector<32x128xf32>,
    return
  }
  func.func @transform_0(%arg0: i32, %arg1: i32) -> (i32, i32) {
    %c0_i32 = arith.constant 0 : i32
    %c0_i32_0 = arith.constant 0 : i32
    return %arg0, %c0_i32 : i32, i32
  }
  func.func @transform_1(%arg0: i32, %arg1: i32) -> (i32, i32) {
    %c0_i32 = arith.constant 0 : i32
    %c0_i32_0 = arith.constant 0 : i32
    return %c0_i32, %arg1 : i32, i32
  }
  func.func @transform_2(%arg0: i32, %arg1: i32) -> (i32, i32) {
    %c0_i32 = arith.constant 0 : i32
    %c0_i32_0 = arith.constant 0 : i32
    return %c0_i32, %arg1 : i32, i32
  }
  func.func @transform_3(%arg0: i32, %arg1: i32) -> (i32, i32) {
    %c0_i32 = arith.constant 0 : i32
    return %arg0, %arg1 : i32, i32
  }
}

module attributes {stable_mosaic.version = 11 : i64} {
  func.func @_gemm_res_kernel(%arg0: i32, %arg1: i32, %arg2: memref<32x128xbf16, #tpu.memory_space<vmem>>, %arg3: memref<128x128xbf16, #tpu.memory_space<vmem>>, %arg4: memref<1x128xf32, #tpu.memory_space<vmem>>, %arg5: memref<32x128xf32, #tpu.memory_space<vmem>>, %arg6: memref<32x128xf32, #tpu.memory_space<vmem>>) attributes {dimension_semantics = [#tpu.dimension_semantics<parallel>, #tpu.dimension_semantics<parallel>], iteration_bounds = array<i64: 1, 1>, scalar_prefetch = 0 : i64, scratch_operands = 0 : i64, tpu.core_type = #tpu.core_type<tc>, window_params = [{transform_indices = @transform_0, window_bounds = array<i64: 32, 128>}, {transform_indices = @transform_1, window_bounds = array<i64: 128, 128>}, {transform_indices = @transform_2, window_bounds = array<i64: 1, 128>}, {transform_indices = @transform_3, window_bounds = array<i64: 32, 128>}, {transform_indices = @transform_4, window_bounds = array<i64: 32, 128>}]} {
    %c0 = arith.constant 0 : index
    %c0_0 = arith.constant 0 : index
    %0 = vector.load %arg2[%c0, %c0_0] : memref<32x128xbf16, #tpu.memory_space<vmem>>, vector<32x128xbf16>
    %c0_1 = arith.constant 0 : index
    %c0_2 = arith.constant 0 : index
    %1 = vector.load %arg3[%c0_1, %c0_2] : memref<128x128xbf16, #tpu.memory_space<vmem>>, vector<128x128xbf16>
    %cst = arith.constant dense<0.000000e+00> : vector<32x128xf32>
    %2 = tpu.matmul %0, %1, %cst {dimension_numbers = #tpu.dot_dimension_numbers<[1], [0], [0], [1], [0, 0, 1, 1], [], []>} : vector<32x128xbf16>, vector<128x128xbf16>, vector<32x128xf32> -> vector<32x128xf32>
    %c0_3 = arith.constant 0 : index
    %c0_4 = arith.constant 0 : index
    %3 = vector.load %arg4[%c0_3, %c0_4] : memref<1x128xf32, #tpu.memory_space<vmem>>, vector<1x128xf32>
    %4 = vector.broadcast %3 : vector<1x128xf32> to vector<32x128xf32>
    %5 = arith.addf %2, %4 : vector<32x128xf32>
    %c0_5 = arith.constant 0 : index
    %c0_6 = arith.constant 0 : index
    %6 = vector.load %arg5[%c0_5, %c0_6] : memref<32x128xf32, #tpu.memory_space<vmem>>, vector<32x128xf32>
    %7 = arith.addf %5, %6 : vector<32x128xf32>
    %cst_7 = arith.constant 0.000000e+00 : f32
    %8 = vector.broadcast %cst_7 : f32 to vector<32x128xf32>
    %9 = arith.maximumf %7, %8 : vector<32x128xf32>
    %c0_8 = arith.constant 0 : index
    %c0_9 = arith.constant 0 : index
    %10 = vector.load %arg6[%c0_8, %c0_9] : memref<32x128xf32, #tpu.memory_space<vmem>>, vector<32x128xf32>
    tpu.vector_store %arg6[%c0_8, %c0_9], %9 {strides = array<i32>} : memref<32x128xf32, #tpu.memory_space<vmem>>, vector<32x128xf32>,
    return
  }
  func.func @transform_0(%arg0: i32, %arg1: i32) -> (i32, i32) {
    %c0_i32 = arith.constant 0 : i32
    %c0_i32_0 = arith.constant 0 : i32
    return %arg0, %c0_i32 : i32, i32
  }
  func.func @transform_1(%arg0: i32, %arg1: i32) -> (i32, i32) {
    %c0_i32 = arith.constant 0 : i32
    %c0_i32_0 = arith.constant 0 : i32
    return %c0_i32, %arg1 : i32, i32
  }
  func.func @transform_2(%arg0: i32, %arg1: i32) -> (i32, i32) {
    %c0_i32 = arith.constant 0 : i32
    %c0_i32_0 = arith.constant 0 : i32
    return %c0_i32, %arg1 : i32, i32
  }
  func.func @transform_3(%arg0: i32, %arg1: i32) -> (i32, i32) {
    %c0_i32 = arith.constant 0 : i32
    return %arg0, %arg1 : i32, i32
  }
  func.func @transform_4(%arg0: i32, %arg1: i32) -> (i32, i32) {
    %c0_i32 = arith.constant 0 : i32
    return %arg0, %arg1 : i32, i32
  }
}

module attributes {stable_mosaic.version = 11 : i64} {
  func.func @_gemm_res_kernel(%arg0: i32, %arg1: i32, %arg2: memref<32x128xbf16, #tpu.memory_space<vmem>>, %arg3: memref<128x128xbf16, #tpu.memory_space<vmem>>, %arg4: memref<1x128xf32, #tpu.memory_space<vmem>>, %arg5: memref<32x128xf32, #tpu.memory_space<vmem>>, %arg6: memref<32x128xf32, #tpu.memory_space<vmem>>) attributes {dimension_semantics = [#tpu.dimension_semantics<parallel>, #tpu.dimension_semantics<parallel>], iteration_bounds = array<i64: 1, 1>, scalar_prefetch = 0 : i64, scratch_operands = 0 : i64, tpu.core_type = #tpu.core_type<tc>, window_params = [{transform_indices = @transform_0, window_bounds = array<i64: 32, 128>}, {transform_indices = @transform_1, window_bounds = array<i64: 128, 128>}, {transform_indices = @transform_2, window_bounds = array<i64: 1, 128>}, {transform_indices = @transform_3, window_bounds = array<i64: 32, 128>}, {transform_indices = @transform_4, window_bounds = array<i64: 32, 128>}]} {
    %c0 = arith.constant 0 : index
    %c0_0 = arith.constant 0 : index
    %0 = vector.load %arg2[%c0, %c0_0] : memref<32x128xbf16, #tpu.memory_space<vmem>>, vector<32x128xbf16>
    %c0_1 = arith.constant 0 : index
    %c0_2 = arith.constant 0 : index
    %1 = vector.load %arg3[%c0_1, %c0_2] : memref<128x128xbf16, #tpu.memory_space<vmem>>, vector<128x128xbf16>
    %cst = arith.constant dense<0.000000e+00> : vector<32x128xf32>
    %2 = tpu.matmul %0, %1, %cst {dimension_numbers = #tpu.dot_dimension_numbers<[1], [0], [0], [1], [0, 0, 1, 1], [], []>} : vector<32x128xbf16>, vector<128x128xbf16>, vector<32x128xf32> -> vector<32x128xf32>
    %c0_3 = arith.constant 0 : index
    %c0_4 = arith.constant 0 : index
    %3 = vector.load %arg4[%c0_3, %c0_4] : memref<1x128xf32, #tpu.memory_space<vmem>>, vector<1x128xf32>
    %4 = vector.broadcast %3 : vector<1x128xf32> to vector<32x128xf32>
    %5 = arith.addf %2, %4 : vector<32x128xf32>
    %c0_5 = arith.constant 0 : index
    %c0_6 = arith.constant 0 : index
    %6 = vector.load %arg5[%c0_5, %c0_6] : memref<32x128xf32, #tpu.memory_space<vmem>>, vector<32x128xf32>
    %7 = arith.addf %5, %6 : vector<32x128xf32>
    %c0_7 = arith.constant 0 : index
    %c0_8 = arith.constant 0 : index
    %8 = vector.load %arg6[%c0_7, %c0_8] : memref<32x128xf32, #tpu.memory_space<vmem>>, vector<32x128xf32>
    tpu.vector_store %arg6[%c0_7, %c0_8], %7 {strides = array<i32>} : memref<32x128xf32, #tpu.memory_space<vmem>>, vector<32x128xf32>,
    return
  }
  func.func @transform_0(%arg0: i32, %arg1: i32) -> (i32, i32) {
    %c0_i32 = arith.constant 0 : i32
    %c0_i32_0 = arith.constant 0 : i32
    return %arg0, %c0_i32 : i32, i32
  }
  func.func @transform_1(%arg0: i32, %arg1: i32) -> (i32, i32) {
    %c0_i32 = arith.constant 0 : i32
    %c0_i32_0 = arith.constant 0 : i32
    return %c0_i32, %arg1 : i32, i32
  }
  func.func @transform_2(%arg0: i32, %arg1: i32) -> (i32, i32) {
    %c0_i32 = arith.constant 0 : i32
    %c0_i32_0 = arith.constant 0 : i32
    return %c0_i32, %arg1 : i32, i32
  }
  func.func @transform_3(%arg0: i32, %arg1: i32) -> (i32, i32) {
    %c0_i32 = arith.constant 0 : i32
    return %arg0, %arg1 : i32, i32
  }
  func.func @transform_4(%arg0: i32, %arg1: i32) -> (i32, i32) {
    %c0_i32 = arith.constant 0 : i32
    return %arg0, %arg1 : i32, i32
  }
}

module attributes {stable_mosaic.version = 11 : i64} {
  func.func @_gemm_kernel(%arg0: i32, %arg1: i32, %arg2: memref<8x128xbf16, #tpu.memory_space<vmem>>, %arg3: memref<128x128xbf16, #tpu.memory_space<vmem>>, %arg4: memref<1x128xf32, #tpu.memory_space<vmem>>, %arg5: memref<8x128xf32, #tpu.memory_space<vmem>>) attributes {dimension_semantics = [#tpu.dimension_semantics<parallel>, #tpu.dimension_semantics<parallel>], iteration_bounds = array<i64: 1, 1>, scalar_prefetch = 0 : i64, scratch_operands = 0 : i64, tpu.core_type = #tpu.core_type<tc>, window_params = [{transform_indices = @transform_0, window_bounds = array<i64: 8, 128>}, {transform_indices = @transform_1, window_bounds = array<i64: 128, 128>}, {transform_indices = @transform_2, window_bounds = array<i64: 1, 128>}, {transform_indices = @transform_3, window_bounds = array<i64: 8, 128>}]} {
    %c0 = arith.constant 0 : index
    %c0_0 = arith.constant 0 : index
    %0 = vector.load %arg2[%c0, %c0_0] : memref<8x128xbf16, #tpu.memory_space<vmem>>, vector<8x128xbf16>
    %c0_1 = arith.constant 0 : index
    %c0_2 = arith.constant 0 : index
    %1 = vector.load %arg3[%c0_1, %c0_2] : memref<128x128xbf16, #tpu.memory_space<vmem>>, vector<128x128xbf16>
    %cst = arith.constant dense<0.000000e+00> : vector<8x128xf32>
    %2 = tpu.matmul %0, %1, %cst {dimension_numbers = #tpu.dot_dimension_numbers<[1], [0], [0], [1], [0, 0, 1, 1], [], []>} : vector<8x128xbf16>, vector<128x128xbf16>, vector<8x128xf32> -> vector<8x128xf32>
    %c0_3 = arith.constant 0 : index
    %c0_4 = arith.constant 0 : index
    %3 = vector.load %arg4[%c0_3, %c0_4] : memref<1x128xf32, #tpu.memory_space<vmem>>, vector<1x128xf32>
    %4 = vector.broadcast %3 : vector<1x128xf32> to vector<8x128xf32>
    %5 = arith.addf %2, %4 : vector<8x128xf32>
    %c0_5 = arith.constant 0 : index
    %c0_6 = arith.constant 0 : index
    %6 = vector.load %arg5[%c0_5, %c0_6] : memref<8x128xf32, #tpu.memory_space<vmem>>, vector<8x128xf32>
    tpu.vector_store %arg5[%c0_5, %c0_6], %5 {strides = array<i32>} : memref<8x128xf32, #tpu.memory_space<vmem>>, vector<8x128xf32>,
    return
  }
  func.func @transform_0(%arg0: i32, %arg1: i32) -> (i32, i32) {
    %c0_i32 = arith.constant 0 : i32
    %c0_i32_0 = arith.constant 0 : i32
    return %arg0, %c0_i32 : i32, i32
  }
  func.func @transform_1(%arg0: i32, %arg1: i32) -> (i32, i32) {
    %c0_i32 = arith.constant 0 : i32
    %c0_i32_0 = arith.constant 0 : i32
    return %c0_i32, %arg1 : i32, i32
  }
  func.func @transform_2(%arg0: i32, %arg1: i32) -> (i32, i32) {
    %c0_i32 = arith.constant 0 : i32
    %c0_i32_0 = arith.constant 0 : i32
    return %c0_i32, %arg1 : i32, i32
  }
  func.func @transform_3(%arg0: i32, %arg1: i32) -> (i32, i32) {
    %c0_i32 = arith.constant 0 : i32
    return %arg0, %arg1 : i32, i32
  }
}

module attributes {stable_mosaic.version = 11 : i64} {
  func.func @_vq_kernel(%arg0: i32, %arg1: memref<128x128xf32, #tpu.memory_space<vmem>>, %arg2: memref<128x128xf32, #tpu.memory_space<vmem>>, %arg3: memref<1x128xf32, #tpu.memory_space<vmem>>, %arg4: memref<128x128xf32, #tpu.memory_space<vmem>>, %arg5: memref<8x128xf32, #tpu.memory_space<vmem>>, %arg6: memref<8x128xf32, #tpu.memory_space<vmem>>) attributes {dimension_semantics = [#tpu.dimension_semantics<parallel>], iteration_bounds = array<i64: 1>, scalar_prefetch = 0 : i64, scratch_operands = 0 : i64, tpu.core_type = #tpu.core_type<tc>, window_params = [{transform_indices = @transform_0, window_bounds = array<i64: 128, 128>}, {pipeline_mode = #tpu.pipeline_mode<synchronous>, transform_indices = @transform_1, window_bounds = array<i64: 128, 128>}, {pipeline_mode = #tpu.pipeline_mode<synchronous>, transform_indices = @transform_2, window_bounds = array<i64: 1, 128>}, {transform_indices = @transform_3, window_bounds = array<i64: 128, 128>}, {transform_indices = @transform_4, window_bounds = array<i64: 8, 128>}, {transform_indices = @transform_5, window_bounds = array<i64: 8, 128>}]} {
    %c0 = arith.constant 0 : index
    %c0_0 = arith.constant 0 : index
    %0 = vector.load %arg1[%c0, %c0_0] : memref<128x128xf32, #tpu.memory_space<vmem>>, vector<128x128xf32>
    %c0_1 = arith.constant 0 : index
    %c0_2 = arith.constant 0 : index
    %1 = vector.load %arg2[%c0_1, %c0_2] : memref<128x128xf32, #tpu.memory_space<vmem>>, vector<128x128xf32>
    %2 = arith.truncf %0 : vector<128x128xf32> to vector<128x128xbf16>
    %3 = arith.truncf %1 : vector<128x128xf32> to vector<128x128xbf16>
    %cst = arith.constant dense<0.000000e+00> : vector<128x128xf32>
    %4 = tpu.matmul %2, %3, %cst {dimension_numbers = #tpu.dot_dimension_numbers<[1], [1], [0], [0], [0, 0, 1, 0], [], []>} : vector<128x128xbf16>, vector<128x128xbf16>, vector<128x128xf32> -> vector<128x128xf32>
    %c0_3 = arith.constant 0 : index
    %c0_4 = arith.constant 0 : index
    %5 = vector.load %arg3[%c0_3, %c0_4] : memref<1x128xf32, #tpu.memory_space<vmem>>, vector<1x128xf32>
    %cst_5 = arith.constant 2.000000e+00 : f32
    %6 = vector.broadcast %cst_5 : f32 to vector<128x128xf32>
    %7 = arith.mulf %6, %4 : vector<128x128xf32>
    %8 = vector.broadcast %5 : vector<1x128xf32> to vector<128x128xf32>
    %9 = arith.subf %8, %7 : vector<128x128xf32>
    %10 = tpu.iota {dimensions = array<i32: 1>} : vector<128x128xi32>
    %c64_i32 = arith.constant 64 : i32
    %11 = vector.broadcast %c64_i32 : i32 to vector<128x128xi32>
    %12 = arith.cmpi slt, %10, %11 : vector<128x128xi32>
    %cst_6 = arith.constant 1.000000e+30 : f32
    %13 = vector.broadcast %cst_6 : f32 to vector<128x128xf32>
    %14 = arith.select %12, %9, %13 : vector<128x128xi1>, vector<128x128xf32>
    %15 = tpu.reduce_index %14 {axis = 1 : i32, kind = #tpu.reduction_kind<arg_min>} : vector<128x128xf32> -> vector<128xi32>
    %16 = vector.shape_cast %15 : vector<128xi32> to vector<128x1xi32>
    %17 = vector.broadcast %16 : vector<128x1xi32> to vector<128x128xi32>
    %18 = arith.cmpi eq, %10, %17 : vector<128x128xi32>
    %19 = arith.extui %18 : vector<128x128xi1> to vector<128x128xi32>
    %20 = arith.sitofp %19 : vector<128x128xi32> to vector<128x128xf32>
    %cst_7 = arith.constant dense<0.000000e+00> : vector<128x128xf32>
    %21 = tpu.matmul %20, %1, %cst_7 {dimension_numbers = #tpu.dot_dimension_numbers<[1], [0], [0], [1], [0, 0, 1, 1], [], []>} : vector<128x128xf32>, vector<128x128xf32>, vector<128x128xf32> -> vector<128x128xf32>
    %c0_8 = arith.constant 0 : index
    %c0_9 = arith.constant 0 : index
    %22 = vector.load %arg4[%c0_8, %c0_9] : memref<128x128xf32, #tpu.memory_space<vmem>>, vector<128x128xf32>
    tpu.vector_store %arg4[%c0_8, %c0_9], %21 {strides = array<i32>} : memref<128x128xf32, #tpu.memory_space<vmem>>, vector<128x128xf32>,
    %23 = tpu.iota {dimensions = array<i32: 0>} : vector<128x1xi32>
    %c128_i32 = arith.constant 128 : i32
    %24 = arith.muli %arg0, %c128_i32 : i32
    %25 = vector.broadcast %24 : i32 to vector<128x1xi32>
    %26 = arith.addi %23, %25 : vector<128x1xi32>
    %c8_i32 = arith.constant 8 : i32
    %27 = vector.broadcast %c8_i32 : i32 to vector<128x1xi32>
    %28 = arith.cmpi slt, %26, %27 : vector<128x1xi32>
    %29 = arith.extui %28 : vector<128x1xi1> to vector<128x1xi32>
    %30 = arith.sitofp %29 : vector<128x1xi32> to vector<128x1xf32>
    %31 = vector.broadcast %30 : vector<128x1xf32> to vector<128x128xf32>
    %32 = arith.mulf %20, %31 : vector<128x128xf32>
    %cst_10 = arith.constant dense<0.000000e+00> : vector<128xf32>
    %33 = vector.multi_reduction <add>, %32, %cst_10 [0] : vector<128x128xf32> to vector<128xf32>
    %34 = vector.shape_cast %33 : vector<128xf32> to vector<1x128xf32>
    %35 = tpu.iota {dimensions = array<i32: 0>} : vector<8x128xi32>
    %c0_i32 = arith.constant 0 : i32
    %36 = vector.broadcast %c0_i32 : i32 to vector<8x128xi32>
    %37 = arith.cmpi eq, %35, %36 : vector<8x128xi32>
    %38 = arith.extui %37 : vector<8x128xi1> to vector<8x128xi32>
    %39 = arith.sitofp %38 : vector<8x128xi32> to vector<8x128xf32>
    %40 = vector.broadcast %34 : vector<1x128xf32> to vector<8x128xf32>
    %41 = arith.mulf %40, %39 : vector<8x128xf32>
    %c0_11 = arith.constant 0 : index
    %c0_12 = arith.constant 0 : index
    %42 = vector.load %arg5[%c0_11, %c0_12] : memref<8x128xf32, #tpu.memory_space<vmem>>, vector<8x128xf32>
    tpu.vector_store %arg5[%c0_11, %c0_12], %41 {strides = array<i32>} : memref<8x128xf32, #tpu.memory_space<vmem>>, vector<8x128xf32>,
    %43 = arith.subf %21, %0 : vector<128x128xf32>
    %44 = vector.broadcast %30 : vector<128x1xf32> to vector<128x128xf32>
    %45 = arith.mulf %43, %44 : vector<128x128xf32>
    %46 = arith.mulf %45, %45 : vector<128x128xf32>
    %47 = vector.shape_cast %46 : vector<128x128xf32> to vector<1x128x128xf32>
    %cst_13 = arith.constant dense<0.000000e+00> : vector<1xf32>
    %48 = vector.multi_reduction <add>, %47, %cst_13 [1, 2] : vector<1x128x128xf32> to vector<1xf32>
    %49 = vector.shape_cast %48 : vector<1xf32> to vector<1x1x1xf32>
    %50 = vector.extract %49[0, 0, 0] : f32 from vector<1x1x1xf32>
    %51 = tpu.iota {dimensions = array<i32: 0>} : vector<8x128xi32>
    %52 = tpu.iota {dimensions = array<i32: 1>} : vector<8x128xi32>
    %c0_i32_14 = arith.constant 0 : i32
    %53 = vector.broadcast %c0_i32_14 : i32 to vector<8x128xi32>
    %54 = arith.cmpi eq, %51, %53 : vector<8x128xi32>
    %c0_i32_15 = arith.constant 0 : i32
    %55 = vector.broadcast %c0_i32_15 : i32 to vector<8x128xi32>
    %56 = arith.cmpi eq, %52, %55 : vector<8x128xi32>
    %57 = arith.andi %54, %56 : vector<8x128xi1>
    %58 = arith.extui %57 : vector<8x128xi1> to vector<8x128xi32>
    %59 = arith.sitofp %58 : vector<8x128xi32> to vector<8x128xf32>
    %60 = vector.broadcast %50 : f32 to vector<8x128xf32>
    %61 = arith.mulf %60, %59 : vector<8x128xf32>
    %c0_16 = arith.constant 0 : index
    %c0_17 = arith.constant 0 : index
    %62 = vector.load %arg6[%c0_16, %c0_17] : memref<8x128xf32, #tpu.memory_space<vmem>>, vector<8x128xf32>
    tpu.vector_store %arg6[%c0_16, %c0_17], %61 {strides = array<i32>} : memref<8x128xf32, #tpu.memory_space<vmem>>, vector<8x128xf32>,
    return
  }
  func.func @transform_0(%arg0: i32) -> (i32, i32) {
    %c0_i32 = arith.constant 0 : i32
    %c0_i32_0 = arith.constant 0 : i32
    return %arg0, %c0_i32 : i32, i32
  }
  func.func @transform_1(%arg0: i32) -> (i32, i32) {
    %c0_i32 = arith.constant 0 : i32
    %c0_i32_0 = arith.constant 0 : i32
    %c0_i32_1 = arith.constant 0 : i32
    return %c0_i32, %c0_i32_0 : i32, i32
  }
  func.func @transform_2(%arg0: i32) -> (i32, i32) {
    %c0_i32 = arith.constant 0 : i32
    %c0_i32_0 = arith.constant 0 : i32
    %c0_i32_1 = arith.constant 0 : i32
    return %c0_i32, %c0_i32_0 : i32, i32
  }
  func.func @transform_3(%arg0: i32) -> (i32, i32) {
    %c0_i32 = arith.constant 0 : i32
    %c0_i32_0 = arith.constant 0 : i32
    return %arg0, %c0_i32 : i32, i32
  }
  func.func @transform_4(%arg0: i32) -> (i32, i32) {
    %c0_i32 = arith.constant 0 : i32
    %c0_i32_0 = arith.constant 0 : i32
    return %arg0, %c0_i32 : i32, i32
  }
  func.func @transform_5(%arg0: i32) -> (i32, i32) {
    %c0_i32 = arith.constant 0 : i32
    %c0_i32_0 = arith.constant 0 : i32
    return %arg0, %c0_i32 : i32, i32
  }
}

module attributes {stable_mosaic.version = 11 : i64} {
  func.func @_gemm_kernel(%arg0: i32, %arg1: i32, %arg2: memref<8x384xbf16, #tpu.memory_space<vmem>>, %arg3: memref<384x128xbf16, #tpu.memory_space<vmem>>, %arg4: memref<1x128xf32, #tpu.memory_space<vmem>>, %arg5: memref<8x128xf32, #tpu.memory_space<vmem>>) attributes {dimension_semantics = [#tpu.dimension_semantics<parallel>, #tpu.dimension_semantics<parallel>], iteration_bounds = array<i64: 1, 1>, scalar_prefetch = 0 : i64, scratch_operands = 0 : i64, tpu.core_type = #tpu.core_type<tc>, window_params = [{transform_indices = @transform_0, window_bounds = array<i64: 8, 384>}, {transform_indices = @transform_1, window_bounds = array<i64: 384, 128>}, {transform_indices = @transform_2, window_bounds = array<i64: 1, 128>}, {transform_indices = @transform_3, window_bounds = array<i64: 8, 128>}]} {
    %c0 = arith.constant 0 : index
    %c0_0 = arith.constant 0 : index
    %0 = vector.load %arg2[%c0, %c0_0] : memref<8x384xbf16, #tpu.memory_space<vmem>>, vector<8x384xbf16>
    %c0_1 = arith.constant 0 : index
    %c0_2 = arith.constant 0 : index
    %1 = vector.load %arg3[%c0_1, %c0_2] : memref<384x128xbf16, #tpu.memory_space<vmem>>, vector<384x128xbf16>
    %cst = arith.constant dense<0.000000e+00> : vector<8x128xf32>
    %2 = tpu.matmul %0, %1, %cst {dimension_numbers = #tpu.dot_dimension_numbers<[1], [0], [0], [1], [0, 0, 1, 1], [], []>} : vector<8x384xbf16>, vector<384x128xbf16>, vector<8x128xf32> -> vector<8x128xf32>
    %c0_3 = arith.constant 0 : index
    %c0_4 = arith.constant 0 : index
    %3 = vector.load %arg4[%c0_3, %c0_4] : memref<1x128xf32, #tpu.memory_space<vmem>>, vector<1x128xf32>
    %4 = vector.broadcast %3 : vector<1x128xf32> to vector<8x128xf32>
    %5 = arith.addf %2, %4 : vector<8x128xf32>
    %c0_5 = arith.constant 0 : index
    %c0_6 = arith.constant 0 : index
    %6 = vector.load %arg5[%c0_5, %c0_6] : memref<8x128xf32, #tpu.memory_space<vmem>>, vector<8x128xf32>
    tpu.vector_store %arg5[%c0_5, %c0_6], %5 {strides = array<i32>} : memref<8x128xf32, #tpu.memory_space<vmem>>, vector<8x128xf32>,
    return
  }
  func.func @transform_0(%arg0: i32, %arg1: i32) -> (i32, i32) {
    %c0_i32 = arith.constant 0 : i32
    %c0_i32_0 = arith.constant 0 : i32
    return %arg0, %c0_i32 : i32, i32
  }
  func.func @transform_1(%arg0: i32, %arg1: i32) -> (i32, i32) {
    %c0_i32 = arith.constant 0 : i32
    %c0_i32_0 = arith.constant 0 : i32
    return %c0_i32, %arg1 : i32, i32
  }
  func.func @transform_2(%arg0: i32, %arg1: i32) -> (i32, i32) {
    %c0_i32 = arith.constant 0 : i32
    %c0_i32_0 = arith.constant 0 : i32
    return %c0_i32, %arg1 : i32, i32
  }
  func.func @transform_3(%arg0: i32, %arg1: i32) -> (i32, i32) {
    %c0_i32 = arith.constant 0 : i32
    return %arg0, %arg1 : i32, i32
  }
}

module attributes {stable_mosaic.version = 11 : i64} {
  func.func @_gemm_kernel(%arg0: i32, %arg1: i32, %arg2: memref<32x128xbf16, #tpu.memory_space<vmem>>, %arg3: memref<128x128xbf16, #tpu.memory_space<vmem>>, %arg4: memref<1x128xf32, #tpu.memory_space<vmem>>, %arg5: memref<32x128xf32, #tpu.memory_space<vmem>>) attributes {dimension_semantics = [#tpu.dimension_semantics<parallel>, #tpu.dimension_semantics<parallel>], iteration_bounds = array<i64: 1, 1>, scalar_prefetch = 0 : i64, scratch_operands = 0 : i64, tpu.core_type = #tpu.core_type<tc>, window_params = [{transform_indices = @transform_0, window_bounds = array<i64: 32, 128>}, {transform_indices = @transform_1, window_bounds = array<i64: 128, 128>}, {transform_indices = @transform_2, window_bounds = array<i64: 1, 128>}, {transform_indices = @transform_3, window_bounds = array<i64: 32, 128>}]} {
    %c0 = arith.constant 0 : index
    %c0_0 = arith.constant 0 : index
    %0 = vector.load %arg2[%c0, %c0_0] : memref<32x128xbf16, #tpu.memory_space<vmem>>, vector<32x128xbf16>
    %c0_1 = arith.constant 0 : index
    %c0_2 = arith.constant 0 : index
    %1 = vector.load %arg3[%c0_1, %c0_2] : memref<128x128xbf16, #tpu.memory_space<vmem>>, vector<128x128xbf16>
    %cst = arith.constant dense<0.000000e+00> : vector<32x128xf32>
    %2 = tpu.matmul %0, %1, %cst {dimension_numbers = #tpu.dot_dimension_numbers<[1], [0], [0], [1], [0, 0, 1, 1], [], []>} : vector<32x128xbf16>, vector<128x128xbf16>, vector<32x128xf32> -> vector<32x128xf32>
    %c0_3 = arith.constant 0 : index
    %c0_4 = arith.constant 0 : index
    %3 = vector.load %arg4[%c0_3, %c0_4] : memref<1x128xf32, #tpu.memory_space<vmem>>, vector<1x128xf32>
    %4 = vector.broadcast %3 : vector<1x128xf32> to vector<32x128xf32>
    %5 = arith.addf %2, %4 : vector<32x128xf32>
    %cst_5 = arith.constant 0.000000e+00 : f32
    %6 = vector.broadcast %cst_5 : f32 to vector<32x128xf32>
    %7 = arith.maximumf %5, %6 : vector<32x128xf32>
    %c0_6 = arith.constant 0 : index
    %c0_7 = arith.constant 0 : index
    %8 = vector.load %arg5[%c0_6, %c0_7] : memref<32x128xf32, #tpu.memory_space<vmem>>, vector<32x128xf32>
    tpu.vector_store %arg5[%c0_6, %c0_7], %7 {strides = array<i32>} : memref<32x128xf32, #tpu.memory_space<vmem>>, vector<32x128xf32>,
    return
  }
  func.func @transform_0(%arg0: i32, %arg1: i32) -> (i32, i32) {
    %c0_i32 = arith.constant 0 : i32
    %c0_i32_0 = arith.constant 0 : i32
    return %arg0, %c0_i32 : i32, i32
  }
  func.func @transform_1(%arg0: i32, %arg1: i32) -> (i32, i32) {
    %c0_i32 = arith.constant 0 : i32
    %c0_i32_0 = arith.constant 0 : i32
    return %c0_i32, %arg1 : i32, i32
  }
  func.func @transform_2(%arg0: i32, %arg1: i32) -> (i32, i32) {
    %c0_i32 = arith.constant 0 : i32
    %c0_i32_0 = arith.constant 0 : i32
    return %c0_i32, %arg1 : i32, i32
  }
  func.func @transform_3(%arg0: i32, %arg1: i32) -> (i32, i32) {
    %c0_i32 = arith.constant 0 : i32
    return %arg0, %arg1 : i32, i32
  }
}

module attributes {stable_mosaic.version = 11 : i64} {
  func.func @_gemm_kernel(%arg0: i32, %arg1: i32, %arg2: memref<128x128xbf16, #tpu.memory_space<vmem>>, %arg3: memref<128x128xbf16, #tpu.memory_space<vmem>>, %arg4: memref<1x128xf32, #tpu.memory_space<vmem>>, %arg5: memref<128x128xf32, #tpu.memory_space<vmem>>) attributes {dimension_semantics = [#tpu.dimension_semantics<parallel>, #tpu.dimension_semantics<parallel>], iteration_bounds = array<i64: 1, 1>, scalar_prefetch = 0 : i64, scratch_operands = 0 : i64, tpu.core_type = #tpu.core_type<tc>, window_params = [{transform_indices = @transform_0, window_bounds = array<i64: 128, 128>}, {transform_indices = @transform_1, window_bounds = array<i64: 128, 128>}, {transform_indices = @transform_2, window_bounds = array<i64: 1, 128>}, {transform_indices = @transform_3, window_bounds = array<i64: 128, 128>}]} {
    %c0 = arith.constant 0 : index
    %c0_0 = arith.constant 0 : index
    %0 = vector.load %arg2[%c0, %c0_0] : memref<128x128xbf16, #tpu.memory_space<vmem>>, vector<128x128xbf16>
    %c0_1 = arith.constant 0 : index
    %c0_2 = arith.constant 0 : index
    %1 = vector.load %arg3[%c0_1, %c0_2] : memref<128x128xbf16, #tpu.memory_space<vmem>>, vector<128x128xbf16>
    %cst = arith.constant dense<0.000000e+00> : vector<128x128xf32>
    %2 = tpu.matmul %0, %1, %cst {dimension_numbers = #tpu.dot_dimension_numbers<[1], [0], [0], [1], [0, 0, 1, 1], [], []>} : vector<128x128xbf16>, vector<128x128xbf16>, vector<128x128xf32> -> vector<128x128xf32>
    %c0_3 = arith.constant 0 : index
    %c0_4 = arith.constant 0 : index
    %3 = vector.load %arg4[%c0_3, %c0_4] : memref<1x128xf32, #tpu.memory_space<vmem>>, vector<1x128xf32>
    %4 = vector.broadcast %3 : vector<1x128xf32> to vector<128x128xf32>
    %5 = arith.addf %2, %4 : vector<128x128xf32>
    %c0_5 = arith.constant 0 : index
    %c0_6 = arith.constant 0 : index
    %6 = vector.load %arg5[%c0_5, %c0_6] : memref<128x128xf32, #tpu.memory_space<vmem>>, vector<128x128xf32>
    tpu.vector_store %arg5[%c0_5, %c0_6], %5 {strides = array<i32>} : memref<128x128xf32, #tpu.memory_space<vmem>>, vector<128x128xf32>,
    return
  }
  func.func @transform_0(%arg0: i32, %arg1: i32) -> (i32, i32) {
    %c0_i32 = arith.constant 0 : i32
    %c0_i32_0 = arith.constant 0 : i32
    return %arg0, %c0_i32 : i32, i32
  }
  func.func @transform_1(%arg0: i32, %arg1: i32) -> (i32, i32) {
    %c0_i32 = arith.constant 0 : i32
    %c0_i32_0 = arith.constant 0 : i32
    return %c0_i32, %arg1 : i32, i32
  }
  func.func @transform_2(%arg0: i32, %arg1: i32) -> (i32, i32) {
    %c0_i32 = arith.constant 0 : i32
    %c0_i32_0 = arith.constant 0 : i32
    return %c0_i32, %arg1 : i32, i32
  }
  func.func @transform_3(%arg0: i32, %arg1: i32) -> (i32, i32) {
    %c0_i32 = arith.constant 0 : i32
    return %arg0, %arg1 : i32, i32
  }
}

</mosaic_0001>

<llo_original>
// kernel: _lambda_.22
$region0: #{_lambda_.22}
  #allocation0 [shape = 'u32[]', space=smem, size = 0x4, offset = 0x4, fixed_abs, tag = 'smem constant byte address 0x4 - core index']
  #allocation1 [shape = 'u32[144,128]{1,0:T(1,128)}', space=vmem, size = 0x12000, scoped, tag = 'internal scratch']
  %s0 = inlined_call_operand.vmem [shape: bf16[128,128], index: 0, kind: input, shape index: {}]
  %s1 = inlined_call_operand.vmem [shape: bf16[128,128], index: 1, kind: input, shape index: {}]
  %s2 = inlined_call_operand.vmem [shape: f32[1,128], index: 2, kind: input, shape index: {}]
  %s3 = inlined_call_operand.vmem [shape: f32[128,128], index: 3, kind: output, shape index: {}]
  %s4 = sld [smem:[#allocation0]]
  $region22: #{_lambda_.22} parent=0
    _
  %s6 = ssub.s32 1, %s4
  %s7 = scalar_select 0, %s6, %s4
  // Predicated region
  $region2: #{_lambda_.22} parent=0 // pred_check
    _
  $region3: #{_lambda_.22} parent=0 // pred_check_branch
    %9 = sbr.rel (0) target = $region5
  $region4: #{_lambda_.22} parent=0 // pred_region
    _
  $region5: #{_lambda_.22} parent=0 // pred_fallthru
    _
  // Predicated region
  $region6: #{_lambda_.22} parent=0 // pred_check
    _
  $region7: #{_lambda_.22} parent=0 // pred_check_branch
    %11 = sbr.rel (0) target = $region9
  $region8: #{_lambda_.22} parent=0 // pred_region
    _
  $region9: #{_lambda_.22} parent=0 // pred_fallthru
    _
  // Predicated region
  $region10: #{_lambda_.22} parent=0 // pred_check
    _
  $region11: #{_lambda_.22} parent=0 // pred_check_branch
    %13 = sbr.rel (0) target = $region13
  $region12: #{_lambda_.22} parent=0 // pred_region
    _
  $region13: #{_lambda_.22} parent=0 // pred_fallthru
    _
  %v15 = vld [vmem:[%s0] sm:$0xf]
  %v16 = vld [vmem:[%s0 + $0x4] sm:$0xf]
  %v17 = vld [vmem:[%s0 + $0x8] sm:$0xf]
  %v18 = vld [vmem:[%s0 + $0xc] sm:$0xf]
  %v19 = vld [vmem:[%s0 + $0x10] sm:$0xf]
  %v20 = vld [vmem:[%s0 + $0x14] sm:$0xf]
  %v21 = vld [vmem:[%s0 + $0x18] sm:$0xf]
  %v22 = vld [vmem:[%s0 + $0x1c] sm:$0xf]
  %v23 = vld [vmem:[%s0 + $0x20] sm:$0xf]
  %v24 = vld [vmem:[%s0 + $0x24] sm:$0xf]
  %v25 = vld [vmem:[%s0 + $0x28] sm:$0xf]
  %v26 = vld [vmem:[%s0 + $0x2c] sm:$0xf]
  %v27 = vld [vmem:[%s0 + $0x30] sm:$0xf]
  %v28 = vld [vmem:[%s0 + $0x34] sm:$0xf]
  %v29 = vld [vmem:[%s0 + $0x38] sm:$0xf]
  %v30 = vld [vmem:[%s0 + $0x3c] sm:$0xf]
  %v31 = vld [vmem:[%s1] sm:$0xf]
  %v32 = vld [vmem:[%s1 + $0x4] sm:$0xf]
  %v33 = vld [vmem:[%s1 + $0x8] sm:$0xf]
  %v34 = vld [vmem:[%s1 + $0xc] sm:$0xf]
  %v35 = vld [vmem:[%s1 + $0x10] sm:$0xf]
  %v36 = vld [vmem:[%s1 + $0x14] sm:$0xf]
  %v37 = vld [vmem:[%s1 + $0x18] sm:$0xf]
  %v38 = vld [vmem:[%s1 + $0x1c] sm:$0xf]
  %v39 = vld [vmem:[%s1 + $0x20] sm:$0xf]
  %v40 = vld [vmem:[%s1 + $0x24] sm:$0xf]
  %v41 = vld [vmem:[%s1 + $0x28] sm:$0xf]
  %v42 = vld [vmem:[%s1 + $0x2c] sm:$0xf]
  %v43 = vld [vmem:[%s1 + $0x30] sm:$0xf]
  %v44 = vld [vmem:[%s1 + $0x34] sm:$0xf]
  %v45 = vld [vmem:[%s1 + $0x38] sm:$0xf]
  %v46 = vld [vmem:[%s1 + $0x3c] sm:$0xf]
  %v47 = vld [vmem:[%s2] sm:$0x1]
  %v49 = vlaneseq
  %v50 = vshrl.u32 %v49, 7
  %v51 = vsub.s32 0, %v50
  %v52 = vrot.slane %v47, %v51
  %v70 = vunpack.c.l.b16 %v15
  %v71 = vunpack.c.l.b16 %v16
  %v72 = vunpack.c.l.b16 %v17
  %v73 = vunpack.c.l.b16 %v18
  %v74 = vunpack.c.l.b16 %v19
  %v75 = vunpack.c.l.b16 %v20
  %v76 = vunpack.c.l.b16 %v21
  %v77 = vunpack.c.l.b16 %v22
  %v78 = vunpack.c.l.b16 %v23
  %v79 = vunpack.c.l.b16 %v24
  %v80 = vunpack.c.l.b16 %v25
  %v81 = vunpack.c.l.b16 %v26
  %v82 = vunpack.c.l.b16 %v27
  %v83 = vunpack.c.l.b16 %v28
  %v84 = vunpack.c.l.b16 %v29
  %v85 = vunpack.c.l.b16 %v30
  %v86 = vpack.c.b16 %v71, %v70
  %v87 = vpack.c.b16 %v73, %v72
  %v88 = vpack.c.b16 %v75, %v74
  %v89 = vpack.c.b16 %v77, %v76
  %v90 = vpack.c.b16 %v79, %v78
  %v91 = vpack.c.b16 %v81, %v80
  %v92 = vpack.c.b16 %v83, %v82
  %v93 = vpack.c.b16 %v85, %v84
  %v118 = vunpack.c.l.b16 %v31
  %v119 = vunpack.c.l.b16 %v32
  %v120 = vunpack.c.l.b16 %v33
  %v121 = vunpack.c.l.b16 %v34
  %v122 = vunpack.c.l.b16 %v35
  %v123 = vunpack.c.l.b16 %v36
  %v124 = vunpack.c.l.b16 %v37
  %v125 = vunpack.c.l.b16 %v38
  %v126 = vunpack.c.l.b16 %v39
  %v127 = vunpack.c.l.b16 %v40
  %v128 = vunpack.c.l.b16 %v41
  %v129 = vunpack.c.l.b16 %v42
  %v130 = vunpack.c.l.b16 %v43
  %v131 = vunpack.c.l.b16 %v44
  %v132 = vunpack.c.l.b16 %v45
  %v133 = vunpack.c.l.b16 %v46
  %v134 = vpack.c.b16 %v119, %v118
  %v135 = vpack.c.b16 %v121, %v120
  %v136 = vpack.c.b16 %v123, %v122
  %v137 = vpack.c.b16 %v125, %v124
  %v138 = vpack.c.b16 %v127, %v126
  %v139 = vpack.c.b16 %v129, %v128
  %v140 = vpack.c.b16 %v131, %v130
  %v141 = vpack.c.b16 %v133, %v132
  %150 = vmatprep.subr.bf16.mxu0 0
  %151 = vmatpush1.bf16.msra.mxu0 %v134
  %152 = vmatprep.subr.bf16.mxu0 0
  %153 = vmatpush1.bf16.msra.mxu0 %v135
  %154 = vmatprep.subr.bf16.mxu0 0
  %155 = vmatpush1.bf16.msra.mxu0 %v136
  %156 = vmatprep.subr.bf16.mxu0 0
  %157 = vmatpush1.bf16.msra.mxu0 %v137
  %158 = vmatprep.subr.bf16.mxu0 0
  %159 = vmatpush1.bf16.msra.mxu0 %v138
  %160 = vmatprep.subr.bf16.mxu0 0
  %161 = vmatpush1.bf16.msra.mxu0 %v139
  %162 = vmatprep.subr.bf16.mxu0 0
  %163 = vmatpush1.bf16.msra.mxu0 %v140
  %164 = vmatprep.subr.bf16.mxu0 0
  %165 = vmatpush1.bf16.msra.mxu0 %v141
  %166 = vmatprep.subr.bf16.mxu0 0
  %167 = vmatpush1.bf16.msra.mxu0 0
  %168 = vmatprep.subr.bf16.mxu0 0
  %169 = vmatpush1.bf16.msra.mxu0 0
  %170 = vmatprep.subr.bf16.mxu0 0
  %171 = vmatpush1.bf16.msra.mxu0 0
  %172 = vmatprep.subr.bf16.mxu0 0
  %173 = vmatpush1.bf16.msra.mxu0 0
  %174 = vmatprep.subr.bf16.mxu0 0
  %175 = vmatpush1.bf16.msra.mxu0 0
  %176 = vmatprep.subr.bf16.mxu0 0
  %177 = vmatpush1.bf16.msra.mxu0 0
  %178 = vmatprep.subr.bf16.mxu0 0
  %179 = vmatpush1.bf16.msra.mxu0 0
  %180 = vmatprep.subr.bf16.mxu0 0
  %181 = vmatpush1.bf16.msra.mxu0 0
  %182 = vmatprep.mubr.bf16.mxu0 0
  %183 = vmatmul.mubr.bf16.gmra.mrb[0].mxu0 %v86
  %v184 = vpop.f32.mrb[0].mxu0
  %v185 = vadd.f32 %v52, %v184
  %v186 = vpop.f32.mrb[0].mxu0
  %v187 = vpop.f32.mrb[0].mxu0
  %v188 = vadd.f32 %v52, %v187
  %v189 = vpop.f32.mrb[0].mxu0
  %190 = vmatprep.mubr.bf16.mxu0 0
  %191 = vmatmul.mubr.bf16.gmra.mrb[0].mxu0 %v87
  %v192 = vpop.f32.mrb[0].mxu0
  %v193 = vadd.f32 %v52, %v192
  %v194 = vpop.f32.mrb[0].mxu0
  %v195 = vpop.f32.mrb[0].mxu0
  %v196 = vadd.f32 %v52, %v195
  %v197 = vpop.f32.mrb[0].mxu0
  %198 = vmatprep.mubr.bf16.mxu0 0
  %199 = vmatmul.mubr.bf16.gmra.mrb[0].mxu0 %v88
  %v200 = vpop.f32.mrb[0].mxu0
  %v201 = vadd.f32 %v52, %v200
  %v202 = vpop.f32.mrb[0].mxu0
  %v203 = vpop.f32.mrb[0].mxu0
  %v204 = vadd.f32 %v52, %v203
  %v205 = vpop.f32.mrb[0].mxu0
  %206 = vmatprep.mubr.bf16.mxu0 0
  %207 = vmatmul.mubr.bf16.gmra.mrb[0].mxu0 %v89
  %v208 = vpop.f32.mrb[0].mxu0
  %v209 = vadd.f32 %v52, %v208
  %v210 = vpop.f32.mrb[0].mxu0
  %v211 = vpop.f32.mrb[0].mxu0
  %v212 = vadd.f32 %v52, %v211
  %v213 = vpop.f32.mrb[0].mxu0
  %214 = vmatprep.mubr.bf16.mxu0 0
  %215 = vmatmul.mubr.bf16.gmra.mrb[0].mxu0 %v90
  %v216 = vpop.f32.mrb[0].mxu0
  %v217 = vadd.f32 %v52, %v216
  %v218 = vpop.f32.mrb[0].mxu0
  %v219 = vpop.f32.mrb[0].mxu0
  %v220 = vadd.f32 %v52, %v219
  %v221 = vpop.f32.mrb[0].mxu0
  %222 = vmatprep.mubr.bf16.mxu0 0
  %223 = vmatmul.mubr.bf16.gmra.mrb[0].mxu0 %v91
  %v224 = vpop.f32.mrb[0].mxu0
  %v225 = vadd.f32 %v52, %v224
  %v226 = vpop.f32.mrb[0].mxu0
  %v227 = vpop.f32.mrb[0].mxu0
  %v228 = vadd.f32 %v52, %v227
  %v229 = vpop.f32.mrb[0].mxu0
  %230 = vmatprep.mubr.bf16.mxu0 0
  %231 = vmatmul.mubr.bf16.gmra.mrb[0].mxu0 %v92
  %v232 = vpop.f32.mrb[0].mxu0
  %v233 = vadd.f32 %v52, %v232
  %v234 = vpop.f32.mrb[0].mxu0
  %v235 = vpop.f32.mrb[0].mxu0
  %v236 = vadd.f32 %v52, %v235
  %v237 = vpop.f32.mrb[0].mxu0
  %238 = vmatprep.mubr.bf16.mxu0 0
  %239 = vmatmul.mubr.bf16.gmra.mrb[0].mxu0 %v93
  %v240 = vpop.f32.mrb[0].mxu0
  %v241 = vadd.f32 %v52, %v240
  %v242 = vpop.f32.mrb[0].mxu0
  %v243 = vpop.f32.mrb[0].mxu0
  %v244 = vadd.f32 %v52, %v243
  %v245 = vpop.f32.mrb[0].mxu0
  %246 = vdwg.mxu0
  %v247 = vmax.f32 %v185, 0.0
  %v248 = vmax.f32 %v188, 0.0
  %v249 = vmax.f32 %v193, 0.0
  %v250 = vmax.f32 %v196, 0.0
  %v251 = vmax.f32 %v201, 0.0
  %v252 = vmax.f32 %v204, 0.0
  %v253 = vmax.f32 %v209, 0.0
  %v254 = vmax.f32 %v212, 0.0
  %v255 = vmax.f32 %v217, 0.0
  %v256 = vmax.f32 %v220, 0.0
  %v257 = vmax.f32 %v225, 0.0
  %v258 = vmax.f32 %v228, 0.0
  %v259 = vmax.f32 %v233, 0.0
  %v260 = vmax.f32 %v236, 0.0
  %v261 = vmax.f32 %v241, 0.0
  %v262 = vmax.f32 %v244, 0.0
  %263 = vst [vmem:[%s3] sm:$0xff] %v247
  %264 = vst [vmem:[%s3 + $0x8] sm:$0xff] %v248
  %265 = vst [vmem:[%s3 + $0x10] sm:$0xff] %v249
  %266 = vst [vmem:[%s3 + $0x18] sm:$0xff] %v250
  %267 = vst [vmem:[%s3 + $0x20] sm:$0xff] %v251
  %268 = vst [vmem:[%s3 + $0x28] sm:$0xff] %v252
  %269 = vst [vmem:[%s3 + $0x30] sm:$0xff] %v253
  %270 = vst [vmem:[%s3 + $0x38] sm:$0xff] %v254
  %271 = vst [vmem:[%s3 + $0x40] sm:$0xff] %v255
  %272 = vst [vmem:[%s3 + $0x48] sm:$0xff] %v256
  %273 = vst [vmem:[%s3 + $0x50] sm:$0xff] %v257
  %274 = vst [vmem:[%s3 + $0x58] sm:$0xff] %v258
  %275 = vst [vmem:[%s3 + $0x60] sm:$0xff] %v259
  %276 = vst [vmem:[%s3 + $0x68] sm:$0xff] %v260
  %277 = vst [vmem:[%s3 + $0x70] sm:$0xff] %v261
  %278 = vst [vmem:[%s3 + $0x78] sm:$0xff] %v262
  // Predicated region
  $region14: #{_lambda_.22} parent=0 // pred_check
    _
  $region15: #{_lambda_.22} parent=0 // pred_check_branch
    %280 = sbr.rel (0) target = $region17
  $region16: #{_lambda_.22} parent=0 // pred_region
    _
  $region17: #{_lambda_.22} parent=0 // pred_fallthru
    _
  // Predicated region
  $region18: #{_lambda_.22} parent=0 // pred_check
    _
  $region19: #{_lambda_.22} parent=0 // pred_check_branch
    %282 = sbr.rel (0) target = $region21
  $region20: #{_lambda_.22} parent=0 // pred_region
    _
  $region21: #{_lambda_.22} parent=0 // pred_fallthru
    _

// kernel: _lambda_.23
$region0: #{_lambda_.23}
  #allocation0 [shape = 'u32[]', space=smem, size = 0x4, offset = 0x4, fixed_abs, tag = 'smem constant byte address 0x4 - core index']
  #allocation1 [shape = 'u32[144,128]{1,0:T(1,128)}', space=vmem, size = 0x12000, scoped, tag = 'internal scratch']
  %s0 = inlined_call_operand.vmem [shape: bf16[32,256], index: 0, kind: input, shape index: {}]
  %s1 = inlined_call_operand.vmem [shape: bf16[256,128], index: 1, kind: input, shape index: {}]
  %s2 = inlined_call_operand.vmem [shape: f32[1,128], index: 2, kind: input, shape index: {}]
  %s3 = inlined_call_operand.vmem [shape: f32[32,128], index: 3, kind: output, shape index: {}]
  %s4 = sld [smem:[#allocation0]]
  $region22: #{_lambda_.23} parent=0
    _
  %s6 = ssub.s32 1, %s4
  %s7 = scalar_select 0, %s6, %s4
  // Predicated region
  $region2: #{_lambda_.23} parent=0 // pred_check
    _
  $region3: #{_lambda_.23} parent=0 // pred_check_branch
    %9 = sbr.rel (0) target = $region5
  $region4: #{_lambda_.23} parent=0 // pred_region
    _
  $region5: #{_lambda_.23} parent=0 // pred_fallthru
    _
  // Predicated region
  $region6: #{_lambda_.23} parent=0 // pred_check
    _
  $region7: #{_lambda_.23} parent=0 // pred_check_branch
    %11 = sbr.rel (0) target = $region9
  $region8: #{_lambda_.23} parent=0 // pred_region
    _
  $region9: #{_lambda_.23} parent=0 // pred_fallthru
    _
  // Predicated region
  $region10: #{_lambda_.23} parent=0 // pred_check
    _
  $region11: #{_lambda_.23} parent=0 // pred_check_branch
    %13 = sbr.rel (0) target = $region13
  $region12: #{_lambda_.23} parent=0 // pred_region
    _
  $region13: #{_lambda_.23} parent=0 // pred_fallthru
    _
  %v15 = vld [vmem:[%s0] sm:$0xff]
  %v16 = vld [vmem:[%s0 + $0x8] sm:$0xff]
  %v17 = vld [vmem:[%s0 + $0x10] sm:$0xff]
  %v18 = vld [vmem:[%s0 + $0x18] sm:$0xff]
  %v19 = vld [vmem:[%s1] sm:$0xf]
  %v20 = vld [vmem:[%s1 + $0x4] sm:$0xf]
  %v21 = vld [vmem:[%s1 + $0x8] sm:$0xf]
  %v22 = vld [vmem:[%s1 + $0xc] sm:$0xf]
  %v23 = vld [vmem:[%s1 + $0x10] sm:$0xf]
  %v24 = vld [vmem:[%s1 + $0x14] sm:$0xf]
  %v25 = vld [vmem:[%s1 + $0x18] sm:$0xf]
  %v26 = vld [vmem:[%s1 + $0x1c] sm:$0xf]
  %v27 = vld [vmem:[%s1 + $0x20] sm:$0xf]
  %v28 = vld [vmem:[%s1 + $0x24] sm:$0xf]
  %v29 = vld [vmem:[%s1 + $0x28] sm:$0xf]
  %v30 = vld [vmem:[%s1 + $0x2c] sm:$0xf]
  %v31 = vld [vmem:[%s1 + $0x30] sm:$0xf]
  %v32 = vld [vmem:[%s1 + $0x34] sm:$0xf]
  %v33 = vld [vmem:[%s1 + $0x38] sm:$0xf]
  %v34 = vld [vmem:[%s1 + $0x3c] sm:$0xf]
  %v35 = vld [vmem:[%s1 + $0x40] sm:$0xf]
  %v36 = vld [vmem:[%s1 + $0x44] sm:$0xf]
  %v37 = vld [vmem:[%s1 + $0x48] sm:$0xf]
  %v38 = vld [vmem:[%s1 + $0x4c] sm:$0xf]
  %v39 = vld [vmem:[%s1 + $0x50] sm:$0xf]
  %v40 = vld [vmem:[%s1 + $0x54] sm:$0xf]
  %v41 = vld [vmem:[%s1 + $0x58] sm:$0xf]
  %v42 = vld [vmem:[%s1 + $0x5c] sm:$0xf]
  %v43 = vld [vmem:[%s1 + $0x60] sm:$0xf]
  %v44 = vld [vmem:[%s1 + $0x64] sm:$0xf]
  %v45 = vld [vmem:[%s1 + $0x68] sm:$0xf]
  %v46 = vld [vmem:[%s1 + $0x6c] sm:$0xf]
  %v47 = vld [vmem:[%s1 + $0x70] sm:$0xf]
  %v48 = vld [vmem:[%s1 + $0x74] sm:$0xf]
  %v49 = vld [vmem:[%s1 + $0x78] sm:$0xf]
  %v50 = vld [vmem:[%s1 + $0x7c] sm:$0xf]
  %v51 = vld [vmem:[%s2] sm:$0x1]
  %v53 = vlaneseq
  %v54 = vshrl.u32 %v53, 7
  %v55 = vsub.s32 0, %v54
  %v56 = vrot.slane %v51, %v55
  %v62 = vunpack.c.l.b16 %v15
  %v63 = vunpack.c.h.b16 %v15
  %v64 = vunpack.c.l.b16 %v16
  %v65 = vunpack.c.h.b16 %v16
  %v66 = vunpack.c.l.b16 %v17
  %v67 = vunpack.c.h.b16 %v17
  %v68 = vunpack.c.l.b16 %v18
  %v69 = vunpack.c.h.b16 %v18
  %v70 = vpack.c.b16 %v64, %v62
  %v71 = vpack.c.b16 %v65, %v63
  %v72 = vpack.c.b16 %v68, %v66
  %v73 = vpack.c.b16 %v69, %v67
  %v110 = vunpack.c.l.b16 %v19
  %v111 = vunpack.c.l.b16 %v20
  %v112 = vunpack.c.l.b16 %v21
  %v113 = vunpack.c.l.b16 %v22
  %v114 = vunpack.c.l.b16 %v23
  %v115 = vunpack.c.l.b16 %v24
  %v116 = vunpack.c.l.b16 %v25
  %v117 = vunpack.c.l.b16 %v26
  %v118 = vunpack.c.l.b16 %v27
  %v119 = vunpack.c.l.b16 %v28
  %v120 = vunpack.c.l.b16 %v29
  %v121 = vunpack.c.l.b16 %v30
  %v122 = vunpack.c.l.b16 %v31
  %v123 = vunpack.c.l.b16 %v32
  %v124 = vunpack.c.l.b16 %v33
  %v125 = vunpack.c.l.b16 %v34
  %v126 = vunpack.c.l.b16 %v35
  %v127 = vunpack.c.l.b16 %v36
  %v128 = vunpack.c.l.b16 %v37
  %v129 = vunpack.c.l.b16 %v38
  %v130 = vunpack.c.l.b16 %v39
  %v131 = vunpack.c.l.b16 %v40
  %v132 = vunpack.c.l.b16 %v41
  %v133 = vunpack.c.l.b16 %v42
  %v134 = vunpack.c.l.b16 %v43
  %v135 = vunpack.c.l.b16 %v44
  %v136 = vunpack.c.l.b16 %v45
  %v137 = vunpack.c.l.b16 %v46
  %v138 = vunpack.c.l.b16 %v47
  %v139 = vunpack.c.l.b16 %v48
  %v140 = vunpack.c.l.b16 %v49
  %v141 = vunpack.c.l.b16 %v50
  %v142 = vpack.c.b16 %v111, %v110
  %v143 = vpack.c.b16 %v113, %v112
  %v144 = vpack.c.b16 %v115, %v114
  %v145 = vpack.c.b16 %v117, %v116
  %v146 = vpack.c.b16 %v119, %v118
  %v147 = vpack.c.b16 %v121, %v120
  %v148 = vpack.c.b16 %v123, %v122
  %v149 = vpack.c.b16 %v125, %v124
  %v150 = vpack.c.b16 %v127, %v126
  %v151 = vpack.c.b16 %v129, %v128
  %v152 = vpack.c.b16 %v131, %v130
  %v153 = vpack.c.b16 %v133, %v132
  %v154 = vpack.c.b16 %v135, %v134
  %v155 = vpack.c.b16 %v137, %v136
  %v156 = vpack.c.b16 %v139, %v138
  %v157 = vpack.c.b16 %v141, %v140
  %174 = vmatprep.subr.bf16.mxu0 0
  %175 = vmatpush1.bf16.msra.mxu0 %v142
  %176 = vmatprep.subr.bf16.mxu0 0
  %177 = vmatpush1.bf16.msra.mxu0 %v143
  %178 = vmatprep.subr.bf16.mxu0 0
  %179 = vmatpush1.bf16.msra.mxu0 %v144
  %180 = vmatprep.subr.bf16.mxu0 0
  %181 = vmatpush1.bf16.msra.mxu0 %v145
  %182 = vmatprep.subr.bf16.mxu0 0
  %183 = vmatpush1.bf16.msra.mxu0 %v146
  %184 = vmatprep.subr.bf16.mxu0 0
  %185 = vmatpush1.bf16.msra.mxu0 %v147
  %186 = vmatprep.subr.bf16.mxu0 0
  %187 = vmatpush1.bf16.msra.mxu0 %v148
  %188 = vmatprep.subr.bf16.mxu0 0
  %189 = vmatpush1.bf16.msra.mxu0 %v149
  %190 = vmatprep.subr.bf16.mxu0 0
  %191 = vmatpush1.bf16.msra.mxu0 %v150
  %192 = vmatprep.subr.bf16.mxu0 0
  %193 = vmatpush1.bf16.msra.mxu0 %v151
  %194 = vmatprep.subr.bf16.mxu0 0
  %195 = vmatpush1.bf16.msra.mxu0 %v152
  %196 = vmatprep.subr.bf16.mxu0 0
  %197 = vmatpush1.bf16.msra.mxu0 %v153
  %198 = vmatprep.subr.bf16.mxu0 0
  %199 = vmatpush1.bf16.msra.mxu0 %v154
  %200 = vmatprep.subr.bf16.mxu0 0
  %201 = vmatpush1.bf16.msra.mxu0 %v155
  %202 = vmatprep.subr.bf16.mxu0 0
  %203 = vmatpush1.bf16.msra.mxu0 %v156
  %204 = vmatprep.subr.bf16.mxu0 0
  %205 = vmatpush1.bf16.msra.mxu0 %v157
  %206 = vmatprep.mubr.bf16.mxu0 %v71
  %207 = vmatmul.mubr.bf16.gmra.mrb[0].mxu0 %v70
  %v208 = vpop.f32.mrb[0].mxu0
  %v209 = vadd.f32 %v56, %v208
  %v210 = vpop.f32.mrb[0].mxu0
  %v211 = vpop.f32.mrb[0].mxu0
  %v212 = vadd.f32 %v56, %v211
  %v213 = vpop.f32.mrb[0].mxu0
  %214 = vmatprep.mubr.bf16.mxu0 %v73
  %215 = vmatmul.mubr.bf16.gmra.mrb[0].mxu0 %v72
  %v216 = vpop.f32.mrb[0].mxu0
  %v217 = vadd.f32 %v56, %v216
  %v218 = vpop.f32.mrb[0].mxu0
  %v219 = vpop.f32.mrb[0].mxu0
  %v220 = vadd.f32 %v56, %v219
  %v221 = vpop.f32.mrb[0].mxu0
  %222 = vdwg.mxu0
  %v223 = vmax.f32 %v209, 0.0
  %v224 = vmax.f32 %v212, 0.0
  %v225 = vmax.f32 %v217, 0.0
  %v226 = vmax.f32 %v220, 0.0
  %227 = vst [vmem:[%s3] sm:$0xff] %v223
  %228 = vst [vmem:[%s3 + $0x8] sm:$0xff] %v224
  %229 = vst [vmem:[%s3 + $0x10] sm:$0xff] %v225
  %230 = vst [vmem:[%s3 + $0x18] sm:$0xff] %v226
  // Predicated region
  $region14: #{_lambda_.23} parent=0 // pred_check
    _
  $region15: #{_lambda_.23} parent=0 // pred_check_branch
    %232 = sbr.rel (0) target = $region17
  $region16: #{_lambda_.23} parent=0 // pred_region
    _
  $region17: #{_lambda_.23} parent=0 // pred_fallthru
    _
  // Predicated region
  $region18: #{_lambda_.23} parent=0 // pred_check
    _
  $region19: #{_lambda_.23} parent=0 // pred_check_branch
    %234 = sbr.rel (0) target = $region21
  $region20: #{_lambda_.23} parent=0 // pred_region
    _
  $region21: #{_lambda_.23} parent=0 // pred_fallthru
    _

// kernel: _lambda_.25
$region0: #{_lambda_.25}
  #allocation0 [shape = 'u32[]', space=smem, size = 0x4, offset = 0x4, fixed_abs, tag = 'smem constant byte address 0x4 - core index']
  #allocation1 [shape = 'u32[144,128]{1,0:T(1,128)}', space=vmem, size = 0x12000, scoped, tag = 'internal scratch']
  %s0 = inlined_call_operand.vmem [shape: bf16[32,384], index: 0, kind: input, shape index: {}]
  %s1 = inlined_call_operand.vmem [shape: bf16[384,128], index: 1, kind: input, shape index: {}]
  %s2 = inlined_call_operand.vmem [shape: f32[1,128], index: 2, kind: input, shape index: {}]
  %s3 = inlined_call_operand.vmem [shape: f32[32,128], index: 3, kind: output, shape index: {}]
  %s4 = sld [smem:[#allocation0]]
  $region22: #{_lambda_.25} parent=0
    _
  %s6 = ssub.s32 1, %s4
  %s7 = scalar_select 0, %s6, %s4
  // Predicated region
  $region2: #{_lambda_.25} parent=0 // pred_check
    _
  $region3: #{_lambda_.25} parent=0 // pred_check_branch
    %9 = sbr.rel (0) target = $region5
  $region4: #{_lambda_.25} parent=0 // pred_region
    _
  $region5: #{_lambda_.25} parent=0 // pred_fallthru
    _
  // Predicated region
  $region6: #{_lambda_.25} parent=0 // pred_check
    _
  $region7: #{_lambda_.25} parent=0 // pred_check_branch
    %11 = sbr.rel (0) target = $region9
  $region8: #{_lambda_.25} parent=0 // pred_region
    _
  $region9: #{_lambda_.25} parent=0 // pred_fallthru
    _
  // Predicated region
  $region10: #{_lambda_.25} parent=0 // pred_check
    _
  $region11: #{_lambda_.25} parent=0 // pred_check_branch
    %13 = sbr.rel (0) target = $region13
  $region12: #{_lambda_.25} parent=0 // pred_region
    _
  $region13: #{_lambda_.25} parent=0 // pred_fallthru
    _
  %v15 = vld [vmem:[%s0] sm:$0xff]
  %v16 = vld [vmem:[%s0 + $0x8] sm:$0xf]
  %v17 = vld [vmem:[%s0 + $0xc] sm:$0xff]
  %v18 = vld [vmem:[%s0 + $0x14] sm:$0xf]
  %v19 = vld [vmem:[%s0 + $0x18] sm:$0xff]
  %v20 = vld [vmem:[%s0 + $0x20] sm:$0xf]
  %v21 = vld [vmem:[%s0 + $0x24] sm:$0xff]
  %v22 = vld [vmem:[%s0 + $0x2c] sm:$0xf]
  %v23 = vmax.bf16 %v15, 0
  %v24 = vmax.bf16 %v16, 0
  %v25 = vmax.bf16 %v17, 0
  %v26 = vmax.bf16 %v18, 0
  %v27 = vmax.bf16 %v19, 0
  %v28 = vmax.bf16 %v20, 0
  %v29 = vmax.bf16 %v21, 0
  %v30 = vmax.bf16 %v22, 0
  %v31 = vld [vmem:[%s1] sm:$0xf]
  %v32 = vld [vmem:[%s1 + $0x4] sm:$0xf]
  %v33 = vld [vmem:[%s1 + $0x8] sm:$0xf]
  %v34 = vld [vmem:[%s1 + $0xc] sm:$0xf]
  %v35 = vld [vmem:[%s1 + $0x10] sm:$0xf]
  %v36 = vld [vmem:[%s1 + $0x14] sm:$0xf]
  %v37 = vld [vmem:[%s1 + $0x18] sm:$0xf]
  %v38 = vld [vmem:[%s1 + $0x1c] sm:$0xf]
  %v39 = vld [vmem:[%s1 + $0x20] sm:$0xf]
  %v40 = vld [vmem:[%s1 + $0x24] sm:$0xf]
  %v41 = vld [vmem:[%s1 + $0x28] sm:$0xf]
  %v42 = vld [vmem:[%s1 + $0x2c] sm:$0xf]
  %v43 = vld [vmem:[%s1 + $0x30] sm:$0xf]
  %v44 = vld [vmem:[%s1 + $0x34] sm:$0xf]
  %v45 = vld [vmem:[%s1 + $0x38] sm:$0xf]
  %v46 = vld [vmem:[%s1 + $0x3c] sm:$0xf]
  %v47 = vld [vmem:[%s1 + $0x40] sm:$0xf]
  %v48 = vld [vmem:[%s1 + $0x44] sm:$0xf]
  %v49 = vld [vmem:[%s1 + $0x48] sm:$0xf]
  %v50 = vld [vmem:[%s1 + $0x4c] sm:$0xf]
  %v51 = vld [vmem:[%s1 + $0x50] sm:$0xf]
  %v52 = vld [vmem:[%s1 + $0x54] sm:$0xf]
  %v53 = vld [vmem:[%s1 + $0x58] sm:$0xf]
  %v54 = vld [vmem:[%s1 + $0x5c] sm:$0xf]
  %v55 = vld [vmem:[%s1 + $0x60] sm:$0xf]
  %v56 = vld [vmem:[%s1 + $0x64] sm:$0xf]
  %v57 = vld [vmem:[%s1 + $0x68] sm:$0xf]
  %v58 = vld [vmem:[%s1 + $0x6c] sm:$0xf]
  %v59 = vld [vmem:[%s1 + $0x70] sm:$0xf]
  %v60 = vld [vmem:[%s1 + $0x74] sm:$0xf]
  %v61 = vld [vmem:[%s1 + $0x78] sm:$0xf]
  %v62 = vld [vmem:[%s1 + $0x7c] sm:$0xf]
  %v63 = vld [vmem:[%s1 + $0x80] sm:$0xf]
  %v64 = vld [vmem:[%s1 + $0x84] sm:$0xf]
  %v65 = vld [vmem:[%s1 + $0x88] sm:$0xf]
  %v66 = vld [vmem:[%s1 + $0x8c] sm:$0xf]
  %v67 = vld [vmem:[%s1 + $0x90] sm:$0xf]
  %v68 = vld [vmem:[%s1 + $0x94] sm:$0xf]
  %v69 = vld [vmem:[%s1 + $0x98] sm:$0xf]
  %v70 = vld [vmem:[%s1 + $0x9c] sm:$0xf]
  %v71 = vld [vmem:[%s1 + $0xa0] sm:$0xf]
  %v72 = vld [vmem:[%s1 + $0xa4] sm:$0xf]
  %v73 = vld [vmem:[%s1 + $0xa8] sm:$0xf]
  %v74 = vld [vmem:[%s1 + $0xac] sm:$0xf]
  %v75 = vld [vmem:[%s1 + $0xb0] sm:$0xf]
  %v76 = vld [vmem:[%s1 + $0xb4] sm:$0xf]
  %v77 = vld [vmem:[%s1 + $0xb8] sm:$0xf]
  %v78 = vld [vmem:[%s1 + $0xbc] sm:$0xf]
  %v79 = vld [vmem:[%s2] sm:$0x1]
  %v81 = vlaneseq
  %v82 = vshrl.u32 %v81, 7
  %v83 = vsub.s32 0, %v82
  %v84 = vrot.slane %v79, %v83
  %v94 = vunpack.c.l.b16 %v23
  %v95 = vunpack.c.h.b16 %v23
  %v96 = vunpack.c.l.b16 %v24
  %v97 = vunpack.c.l.b16 %v25
  %v98 = vunpack.c.h.b16 %v25
  %v99 = vunpack.c.l.b16 %v26
  %v100 = vunpack.c.l.b16 %v27
  %v101 = vunpack.c.h.b16 %v27
  %v102 = vunpack.c.l.b16 %v28
  %v103 = vunpack.c.l.b16 %v29
  %v104 = vunpack.c.h.b16 %v29
  %v105 = vunpack.c.l.b16 %v30
  %v106 = vpack.c.b16 %v97, %v94
  %v107 = vpack.c.b16 %v98, %v95
  %v108 = vpack.c.b16 %v99, %v96
  %v109 = vpack.c.b16 %v103, %v100
  %v110 = vpack.c.b16 %v104, %v101
  %v111 = vpack.c.b16 %v105, %v102
  %v166 = vunpack.c.l.b16 %v31
  %v167 = vunpack.c.l.b16 %v32
  %v168 = vunpack.c.l.b16 %v33
  %v169 = vunpack.c.l.b16 %v34
  %v170 = vunpack.c.l.b16 %v35
  %v171 = vunpack.c.l.b16 %v36
  %v172 = vunpack.c.l.b16 %v37
  %v173 = vunpack.c.l.b16 %v38
  %v174 = vunpack.c.l.b16 %v39
  %v175 = vunpack.c.l.b16 %v40
  %v176 = vunpack.c.l.b16 %v41
  %v177 = vunpack.c.l.b16 %v42
  %v178 = vunpack.c.l.b16 %v43
  %v179 = vunpack.c.l.b16 %v44
  %v180 = vunpack.c.l.b16 %v45
  %v181 = vunpack.c.l.b16 %v46
  %v182 = vunpack.c.l.b16 %v47
  %v183 = vunpack.c.l.b16 %v48
  %v184 = vunpack.c.l.b16 %v49
  %v185 = vunpack.c.l.b16 %v50
  %v186 = vunpack.c.l.b16 %v51
  %v187 = vunpack.c.l.b16 %v52
  %v188 = vunpack.c.l.b16 %v53
  %v189 = vunpack.c.l.b16 %v54
  %v190 = vunpack.c.l.b16 %v55
  %v191 = vunpack.c.l.b16 %v56
  %v192 = vunpack.c.l.b16 %v57
  %v193 = vunpack.c.l.b16 %v58
  %v194 = vunpack.c.l.b16 %v59
  %v195 = vunpack.c.l.b16 %v60
  %v196 = vunpack.c.l.b16 %v61
  %v197 = vunpack.c.l.b16 %v62
  %v198 = vunpack.c.l.b16 %v63
  %v199 = vunpack.c.l.b16 %v64
  %v200 = vunpack.c.l.b16 %v65
  %v201 = vunpack.c.l.b16 %v66
  %v202 = vunpack.c.l.b16 %v67
  %v203 = vunpack.c.l.b16 %v68
  %v204 = vunpack.c.l.b16 %v69
  %v205 = vunpack.c.l.b16 %v70
  %v206 = vunpack.c.l.b16 %v71
  %v207 = vunpack.c.l.b16 %v72
  %v208 = vunpack.c.l.b16 %v73
  %v209 = vunpack.c.l.b16 %v74
  %v210 = vunpack.c.l.b16 %v75
  %v211 = vunpack.c.l.b16 %v76
  %v212 = vunpack.c.l.b16 %v77
  %v213 = vunpack.c.l.b16 %v78
  %v214 = vpack.c.b16 %v167, %v166
  %v215 = vpack.c.b16 %v169, %v168
  %v216 = vpack.c.b16 %v171, %v170
  %v217 = vpack.c.b16 %v173, %v172
  %v218 = vpack.c.b16 %v175, %v174
  %v219 = vpack.c.b16 %v177, %v176
  %v220 = vpack.c.b16 %v179, %v178
  %v221 = vpack.c.b16 %v181, %v180
  %v222 = vpack.c.b16 %v183, %v182
  %v223 = vpack.c.b16 %v185, %v184
  %v224 = vpack.c.b16 %v187, %v186
  %v225 = vpack.c.b16 %v189, %v188
  %v226 = vpack.c.b16 %v191, %v190
  %v227 = vpack.c.b16 %v193, %v192
  %v228 = vpack.c.b16 %v195, %v194
  %v229 = vpack.c.b16 %v197, %v196
  %v230 = vpack.c.b16 %v199, %v198
  %v231 = vpack.c.b16 %v201, %v200
  %v232 = vpack.c.b16 %v203, %v202
  %v233 = vpack.c.b16 %v205, %v204
  %v234 = vpack.c.b16 %v207, %v206
  %v235 = vpack.c.b16 %v209, %v208
  %v236 = vpack.c.b16 %v211, %v210
  %v237 = vpack.c.b16 %v213, %v212
  %262 = vmatprep.subr.bf16.mxu0 0
  %263 = vmatpush1.bf16.msra.mxu0 %v214
  %264 = vmatprep.subr.bf16.mxu0 0
  %265 = vmatpush1.bf16.msra.mxu0 %v215
  %266 = vmatprep.subr.bf16.mxu0 0
  %267 = vmatpush1.bf16.msra.mxu0 %v216
  %268 = vmatprep.subr.bf16.mxu0 0
  %269 = vmatpush1.bf16.msra.mxu0 %v217
  %270 = vmatprep.subr.bf16.mxu0 0
  %271 = vmatpush1.bf16.msra.mxu0 %v218
  %272 = vmatprep.subr.bf16.mxu0 0
  %273 = vmatpush1.bf16.msra.mxu0 %v219
  %274 = vmatprep.subr.bf16.mxu0 0
  %275 = vmatpush1.bf16.msra.mxu0 %v220
  %276 = vmatprep.subr.bf16.mxu0 0
  %277 = vmatpush1.bf16.msra.mxu0 %v221
  %278 = vmatprep.subr.bf16.mxu0 0
  %279 = vmatpush1.bf16.msra.mxu0 %v222
  %280 = vmatprep.subr.bf16.mxu0 0
  %281 = vmatpush1.bf16.msra.mxu0 %v223
  %282 = vmatprep.subr.bf16.mxu0 0
  %283 = vmatpush1.bf16.msra.mxu0 %v224
  %284 = vmatprep.subr.bf16.mxu0 0
  %285 = vmatpush1.bf16.msra.mxu0 %v225
  %286 = vmatprep.subr.bf16.mxu0 0
  %287 = vmatpush1.bf16.msra.mxu0 %v226
  %288 = vmatprep.subr.bf16.mxu0 0
  %289 = vmatpush1.bf16.msra.mxu0 %v227
  %290 = vmatprep.subr.bf16.mxu0 0
  %291 = vmatpush1.bf16.msra.mxu0 %v228
  %292 = vmatprep.subr.bf16.mxu0 0
  %293 = vmatpush1.bf16.msra.mxu0 %v229
  %294 = vmatprep.mubr.bf16.mxu0 %v107
  %295 = vmatmul.mubr.bf16.gmra.mrb[0].mxu0 %v106
  %v296 = vpop.f32.mrb[0].mxu0
  %v297 = vadd.f32 %v84, %v296
  %v298 = vpop.f32.mrb[0].mxu0
  %v299 = vpop.f32.mrb[0].mxu0
  %v300 = vadd.f32 %v84, %v299
  %v301 = vpop.f32.mrb[0].mxu0
  %302 = vmatprep.mubr.bf16.mxu0 %v110
  %303 = vmatmul.mubr.bf16.gmra.mrb[0].mxu0 %v109
  %v304 = vpop.f32.mrb[0].mxu0
  %v305 = vadd.f32 %v84, %v304
  %v306 = vpop.f32.mrb[0].mxu0
  %v307 = vpop.f32.mrb[0].mxu0
  %v308 = vadd.f32 %v84, %v307
  %v309 = vpop.f32.mrb[0].mxu0
  %310 = vdwg.mxu0
  %311 = vmatprep.subr.bf16.mxu0 0
  %312 = vmatpush1.bf16.msra.mxu0 %v230
  %313 = vmatprep.subr.bf16.mxu0 0
  %314 = vmatpush1.bf16.msra.mxu0 %v231
  %315 = vmatprep.subr.bf16.mxu0 0
  %316 = vmatpush1.bf16.msra.mxu0 %v232
  %317 = vmatprep.subr.bf16.mxu0 0
  %318 = vmatpush1.bf16.msra.mxu0 %v233
  %319 = vmatprep.subr.bf16.mxu0 0
  %320 = vmatpush1.bf16.msra.mxu0 %v234
  %321 = vmatprep.subr.bf16.mxu0 0
  %322 = vmatpush1.bf16.msra.mxu0 %v235
  %323 = vmatprep.subr.bf16.mxu0 0
  %324 = vmatpush1.bf16.msra.mxu0 %v236
  %325 = vmatprep.subr.bf16.mxu0 0
  %326 = vmatpush1.bf16.msra.mxu0 %v237
  %327 = vmatprep.subr.bf16.mxu0 0
  %328 = vmatpush1.bf16.msra.mxu0 0
  %329 = vmatprep.subr.bf16.mxu0 0
  %330 = vmatpush1.bf16.msra.mxu0 0
  %331 = vmatprep.subr.bf16.mxu0 0
  %332 = vmatpush1.bf16.msra.mxu0 0
  %333 = vmatprep.subr.bf16.mxu0 0
  %334 = vmatpush1.bf16.msra.mxu0 0
  %335 = vmatprep.subr.bf16.mxu0 0
  %336 = vmatpush1.bf16.msra.mxu0 0
  %337 = vmatprep.subr.bf16.mxu0 0
  %338 = vmatpush1.bf16.msra.mxu0 0
  %339 = vmatprep.subr.bf16.mxu0 0
  %340 = vmatpush1.bf16.msra.mxu0 0
  %341 = vmatprep.subr.bf16.mxu0 0
  %342 = vmatpush1.bf16.msra.mxu0 0
  %343 = vmatprep.mubr.bf16.mxu0 0
  %344 = vmatmul.mubr.bf16.gmra.mrb[0].mxu0 %v108
  %v345 = vpop.f32.mrb[0].mxu0
  %v346 = vadd.f32 %v297, %v345
  %v347 = vpop.f32.mrb[0].mxu0
  %v348 = vpop.f32.mrb[0].mxu0
  %v349 = vadd.f32 %v300, %v348
  %v350 = vpop.f32.mrb[0].mxu0
  %351 = vmatprep.mubr.bf16.mxu0 0
  %352 = vmatmul.mubr.bf16.gmra.mrb[0].mxu0 %v111
  %v353 = vpop.f32.mrb[0].mxu0
  %v354 = vadd.f32 %v305, %v353
  %v355 = vpop.f32.mrb[0].mxu0
  %v356 = vpop.f32.mrb[0].mxu0
  %v357 = vadd.f32 %v308, %v356
  %v358 = vpop.f32.mrb[0].mxu0
  %359 = vdwg.mxu0
  %v360 = vmax.f32 %v346, 0.0
  %v361 = vmax.f32 %v349, 0.0
  %v362 = vmax.f32 %v354, 0.0
  %v363 = vmax.f32 %v357, 0.0
  %364 = vst [vmem:[%s3] sm:$0xff] %v360
  %365 = vst [vmem:[%s3 + $0x8] sm:$0xff] %v361
  %366 = vst [vmem:[%s3 + $0x10] sm:$0xff] %v362
  %367 = vst [vmem:[%s3 + $0x18] sm:$0xff] %v363
  // Predicated region
  $region14: #{_lambda_.25} parent=0 // pred_check
    _
  $region15: #{_lambda_.25} parent=0 // pred_check_branch
    %369 = sbr.rel (0) target = $region17
  $region16: #{_lambda_.25} parent=0 // pred_region
    _
  $region17: #{_lambda_.25} parent=0 // pred_fallthru
    _
  // Predicated region
  $region18: #{_lambda_.25} parent=0 // pred_check
    _
  $region19: #{_lambda_.25} parent=0 // pred_check_branch
    %371 = sbr.rel (0) target = $region21
  $region20: #{_lambda_.25} parent=0 // pred_region
    _
  $region21: #{_lambda_.25} parent=0 // pred_fallthru
    _

// kernel: _lambda_.24
$region0: #{_lambda_.24}
  #allocation0 [shape = 'u32[]', space=smem, size = 0x4, offset = 0x4, fixed_abs, tag = 'smem constant byte address 0x4 - core index']
  #allocation1 [shape = 'u32[144,128]{1,0:T(1,128)}', space=vmem, size = 0x12000, scoped, tag = 'internal scratch']
  %s0 = inlined_call_operand.vmem [shape: bf16[32,384], index: 0, kind: input, shape index: {}]
  %s1 = inlined_call_operand.vmem [shape: bf16[384,128], index: 1, kind: input, shape index: {}]
  %s2 = inlined_call_operand.vmem [shape: f32[1,128], index: 2, kind: input, shape index: {}]
  %s3 = inlined_call_operand.vmem [shape: f32[32,128], index: 3, kind: output, shape index: {}]
  %s4 = sld [smem:[#allocation0]]
  $region22: #{_lambda_.24} parent=0
    _
  %s6 = ssub.s32 1, %s4
  %s7 = scalar_select 0, %s6, %s4
  // Predicated region
  $region2: #{_lambda_.24} parent=0 // pred_check
    _
  $region3: #{_lambda_.24} parent=0 // pred_check_branch
    %9 = sbr.rel (0) target = $region5
  $region4: #{_lambda_.24} parent=0 // pred_region
    _
  $region5: #{_lambda_.24} parent=0 // pred_fallthru
    _
  // Predicated region
  $region6: #{_lambda_.24} parent=0 // pred_check
    _
  $region7: #{_lambda_.24} parent=0 // pred_check_branch
    %11 = sbr.rel (0) target = $region9
  $region8: #{_lambda_.24} parent=0 // pred_region
    _
  $region9: #{_lambda_.24} parent=0 // pred_fallthru
    _
  // Predicated region
  $region10: #{_lambda_.24} parent=0 // pred_check
    _
  $region11: #{_lambda_.24} parent=0 // pred_check_branch
    %13 = sbr.rel (0) target = $region13
  $region12: #{_lambda_.24} parent=0 // pred_region
    _
  $region13: #{_lambda_.24} parent=0 // pred_fallthru
    _
  %v15 = vld [vmem:[%s0] sm:$0xff]
  %v16 = vld [vmem:[%s0 + $0x8] sm:$0xf]
  %v17 = vld [vmem:[%s0 + $0xc] sm:$0xff]
  %v18 = vld [vmem:[%s0 + $0x14] sm:$0xf]
  %v19 = vld [vmem:[%s0 + $0x18] sm:$0xff]
  %v20 = vld [vmem:[%s0 + $0x20] sm:$0xf]
  %v21 = vld [vmem:[%s0 + $0x24] sm:$0xff]
  %v22 = vld [vmem:[%s0 + $0x2c] sm:$0xf]
  %v23 = vld [vmem:[%s1] sm:$0xf]
  %v24 = vld [vmem:[%s1 + $0x4] sm:$0xf]
  %v25 = vld [vmem:[%s1 + $0x8] sm:$0xf]
  %v26 = vld [vmem:[%s1 + $0xc] sm:$0xf]
  %v27 = vld [vmem:[%s1 + $0x10] sm:$0xf]
  %v28 = vld [vmem:[%s1 + $0x14] sm:$0xf]
  %v29 = vld [vmem:[%s1 + $0x18] sm:$0xf]
  %v30 = vld [vmem:[%s1 + $0x1c] sm:$0xf]
  %v31 = vld [vmem:[%s1 + $0x20] sm:$0xf]
  %v32 = vld [vmem:[%s1 + $0x24] sm:$0xf]
  %v33 = vld [vmem:[%s1 + $0x28] sm:$0xf]
  %v34 = vld [vmem:[%s1 + $0x2c] sm:$0xf]
  %v35 = vld [vmem:[%s1 + $0x30] sm:$0xf]
  %v36 = vld [vmem:[%s1 + $0x34] sm:$0xf]
  %v37 = vld [vmem:[%s1 + $0x38] sm:$0xf]
  %v38 = vld [vmem:[%s1 + $0x3c] sm:$0xf]
  %v39 = vld [vmem:[%s1 + $0x40] sm:$0xf]
  %v40 = vld [vmem:[%s1 + $0x44] sm:$0xf]
  %v41 = vld [vmem:[%s1 + $0x48] sm:$0xf]
  %v42 = vld [vmem:[%s1 + $0x4c] sm:$0xf]
  %v43 = vld [vmem:[%s1 + $0x50] sm:$0xf]
  %v44 = vld [vmem:[%s1 + $0x54] sm:$0xf]
  %v45 = vld [vmem:[%s1 + $0x58] sm:$0xf]
  %v46 = vld [vmem:[%s1 + $0x5c] sm:$0xf]
  %v47 = vld [vmem:[%s1 + $0x60] sm:$0xf]
  %v48 = vld [vmem:[%s1 + $0x64] sm:$0xf]
  %v49 = vld [vmem:[%s1 + $0x68] sm:$0xf]
  %v50 = vld [vmem:[%s1 + $0x6c] sm:$0xf]
  %v51 = vld [vmem:[%s1 + $0x70] sm:$0xf]
  %v52 = vld [vmem:[%s1 + $0x74] sm:$0xf]
  %v53 = vld [vmem:[%s1 + $0x78] sm:$0xf]
  %v54 = vld [vmem:[%s1 + $0x7c] sm:$0xf]
  %v55 = vld [vmem:[%s1 + $0x80] sm:$0xf]
  %v56 = vld [vmem:[%s1 + $0x84] sm:$0xf]
  %v57 = vld [vmem:[%s1 + $0x88] sm:$0xf]
  %v58 = vld [vmem:[%s1 + $0x8c] sm:$0xf]
  %v59 = vld [vmem:[%s1 + $0x90] sm:$0xf]
  %v60 = vld [vmem:[%s1 + $0x94] sm:$0xf]
  %v61 = vld [vmem:[%s1 + $0x98] sm:$0xf]
  %v62 = vld [vmem:[%s1 + $0x9c] sm:$0xf]
  %v63 = vld [vmem:[%s1 + $0xa0] sm:$0xf]
  %v64 = vld [vmem:[%s1 + $0xa4] sm:$0xf]
  %v65 = vld [vmem:[%s1 + $0xa8] sm:$0xf]
  %v66 = vld [vmem:[%s1 + $0xac] sm:$0xf]
  %v67 = vld [vmem:[%s1 + $0xb0] sm:$0xf]
  %v68 = vld [vmem:[%s1 + $0xb4] sm:$0xf]
  %v69 = vld [vmem:[%s1 + $0xb8] sm:$0xf]
  %v70 = vld [vmem:[%s1 + $0xbc] sm:$0xf]
  %v71 = vld [vmem:[%s2] sm:$0x1]
  %v73 = vlaneseq
  %v74 = vshrl.u32 %v73, 7
  %v75 = vsub.s32 0, %v74
  %v76 = vrot.slane %v71, %v75
  %v86 = vunpack.c.l.b16 %v15
  %v87 = vunpack.c.h.b16 %v15
  %v88 = vunpack.c.l.b16 %v16
  %v89 = vunpack.c.l.b16 %v17
  %v90 = vunpack.c.h.b16 %v17
  %v91 = vunpack.c.l.b16 %v18
  %v92 = vunpack.c.l.b16 %v19
  %v93 = vunpack.c.h.b16 %v19
  %v94 = vunpack.c.l.b16 %v20
  %v95 = vunpack.c.l.b16 %v21
  %v96 = vunpack.c.h.b16 %v21
  %v97 = vunpack.c.l.b16 %v22
  %v98 = vpack.c.b16 %v89, %v86
  %v99 = vpack.c.b16 %v90, %v87
  %v100 = vpack.c.b16 %v91, %v88
  %v101 = vpack.c.b16 %v95, %v92
  %v102 = vpack.c.b16 %v96, %v93
  %v103 = vpack.c.b16 %v97, %v94
  %v158 = vunpack.c.l.b16 %v23
  %v159 = vunpack.c.l.b16 %v24
  %v160 = vunpack.c.l.b16 %v25
  %v161 = vunpack.c.l.b16 %v26
  %v162 = vunpack.c.l.b16 %v27
  %v163 = vunpack.c.l.b16 %v28
  %v164 = vunpack.c.l.b16 %v29
  %v165 = vunpack.c.l.b16 %v30
  %v166 = vunpack.c.l.b16 %v31
  %v167 = vunpack.c.l.b16 %v32
  %v168 = vunpack.c.l.b16 %v33
  %v169 = vunpack.c.l.b16 %v34
  %v170 = vunpack.c.l.b16 %v35
  %v171 = vunpack.c.l.b16 %v36
  %v172 = vunpack.c.l.b16 %v37
  %v173 = vunpack.c.l.b16 %v38
  %v174 = vunpack.c.l.b16 %v39
  %v175 = vunpack.c.l.b16 %v40
  %v176 = vunpack.c.l.b16 %v41
  %v177 = vunpack.c.l.b16 %v42
  %v178 = vunpack.c.l.b16 %v43
  %v179 = vunpack.c.l.b16 %v44
  %v180 = vunpack.c.l.b16 %v45
  %v181 = vunpack.c.l.b16 %v46
  %v182 = vunpack.c.l.b16 %v47
  %v183 = vunpack.c.l.b16 %v48
  %v184 = vunpack.c.l.b16 %v49
  %v185 = vunpack.c.l.b16 %v50
  %v186 = vunpack.c.l.b16 %v51
  %v187 = vunpack.c.l.b16 %v52
  %v188 = vunpack.c.l.b16 %v53
  %v189 = vunpack.c.l.b16 %v54
  %v190 = vunpack.c.l.b16 %v55
  %v191 = vunpack.c.l.b16 %v56
  %v192 = vunpack.c.l.b16 %v57
  %v193 = vunpack.c.l.b16 %v58
  %v194 = vunpack.c.l.b16 %v59
  %v195 = vunpack.c.l.b16 %v60
  %v196 = vunpack.c.l.b16 %v61
  %v197 = vunpack.c.l.b16 %v62
  %v198 = vunpack.c.l.b16 %v63
  %v199 = vunpack.c.l.b16 %v64
  %v200 = vunpack.c.l.b16 %v65
  %v201 = vunpack.c.l.b16 %v66
  %v202 = vunpack.c.l.b16 %v67
  %v203 = vunpack.c.l.b16 %v68
  %v204 = vunpack.c.l.b16 %v69
  %v205 = vunpack.c.l.b16 %v70
  %v206 = vpack.c.b16 %v159, %v158
  %v207 = vpack.c.b16 %v161, %v160
  %v208 = vpack.c.b16 %v163, %v162
  %v209 = vpack.c.b16 %v165, %v164
  %v210 = vpack.c.b16 %v167, %v166
  %v211 = vpack.c.b16 %v169, %v168
  %v212 = vpack.c.b16 %v171, %v170
  %v213 = vpack.c.b16 %v173, %v172
  %v214 = vpack.c.b16 %v175, %v174
  %v215 = vpack.c.b16 %v177, %v176
  %v216 = vpack.c.b16 %v179, %v178
  %v217 = vpack.c.b16 %v181, %v180
  %v218 = vpack.c.b16 %v183, %v182
  %v219 = vpack.c.b16 %v185, %v184
  %v220 = vpack.c.b16 %v187, %v186
  %v221 = vpack.c.b16 %v189, %v188
  %v222 = vpack.c.b16 %v191, %v190
  %v223 = vpack.c.b16 %v193, %v192
  %v224 = vpack.c.b16 %v195, %v194
  %v225 = vpack.c.b16 %v197, %v196
  %v226 = vpack.c.b16 %v199, %v198
  %v227 = vpack.c.b16 %v201, %v200
  %v228 = vpack.c.b16 %v203, %v202
  %v229 = vpack.c.b16 %v205, %v204
  %254 = vmatprep.subr.bf16.mxu0 0
  %255 = vmatpush1.bf16.msra.mxu0 %v206
  %256 = vmatprep.subr.bf16.mxu0 0
  %257 = vmatpush1.bf16.msra.mxu0 %v207
  %258 = vmatprep.subr.bf16.mxu0 0
  %259 = vmatpush1.bf16.msra.mxu0 %v208
  %260 = vmatprep.subr.bf16.mxu0 0
  %261 = vmatpush1.bf16.msra.mxu0 %v209
  %262 = vmatprep.subr.bf16.mxu0 0
  %263 = vmatpush1.bf16.msra.mxu0 %v210
  %264 = vmatprep.subr.bf16.mxu0 0
  %265 = vmatpush1.bf16.msra.mxu0 %v211
  %266 = vmatprep.subr.bf16.mxu0 0
  %267 = vmatpush1.bf16.msra.mxu0 %v212
  %268 = vmatprep.subr.bf16.mxu0 0
  %269 = vmatpush1.bf16.msra.mxu0 %v213
  %270 = vmatprep.subr.bf16.mxu0 0
  %271 = vmatpush1.bf16.msra.mxu0 %v214
  %272 = vmatprep.subr.bf16.mxu0 0
  %273 = vmatpush1.bf16.msra.mxu0 %v215
  %274 = vmatprep.subr.bf16.mxu0 0
  %275 = vmatpush1.bf16.msra.mxu0 %v216
  %276 = vmatprep.subr.bf16.mxu0 0
  %277 = vmatpush1.bf16.msra.mxu0 %v217
  %278 = vmatprep.subr.bf16.mxu0 0
  %279 = vmatpush1.bf16.msra.mxu0 %v218
  %280 = vmatprep.subr.bf16.mxu0 0
  %281 = vmatpush1.bf16.msra.mxu0 %v219
  %282 = vmatprep.subr.bf16.mxu0 0
  %283 = vmatpush1.bf16.msra.mxu0 %v220
  %284 = vmatprep.subr.bf16.mxu0 0
  %285 = vmatpush1.bf16.msra.mxu0 %v221
  %286 = vmatprep.mubr.bf16.mxu0 %v99
  %287 = vmatmul.mubr.bf16.gmra.mrb[0].mxu0 %v98
  %v288 = vpop.f32.mrb[0].mxu0
  %v289 = vadd.f32 %v76, %v288
  %v290 = vpop.f32.mrb[0].mxu0
  %v291 = vpop.f32.mrb[0].mxu0
  %v292 = vadd.f32 %v76, %v291
  %v293 = vpop.f32.mrb[0].mxu0
  %294 = vmatprep.mubr.bf16.mxu0 %v102
  %295 = vmatmul.mubr.bf16.gmra.mrb[0].mxu0 %v101
  %v296 = vpop.f32.mrb[0].mxu0
  %v297 = vadd.f32 %v76, %v296
  %v298 = vpop.f32.mrb[0].mxu0
  %v299 = vpop.f32.mrb[0].mxu0
  %v300 = vadd.f32 %v76, %v299
  %v301 = vpop.f32.mrb[0].mxu0
  %302 = vdwg.mxu0
  %303 = vmatprep.subr.bf16.mxu0 0
  %304 = vmatpush1.bf16.msra.mxu0 %v222
  %305 = vmatprep.subr.bf16.mxu0 0
  %306 = vmatpush1.bf16.msra.mxu0 %v223
  %307 = vmatprep.subr.bf16.mxu0 0
  %308 = vmatpush1.bf16.msra.mxu0 %v224
  %309 = vmatprep.subr.bf16.mxu0 0
  %310 = vmatpush1.bf16.msra.mxu0 %v225
  %311 = vmatprep.subr.bf16.mxu0 0
  %312 = vmatpush1.bf16.msra.mxu0 %v226
  %313 = vmatprep.subr.bf16.mxu0 0
  %314 = vmatpush1.bf16.msra.mxu0 %v227
  %315 = vmatprep.subr.bf16.mxu0 0
  %316 = vmatpush1.bf16.msra.mxu0 %v228
  %317 = vmatprep.subr.bf16.mxu0 0
  %318 = vmatpush1.bf16.msra.mxu0 %v229
  %319 = vmatprep.subr.bf16.mxu0 0
  %320 = vmatpush1.bf16.msra.mxu0 0
  %321 = vmatprep.subr.bf16.mxu0 0
  %322 = vmatpush1.bf16.msra.mxu0 0
  %323 = vmatprep.subr.bf16.mxu0 0
  %324 = vmatpush1.bf16.msra.mxu0 0
  %325 = vmatprep.subr.bf16.mxu0 0
  %326 = vmatpush1.bf16.msra.mxu0 0
  %327 = vmatprep.subr.bf16.mxu0 0
  %328 = vmatpush1.bf16.msra.mxu0 0
  %329 = vmatprep.subr.bf16.mxu0 0
  %330 = vmatpush1.bf16.msra.mxu0 0
  %331 = vmatprep.subr.bf16.mxu0 0
  %332 = vmatpush1.bf16.msra.mxu0 0
  %333 = vmatprep.subr.bf16.mxu0 0
  %334 = vmatpush1.bf16.msra.mxu0 0
  %335 = vmatprep.mubr.bf16.mxu0 0
  %336 = vmatmul.mubr.bf16.gmra.mrb[0].mxu0 %v100
  %v337 = vpop.f32.mrb[0].mxu0
  %v338 = vadd.f32 %v289, %v337
  %v339 = vpop.f32.mrb[0].mxu0
  %v340 = vpop.f32.mrb[0].mxu0
  %v341 = vadd.f32 %v292, %v340
  %v342 = vpop.f32.mrb[0].mxu0
  %343 = vmatprep.mubr.bf16.mxu0 0
  %344 = vmatmul.mubr.bf16.gmra.mrb[0].mxu0 %v103
  %v345 = vpop.f32.mrb[0].mxu0
  %v346 = vadd.f32 %v297, %v345
  %v347 = vpop.f32.mrb[0].mxu0
  %v348 = vpop.f32.mrb[0].mxu0
  %v349 = vadd.f32 %v300, %v348
  %v350 = vpop.f32.mrb[0].mxu0
  %351 = vdwg.mxu0
  %352 = vst [vmem:[%s3] sm:$0xff] %v338
  %353 = vst [vmem:[%s3 + $0x8] sm:$0xff] %v341
  %354 = vst [vmem:[%s3 + $0x10] sm:$0xff] %v346
  %355 = vst [vmem:[%s3 + $0x18] sm:$0xff] %v349
  // Predicated region
  $region14: #{_lambda_.24} parent=0 // pred_check
    _
  $region15: #{_lambda_.24} parent=0 // pred_check_branch
    %357 = sbr.rel (0) target = $region17
  $region16: #{_lambda_.24} parent=0 // pred_region
    _
  $region17: #{_lambda_.24} parent=0 // pred_fallthru
    _
  // Predicated region
  $region18: #{_lambda_.24} parent=0 // pred_check
    _
  $region19: #{_lambda_.24} parent=0 // pred_check_branch
    %359 = sbr.rel (0) target = $region21
  $region20: #{_lambda_.24} parent=0 // pred_region
    _
  $region21: #{_lambda_.24} parent=0 // pred_fallthru
    _

// kernel: _lambda_.28
$region0: #{_lambda_.28}
  #allocation0 [shape = 'u32[]', space=smem, size = 0x4, offset = 0x4, fixed_abs, tag = 'smem constant byte address 0x4 - core index']
  #allocation1 [shape = 'u32[144,128]{1,0:T(1,128)}', space=vmem, size = 0x12000, scoped, tag = 'internal scratch']
  %s0 = inlined_call_operand.vmem [shape: bf16[32,128], index: 0, kind: input, shape index: {}]
  %s1 = inlined_call_operand.vmem [shape: bf16[128,128], index: 1, kind: input, shape index: {}]
  %s2 = inlined_call_operand.vmem [shape: f32[1,128], index: 2, kind: input, shape index: {}]
  %s3 = inlined_call_operand.vmem [shape: f32[32,128], index: 3, kind: input, shape index: {}]
  %s4 = inlined_call_operand.vmem [shape: f32[32,128], index: 4, kind: output, shape index: {}]
  %s5 = sld [smem:[#allocation0]]
  $region26: #{_lambda_.28} parent=0
    _
  %s7 = ssub.s32 1, %s5
  %s8 = scalar_select 0, %s7, %s5
  // Predicated region
  $region2: #{_lambda_.28} parent=0 // pred_check
    _
  $region3: #{_lambda_.28} parent=0 // pred_check_branch
    %10 = sbr.rel (0) target = $region5
  $region4: #{_lambda_.28} parent=0 // pred_region
    _
  $region5: #{_lambda_.28} parent=0 // pred_fallthru
    _
  // Predicated region
  $region6: #{_lambda_.28} parent=0 // pred_check
    _
  $region7: #{_lambda_.28} parent=0 // pred_check_branch
    %12 = sbr.rel (0) target = $region9
  $region8: #{_lambda_.28} parent=0 // pred_region
    _
  $region9: #{_lambda_.28} parent=0 // pred_fallthru
    _
  // Predicated region
  $region10: #{_lambda_.28} parent=0 // pred_check
    _
  $region11: #{_lambda_.28} parent=0 // pred_check_branch
    %14 = sbr.rel (0) target = $region13
  $region12: #{_lambda_.28} parent=0 // pred_region
    _
  $region13: #{_lambda_.28} parent=0 // pred_fallthru
    _
  // Predicated region
  $region14: #{_lambda_.28} parent=0 // pred_check
    _
  $region15: #{_lambda_.28} parent=0 // pred_check_branch
    %16 = sbr.rel (0) target = $region17
  $region16: #{_lambda_.28} parent=0 // pred_region
    _
  $region17: #{_lambda_.28} parent=0 // pred_fallthru
    _
  %v18 = vld [vmem:[%s0] sm:$0xf]
  %v19 = vld [vmem:[%s0 + $0x4] sm:$0xf]
  %v20 = vld [vmem:[%s0 + $0x8] sm:$0xf]
  %v21 = vld [vmem:[%s0 + $0xc] sm:$0xf]
  %v22 = vld [vmem:[%s1] sm:$0xf]
  %v23 = vld [vmem:[%s1 + $0x4] sm:$0xf]
  %v24 = vld [vmem:[%s1 + $0x8] sm:$0xf]
  %v25 = vld [vmem:[%s1 + $0xc] sm:$0xf]
  %v26 = vld [vmem:[%s1 + $0x10] sm:$0xf]
  %v27 = vld [vmem:[%s1 + $0x14] sm:$0xf]
  %v28 = vld [vmem:[%s1 + $0x18] sm:$0xf]
  %v29 = vld [vmem:[%s1 + $0x1c] sm:$0xf]
  %v30 = vld [vmem:[%s1 + $0x20] sm:$0xf]
  %v31 = vld [vmem:[%s1 + $0x24] sm:$0xf]
  %v32 = vld [vmem:[%s1 + $0x28] sm:$0xf]
  %v33 = vld [vmem:[%s1 + $0x2c] sm:$0xf]
  %v34 = vld [vmem:[%s1 + $0x30] sm:$0xf]
  %v35 = vld [vmem:[%s1 + $0x34] sm:$0xf]
  %v36 = vld [vmem:[%s1 + $0x38] sm:$0xf]
  %v37 = vld [vmem:[%s1 + $0x3c] sm:$0xf]
  %v38 = vld [vmem:[%s2] sm:$0x1]
  %v40 = vlaneseq
  %v41 = vshrl.u32 %v40, 7
  %v42 = vsub.s32 0, %v41
  %v43 = vrot.slane %v38, %v42
  %v49 = vunpack.c.l.b16 %v18
  %v50 = vunpack.c.l.b16 %v19
  %v51 = vunpack.c.l.b16 %v20
  %v52 = vunpack.c.l.b16 %v21
  %v53 = vpack.c.b16 %v50, %v49
  %v54 = vpack.c.b16 %v52, %v51
  %v73 = vunpack.c.l.b16 %v22
  %v74 = vunpack.c.l.b16 %v23
  %v75 = vunpack.c.l.b16 %v24
  %v76 = vunpack.c.l.b16 %v25
  %v77 = vunpack.c.l.b16 %v26
  %v78 = vunpack.c.l.b16 %v27
  %v79 = vunpack.c.l.b16 %v28
  %v80 = vunpack.c.l.b16 %v29
  %v81 = vunpack.c.l.b16 %v30
  %v82 = vunpack.c.l.b16 %v31
  %v83 = vunpack.c.l.b16 %v32
  %v84 = vunpack.c.l.b16 %v33
  %v85 = vunpack.c.l.b16 %v34
  %v86 = vunpack.c.l.b16 %v35
  %v87 = vunpack.c.l.b16 %v36
  %v88 = vunpack.c.l.b16 %v37
  %v89 = vpack.c.b16 %v74, %v73
  %v90 = vpack.c.b16 %v76, %v75
  %v91 = vpack.c.b16 %v78, %v77
  %v92 = vpack.c.b16 %v80, %v79
  %v93 = vpack.c.b16 %v82, %v81
  %v94 = vpack.c.b16 %v84, %v83
  %v95 = vpack.c.b16 %v86, %v85
  %v96 = vpack.c.b16 %v88, %v87
  %105 = vmatprep.subr.bf16.mxu0 0
  %106 = vmatpush1.bf16.msra.mxu0 %v89
  %107 = vmatprep.subr.bf16.mxu0 0
  %108 = vmatpush1.bf16.msra.mxu0 %v90
  %109 = vmatprep.subr.bf16.mxu0 0
  %110 = vmatpush1.bf16.msra.mxu0 %v91
  %111 = vmatprep.subr.bf16.mxu0 0
  %112 = vmatpush1.bf16.msra.mxu0 %v92
  %113 = vmatprep.subr.bf16.mxu0 0
  %114 = vmatpush1.bf16.msra.mxu0 %v93
  %115 = vmatprep.subr.bf16.mxu0 0
  %116 = vmatpush1.bf16.msra.mxu0 %v94
  %117 = vmatprep.subr.bf16.mxu0 0
  %118 = vmatpush1.bf16.msra.mxu0 %v95
  %119 = vmatprep.subr.bf16.mxu0 0
  %120 = vmatpush1.bf16.msra.mxu0 %v96
  %121 = vmatprep.subr.bf16.mxu0 0
  %122 = vmatpush1.bf16.msra.mxu0 0
  %123 = vmatprep.subr.bf16.mxu0 0
  %124 = vmatpush1.bf16.msra.mxu0 0
  %125 = vmatprep.subr.bf16.mxu0 0
  %126 = vmatpush1.bf16.msra.mxu0 0
  %127 = vmatprep.subr.bf16.mxu0 0
  %128 = vmatpush1.bf16.msra.mxu0 0
  %129 = vmatprep.subr.bf16.mxu0 0
  %130 = vmatpush1.bf16.msra.mxu0 0
  %131 = vmatprep.subr.bf16.mxu0 0
  %132 = vmatpush1.bf16.msra.mxu0 0
  %133 = vmatprep.subr.bf16.mxu0 0
  %134 = vmatpush1.bf16.msra.mxu0 0
  %135 = vmatprep.subr.bf16.mxu0 0
  %136 = vmatpush1.bf16.msra.mxu0 0
  %137 = vmatprep.mubr.bf16.mxu0 0
  %138 = vmatmul.mubr.bf16.gmra.mrb[0].mxu0 %v53
  %v139 = vpop.f32.mrb[0].mxu0
  %v140 = vadd.f32 %v43, %v139
  %v141 = vpop.f32.mrb[0].mxu0
  %v142 = vpop.f32.mrb[0].mxu0
  %v143 = vadd.f32 %v43, %v142
  %v144 = vpop.f32.mrb[0].mxu0
  %145 = vmatprep.mubr.bf16.mxu0 0
  %146 = vmatmul.mubr.bf16.gmra.mrb[0].mxu0 %v54
  %v147 = vpop.f32.mrb[0].mxu0
  %v148 = vadd.f32 %v43, %v147
  %v149 = vpop.f32.mrb[0].mxu0
  %v150 = vpop.f32.mrb[0].mxu0
  %v151 = vadd.f32 %v43, %v150
  %v152 = vpop.f32.mrb[0].mxu0
  %153 = vdwg.mxu0
  %v154 = vld [vmem:[%s3] sm:$0xff]
  %v155 = vld [vmem:[%s3 + $0x8] sm:$0xff]
  %v156 = vld [vmem:[%s3 + $0x10] sm:$0xff]
  %v157 = vld [vmem:[%s3 + $0x18] sm:$0xff]
  %v158 = vadd.f32 %v140, %v154
  %v159 = vadd.f32 %v143, %v155
  %v160 = vadd.f32 %v148, %v156
  %v161 = vadd.f32 %v151, %v157
  %v162 = vmax.f32 %v158, 0.0
  %v163 = vmax.f32 %v159, 0.0
  %v164 = vmax.f32 %v160, 0.0
  %v165 = vmax.f32 %v161, 0.0
  %166 = vst [vmem:[%s4] sm:$0xff] %v162
  %167 = vst [vmem:[%s4 + $0x8] sm:$0xff] %v163
  %168 = vst [vmem:[%s4 + $0x10] sm:$0xff] %v164
  %169 = vst [vmem:[%s4 + $0x18] sm:$0xff] %v165
  // Predicated region
  $region18: #{_lambda_.28} parent=0 // pred_check
    _
  $region19: #{_lambda_.28} parent=0 // pred_check_branch
    %171 = sbr.rel (0) target = $region21
  $region20: #{_lambda_.28} parent=0 // pred_region
    _
  $region21: #{_lambda_.28} parent=0 // pred_fallthru
    _
  // Predicated region
  $region22: #{_lambda_.28} parent=0 // pred_check
    _
  $region23: #{_lambda_.28} parent=0 // pred_check_branch
    %173 = sbr.rel (0) target = $region25
  $region24: #{_lambda_.28} parent=0 // pred_region
    _
  $region25: #{_lambda_.28} parent=0 // pred_fallthru
    _

// kernel: _lambda_.26
$region0: #{_lambda_.26}
  #allocation0 [shape = 'u32[]', space=smem, size = 0x4, offset = 0x4, fixed_abs, tag = 'smem constant byte address 0x4 - core index']
  #allocation1 [shape = 'u32[144,128]{1,0:T(1,128)}', space=vmem, size = 0x12000, scoped, tag = 'internal scratch']
  %s0 = inlined_call_operand.vmem [shape: bf16[32,128], index: 0, kind: input, shape index: {}]
  %s1 = inlined_call_operand.vmem [shape: bf16[128,128], index: 1, kind: input, shape index: {}]
  %s2 = inlined_call_operand.vmem [shape: f32[1,128], index: 2, kind: input, shape index: {}]
  %s3 = inlined_call_operand.vmem [shape: f32[32,128], index: 3, kind: input, shape index: {}]
  %s4 = inlined_call_operand.vmem [shape: f32[32,128], index: 4, kind: output, shape index: {}]
  %s5 = sld [smem:[#allocation0]]
  $region26: #{_lambda_.26} parent=0
    _
  %s7 = ssub.s32 1, %s5
  %s8 = scalar_select 0, %s7, %s5
  // Predicated region
  $region2: #{_lambda_.26} parent=0 // pred_check
    _
  $region3: #{_lambda_.26} parent=0 // pred_check_branch
    %10 = sbr.rel (0) target = $region5
  $region4: #{_lambda_.26} parent=0 // pred_region
    _
  $region5: #{_lambda_.26} parent=0 // pred_fallthru
    _
  // Predicated region
  $region6: #{_lambda_.26} parent=0 // pred_check
    _
  $region7: #{_lambda_.26} parent=0 // pred_check_branch
    %12 = sbr.rel (0) target = $region9
  $region8: #{_lambda_.26} parent=0 // pred_region
    _
  $region9: #{_lambda_.26} parent=0 // pred_fallthru
    _
  // Predicated region
  $region10: #{_lambda_.26} parent=0 // pred_check
    _
  $region11: #{_lambda_.26} parent=0 // pred_check_branch
    %14 = sbr.rel (0) target = $region13
  $region12: #{_lambda_.26} parent=0 // pred_region
    _
  $region13: #{_lambda_.26} parent=0 // pred_fallthru
    _
  // Predicated region
  $region14: #{_lambda_.26} parent=0 // pred_check
    _
  $region15: #{_lambda_.26} parent=0 // pred_check_branch
    %16 = sbr.rel (0) target = $region17
  $region16: #{_lambda_.26} parent=0 // pred_region
    _
  $region17: #{_lambda_.26} parent=0 // pred_fallthru
    _
  %v18 = vld [vmem:[%s0] sm:$0xf]
  %v19 = vld [vmem:[%s0 + $0x4] sm:$0xf]
  %v20 = vld [vmem:[%s0 + $0x8] sm:$0xf]
  %v21 = vld [vmem:[%s0 + $0xc] sm:$0xf]
  %v22 = vld [vmem:[%s1] sm:$0xf]
  %v23 = vld [vmem:[%s1 + $0x4] sm:$0xf]
  %v24 = vld [vmem:[%s1 + $0x8] sm:$0xf]
  %v25 = vld [vmem:[%s1 + $0xc] sm:$0xf]
  %v26 = vld [vmem:[%s1 + $0x10] sm:$0xf]
  %v27 = vld [vmem:[%s1 + $0x14] sm:$0xf]
  %v28 = vld [vmem:[%s1 + $0x18] sm:$0xf]
  %v29 = vld [vmem:[%s1 + $0x1c] sm:$0xf]
  %v30 = vld [vmem:[%s1 + $0x20] sm:$0xf]
  %v31 = vld [vmem:[%s1 + $0x24] sm:$0xf]
  %v32 = vld [vmem:[%s1 + $0x28] sm:$0xf]
  %v33 = vld [vmem:[%s1 + $0x2c] sm:$0xf]
  %v34 = vld [vmem:[%s1 + $0x30] sm:$0xf]
  %v35 = vld [vmem:[%s1 + $0x34] sm:$0xf]
  %v36 = vld [vmem:[%s1 + $0x38] sm:$0xf]
  %v37 = vld [vmem:[%s1 + $0x3c] sm:$0xf]
  %v38 = vld [vmem:[%s2] sm:$0x1]
  %v40 = vlaneseq
  %v41 = vshrl.u32 %v40, 7
  %v42 = vsub.s32 0, %v41
  %v43 = vrot.slane %v38, %v42
  %v49 = vunpack.c.l.b16 %v18
  %v50 = vunpack.c.l.b16 %v19
  %v51 = vunpack.c.l.b16 %v20
  %v52 = vunpack.c.l.b16 %v21
  %v53 = vpack.c.b16 %v50, %v49
  %v54 = vpack.c.b16 %v52, %v51
  %v73 = vunpack.c.l.b16 %v22
  %v74 = vunpack.c.l.b16 %v23
  %v75 = vunpack.c.l.b16 %v24
  %v76 = vunpack.c.l.b16 %v25
  %v77 = vunpack.c.l.b16 %v26
  %v78 = vunpack.c.l.b16 %v27
  %v79 = vunpack.c.l.b16 %v28
  %v80 = vunpack.c.l.b16 %v29
  %v81 = vunpack.c.l.b16 %v30
  %v82 = vunpack.c.l.b16 %v31
  %v83 = vunpack.c.l.b16 %v32
  %v84 = vunpack.c.l.b16 %v33
  %v85 = vunpack.c.l.b16 %v34
  %v86 = vunpack.c.l.b16 %v35
  %v87 = vunpack.c.l.b16 %v36
  %v88 = vunpack.c.l.b16 %v37
  %v89 = vpack.c.b16 %v74, %v73
  %v90 = vpack.c.b16 %v76, %v75
  %v91 = vpack.c.b16 %v78, %v77
  %v92 = vpack.c.b16 %v80, %v79
  %v93 = vpack.c.b16 %v82, %v81
  %v94 = vpack.c.b16 %v84, %v83
  %v95 = vpack.c.b16 %v86, %v85
  %v96 = vpack.c.b16 %v88, %v87
  %105 = vmatprep.subr.bf16.mxu0 0
  %106 = vmatpush1.bf16.msra.mxu0 %v89
  %107 = vmatprep.subr.bf16.mxu0 0
  %108 = vmatpush1.bf16.msra.mxu0 %v90
  %109 = vmatprep.subr.bf16.mxu0 0
  %110 = vmatpush1.bf16.msra.mxu0 %v91
  %111 = vmatprep.subr.bf16.mxu0 0
  %112 = vmatpush1.bf16.msra.mxu0 %v92
  %113 = vmatprep.subr.bf16.mxu0 0
  %114 = vmatpush1.bf16.msra.mxu0 %v93
  %115 = vmatprep.subr.bf16.mxu0 0
  %116 = vmatpush1.bf16.msra.mxu0 %v94
  %117 = vmatprep.subr.bf16.mxu0 0
  %118 = vmatpush1.bf16.msra.mxu0 %v95
  %119 = vmatprep.subr.bf16.mxu0 0
  %120 = vmatpush1.bf16.msra.mxu0 %v96
  %121 = vmatprep.subr.bf16.mxu0 0
  %122 = vmatpush1.bf16.msra.mxu0 0
  %123 = vmatprep.subr.bf16.mxu0 0
  %124 = vmatpush1.bf16.msra.mxu0 0
  %125 = vmatprep.subr.bf16.mxu0 0
  %126 = vmatpush1.bf16.msra.mxu0 0
  %127 = vmatprep.subr.bf16.mxu0 0
  %128 = vmatpush1.bf16.msra.mxu0 0
  %129 = vmatprep.subr.bf16.mxu0 0
  %130 = vmatpush1.bf16.msra.mxu0 0
  %131 = vmatprep.subr.bf16.mxu0 0
  %132 = vmatpush1.bf16.msra.mxu0 0
  %133 = vmatprep.subr.bf16.mxu0 0
  %134 = vmatpush1.bf16.msra.mxu0 0
  %135 = vmatprep.subr.bf16.mxu0 0
  %136 = vmatpush1.bf16.msra.mxu0 0
  %137 = vmatprep.mubr.bf16.mxu0 0
  %138 = vmatmul.mubr.bf16.gmra.mrb[0].mxu0 %v53
  %v139 = vpop.f32.mrb[0].mxu0
  %v140 = vadd.f32 %v43, %v139
  %v141 = vpop.f32.mrb[0].mxu0
  %v142 = vpop.f32.mrb[0].mxu0
  %v143 = vadd.f32 %v43, %v142
  %v144 = vpop.f32.mrb[0].mxu0
  %145 = vmatprep.mubr.bf16.mxu0 0
  %146 = vmatmul.mubr.bf16.gmra.mrb[0].mxu0 %v54
  %v147 = vpop.f32.mrb[0].mxu0
  %v148 = vadd.f32 %v43, %v147
  %v149 = vpop.f32.mrb[0].mxu0
  %v150 = vpop.f32.mrb[0].mxu0
  %v151 = vadd.f32 %v43, %v150
  %v152 = vpop.f32.mrb[0].mxu0
  %153 = vdwg.mxu0
  %v154 = vld [vmem:[%s3] sm:$0xff]
  %v155 = vld [vmem:[%s3 + $0x8] sm:$0xff]
  %v156 = vld [vmem:[%s3 + $0x10] sm:$0xff]
  %v157 = vld [vmem:[%s3 + $0x18] sm:$0xff]
  %v158 = vadd.f32 %v140, %v154
  %v159 = vadd.f32 %v143, %v155
  %v160 = vadd.f32 %v148, %v156
  %v161 = vadd.f32 %v151, %v157
  %162 = vst [vmem:[%s4] sm:$0xff] %v158
  %163 = vst [vmem:[%s4 + $0x8] sm:$0xff] %v159
  %164 = vst [vmem:[%s4 + $0x10] sm:$0xff] %v160
  %165 = vst [vmem:[%s4 + $0x18] sm:$0xff] %v161
  // Predicated region
  $region18: #{_lambda_.26} parent=0 // pred_check
    _
  $region19: #{_lambda_.26} parent=0 // pred_check_branch
    %167 = sbr.rel (0) target = $region21
  $region20: #{_lambda_.26} parent=0 // pred_region
    _
  $region21: #{_lambda_.26} parent=0 // pred_fallthru
    _
  // Predicated region
  $region22: #{_lambda_.26} parent=0 // pred_check
    _
  $region23: #{_lambda_.26} parent=0 // pred_check_branch
    %169 = sbr.rel (0) target = $region25
  $region24: #{_lambda_.26} parent=0 // pred_region
    _
  $region25: #{_lambda_.26} parent=0 // pred_fallthru
    _

// kernel: _lambda_.29
$region0: #{_lambda_.29}
  #allocation0 [shape = 'u32[]', space=smem, size = 0x4, offset = 0x4, fixed_abs, tag = 'smem constant byte address 0x4 - core index']
  #allocation1 [shape = 'u32[144,128]{1,0:T(1,128)}', space=vmem, size = 0x12000, scoped, tag = 'internal scratch']
  %s0 = inlined_call_operand.vmem [shape: bf16[8,128], index: 0, kind: input, shape index: {}]
  %s1 = inlined_call_operand.vmem [shape: bf16[128,128], index: 1, kind: input, shape index: {}]
  %s2 = inlined_call_operand.vmem [shape: f32[1,128], index: 2, kind: input, shape index: {}]
  %s3 = inlined_call_operand.vmem [shape: f32[8,128], index: 3, kind: output, shape index: {}]
  %s4 = sld [smem:[#allocation0]]
  $region22: #{_lambda_.29} parent=0
    _
  %s6 = ssub.s32 1, %s4
  %s7 = scalar_select 0, %s6, %s4
  // Predicated region
  $region2: #{_lambda_.29} parent=0 // pred_check
    _
  $region3: #{_lambda_.29} parent=0 // pred_check_branch
    %9 = sbr.rel (0) target = $region5
  $region4: #{_lambda_.29} parent=0 // pred_region
    _
  $region5: #{_lambda_.29} parent=0 // pred_fallthru
    _
  // Predicated region
  $region6: #{_lambda_.29} parent=0 // pred_check
    _
  $region7: #{_lambda_.29} parent=0 // pred_check_branch
    %11 = sbr.rel (0) target = $region9
  $region8: #{_lambda_.29} parent=0 // pred_region
    _
  $region9: #{_lambda_.29} parent=0 // pred_fallthru
    _
  // Predicated region
  $region10: #{_lambda_.29} parent=0 // pred_check
    _
  $region11: #{_lambda_.29} parent=0 // pred_check_branch
    %13 = sbr.rel (0) target = $region13
  $region12: #{_lambda_.29} parent=0 // pred_region
    _
  $region13: #{_lambda_.29} parent=0 // pred_fallthru
    _
  %v15 = vld [vmem:[%s0] sm:$0xf]
  %v16 = vld [vmem:[%s1] sm:$0xf]
  %v17 = vld [vmem:[%s1 + $0x4] sm:$0xf]
  %v18 = vld [vmem:[%s1 + $0x8] sm:$0xf]
  %v19 = vld [vmem:[%s1 + $0xc] sm:$0xf]
  %v20 = vld [vmem:[%s1 + $0x10] sm:$0xf]
  %v21 = vld [vmem:[%s1 + $0x14] sm:$0xf]
  %v22 = vld [vmem:[%s1 + $0x18] sm:$0xf]
  %v23 = vld [vmem:[%s1 + $0x1c] sm:$0xf]
  %v24 = vld [vmem:[%s1 + $0x20] sm:$0xf]
  %v25 = vld [vmem:[%s1 + $0x24] sm:$0xf]
  %v26 = vld [vmem:[%s1 + $0x28] sm:$0xf]
  %v27 = vld [vmem:[%s1 + $0x2c] sm:$0xf]
  %v28 = vld [vmem:[%s1 + $0x30] sm:$0xf]
  %v29 = vld [vmem:[%s1 + $0x34] sm:$0xf]
  %v30 = vld [vmem:[%s1 + $0x38] sm:$0xf]
  %v31 = vld [vmem:[%s1 + $0x3c] sm:$0xf]
  %v32 = vld [vmem:[%s2] sm:$0x1]
  %v34 = vlaneseq
  %v35 = vshrl.u32 %v34, 7
  %v36 = vsub.s32 0, %v35
  %v37 = vrot.slane %v32, %v36
  %v55 = vunpack.c.l.b16 %v16
  %v56 = vunpack.c.l.b16 %v17
  %v57 = vunpack.c.l.b16 %v18
  %v58 = vunpack.c.l.b16 %v19
  %v59 = vunpack.c.l.b16 %v20
  %v60 = vunpack.c.l.b16 %v21
  %v61 = vunpack.c.l.b16 %v22
  %v62 = vunpack.c.l.b16 %v23
  %v63 = vunpack.c.l.b16 %v24
  %v64 = vunpack.c.l.b16 %v25
  %v65 = vunpack.c.l.b16 %v26
  %v66 = vunpack.c.l.b16 %v27
  %v67 = vunpack.c.l.b16 %v28
  %v68 = vunpack.c.l.b16 %v29
  %v69 = vunpack.c.l.b16 %v30
  %v70 = vunpack.c.l.b16 %v31
  %v71 = vpack.c.b16 %v56, %v55
  %v72 = vpack.c.b16 %v58, %v57
  %v73 = vpack.c.b16 %v60, %v59
  %v74 = vpack.c.b16 %v62, %v61
  %v75 = vpack.c.b16 %v64, %v63
  %v76 = vpack.c.b16 %v66, %v65
  %v77 = vpack.c.b16 %v68, %v67
  %v78 = vpack.c.b16 %v70, %v69
  %87 = vmatprep.subr.bf16.mxu0 0
  %88 = vmatpush1.bf16.msra.mxu0 %v71
  %89 = vmatprep.subr.bf16.mxu0 0
  %90 = vmatpush1.bf16.msra.mxu0 %v72
  %91 = vmatprep.subr.bf16.mxu0 0
  %92 = vmatpush1.bf16.msra.mxu0 %v73
  %93 = vmatprep.subr.bf16.mxu0 0
  %94 = vmatpush1.bf16.msra.mxu0 %v74
  %95 = vmatprep.subr.bf16.mxu0 0
  %96 = vmatpush1.bf16.msra.mxu0 %v75
  %97 = vmatprep.subr.bf16.mxu0 0
  %98 = vmatpush1.bf16.msra.mxu0 %v76
  %99 = vmatprep.subr.bf16.mxu0 0
  %100 = vmatpush1.bf16.msra.mxu0 %v77
  %101 = vmatprep.subr.bf16.mxu0 0
  %102 = vmatpush1.bf16.msra.mxu0 %v78
  %103 = vmatprep.subr.bf16.mxu0 0
  %104 = vmatpush1.bf16.msra.mxu0 0
  %105 = vmatprep.subr.bf16.mxu0 0
  %106 = vmatpush1.bf16.msra.mxu0 0
  %107 = vmatprep.subr.bf16.mxu0 0
  %108 = vmatpush1.bf16.msra.mxu0 0
  %109 = vmatprep.subr.bf16.mxu0 0
  %110 = vmatpush1.bf16.msra.mxu0 0
  %111 = vmatprep.subr.bf16.mxu0 0
  %112 = vmatpush1.bf16.msra.mxu0 0
  %113 = vmatprep.subr.bf16.mxu0 0
  %114 = vmatpush1.bf16.msra.mxu0 0
  %115 = vmatprep.subr.bf16.mxu0 0
  %116 = vmatpush1.bf16.msra.mxu0 0
  %117 = vmatprep.subr.bf16.mxu0 0
  %118 = vmatpush1.bf16.msra.mxu0 0
  %119 = vmatprep.mubr.bf16.mxu0 0
  %120 = vmatmul.mubr.bf16.gmra.mrb[0].mxu0 %v15
  %v121 = vpop.f32.mrb[0].mxu0
  %v122 = vadd.f32 %v37, %v121
  %v123 = vpop.f32.mrb[0].mxu0
  %v124 = vpop.f32.mrb[0].mxu0
  %v125 = vpop.f32.mrb[0].mxu0
  %126 = vdwg.mxu0
  %127 = vst [vmem:[%s3] sm:$0xff] %v122
  // Predicated region
  $region14: #{_lambda_.29} parent=0 // pred_check
    _
  $region15: #{_lambda_.29} parent=0 // pred_check_branch
    %129 = sbr.rel (0) target = $region17
  $region16: #{_lambda_.29} parent=0 // pred_region
    _
  $region17: #{_lambda_.29} parent=0 // pred_fallthru
    _
  // Predicated region
  $region18: #{_lambda_.29} parent=0 // pred_check
    _
  $region19: #{_lambda_.29} parent=0 // pred_check_branch
    %131 = sbr.rel (0) target = $region21
  $region20: #{_lambda_.29} parent=0 // pred_region
    _
  $region21: #{_lambda_.29} parent=0 // pred_fallthru
    _

// kernel: _lambda_.30
$region0: #{_lambda_.30}
  #allocation0 [shape = 'u32[]', space=smem, size = 0x4, offset = 0x4, fixed_abs, tag = 'smem constant byte address 0x4 - core index']
  #allocation1 [shape = 'u32[144,128]{1,0:T(1,128)}', space=vmem, size = 0x12000, scoped, tag = 'internal scratch']
  %s0 = inlined_call_operand.vmem [shape: f32[128,128], index: 0, kind: input, shape index: {}]
  %s1 = inlined_call_operand.vmem [shape: f32[128,128], index: 1, kind: input, shape index: {}]
  %s2 = inlined_call_operand.vmem [shape: f32[1,128], index: 2, kind: input, shape index: {}]
  %s3 = inlined_call_operand.vmem [shape: f32[128,128], index: 3, kind: output, shape index: {0}]
  %s4 = inlined_call_operand.vmem [shape: f32[8,128], index: 4, kind: output, shape index: {1}]
  %s5 = inlined_call_operand.vmem [shape: f32[8,128], index: 5, kind: output, shape index: {2}]
  %6 = xla_tuple %s3, %s4, %s5
  %s7 = sld [smem:[#allocation0]]
  $region38: #{_lambda_.30} parent=0
    _
  %s9 = ssub.s32 1, %s7
  %s10 = scalar_select 0, %s9, %s7
  // Predicated region
  $region2: #{_lambda_.30} parent=0 // pred_check
    _
  $region3: #{_lambda_.30} parent=0 // pred_check_branch
    %12 = sbr.rel (0) target = $region5
  $region4: #{_lambda_.30} parent=0 // pred_region
    _
  $region5: #{_lambda_.30} parent=0 // pred_fallthru
    _
  // Predicated region
  $region6: #{_lambda_.30} parent=0 // pred_check
    _
  $region7: #{_lambda_.30} parent=0 // pred_check_branch
    %14 = sbr.rel (0) target = $region9
  $region8: #{_lambda_.30} parent=0 // pred_region
    _
  $region9: #{_lambda_.30} parent=0 // pred_fallthru
    _
  // Predicated region
  $region10: #{_lambda_.30} parent=0 // pred_check
    _
  $region11: #{_lambda_.30} parent=0 // pred_check_branch
    %16 = sbr.rel (0) target = $region13
  $region12: #{_lambda_.30} parent=0 // pred_region
    _
  $region13: #{_lambda_.30} parent=0 // pred_fallthru
    _
  %v18 = vld [vmem:[%s0] sm:$0xff]
  %v19 = vld [vmem:[%s0 + $0x8] sm:$0xff]
  %v20 = vld [vmem:[%s0 + $0x10] sm:$0xff]
  %v21 = vld [vmem:[%s0 + $0x18] sm:$0xff]
  %v22 = vld [vmem:[%s0 + $0x20] sm:$0xff]
  %v23 = vld [vmem:[%s0 + $0x28] sm:$0xff]
  %v24 = vld [vmem:[%s0 + $0x30] sm:$0xff]
  %v25 = vld [vmem:[%s0 + $0x38] sm:$0xff]
  %v26 = vld [vmem:[%s0 + $0x40] sm:$0xff]
  %v27 = vld [vmem:[%s0 + $0x48] sm:$0xff]
  %v28 = vld [vmem:[%s0 + $0x50] sm:$0xff]
  %v29 = vld [vmem:[%s0 + $0x58] sm:$0xff]
  %v30 = vld [vmem:[%s0 + $0x60] sm:$0xff]
  %v31 = vld [vmem:[%s0 + $0x68] sm:$0xff]
  %v32 = vld [vmem:[%s0 + $0x70] sm:$0xff]
  %v33 = vld [vmem:[%s0 + $0x78] sm:$0xff]
  %v34 = vld [vmem:[%s1] sm:$0xff]
  %v35 = vld [vmem:[%s1 + $0x8] sm:$0xff]
  %v36 = vld [vmem:[%s1 + $0x10] sm:$0xff]
  %v37 = vld [vmem:[%s1 + $0x18] sm:$0xff]
  %v38 = vld [vmem:[%s1 + $0x20] sm:$0xff]
  %v39 = vld [vmem:[%s1 + $0x28] sm:$0xff]
  %v40 = vld [vmem:[%s1 + $0x30] sm:$0xff]
  %v41 = vld [vmem:[%s1 + $0x38] sm:$0xff]
  %v42 = vld [vmem:[%s1 + $0x40] sm:$0xff]
  %v43 = vld [vmem:[%s1 + $0x48] sm:$0xff]
  %v44 = vld [vmem:[%s1 + $0x50] sm:$0xff]
  %v45 = vld [vmem:[%s1 + $0x58] sm:$0xff]
  %v46 = vld [vmem:[%s1 + $0x60] sm:$0xff]
  %v47 = vld [vmem:[%s1 + $0x68] sm:$0xff]
  %v48 = vld [vmem:[%s1 + $0x70] sm:$0xff]
  %v49 = vld [vmem:[%s1 + $0x78] sm:$0xff]
  %v50 = vpack.c.bf16 %v19, %v18
  %v51 = vpack.c.bf16 %v21, %v20
  %v52 = vpack.c.bf16 %v23, %v22
  %v53 = vpack.c.bf16 %v25, %v24
  %v54 = vpack.c.bf16 %v27, %v26
  %v55 = vpack.c.bf16 %v29, %v28
  %v56 = vpack.c.bf16 %v31, %v30
  %v57 = vpack.c.bf16 %v33, %v32
  %v58 = vpack.c.bf16 %v35, %v34
  %v59 = vpack.c.bf16 %v37, %v36
  %v60 = vpack.c.bf16 %v39, %v38
  %v61 = vpack.c.bf16 %v41, %v40
  %v62 = vpack.c.bf16 %v43, %v42
  %v63 = vpack.c.bf16 %v45, %v44
  %v64 = vpack.c.bf16 %v47, %v46
  %v65 = vpack.c.bf16 %v49, %v48
  %66 = vmatprep.subr.bf16.mxu0 0
  %67 = vmatpush1.bf16.xpose.msra.mxu0 %v58
  %68 = vmatprep.subr.bf16.mxu0 0
  %69 = vmatpush1.bf16.xpose.msra.mxu0 %v59
  %70 = vmatprep.subr.bf16.mxu0 0
  %71 = vmatpush1.bf16.xpose.msra.mxu0 %v60
  %72 = vmatprep.subr.bf16.mxu0 0
  %73 = vmatpush1.bf16.xpose.msra.mxu0 %v61
  %74 = vmatprep.subr.bf16.mxu0 0
  %75 = vmatpush1.bf16.xpose.msra.mxu0 %v62
  %76 = vmatprep.subr.bf16.mxu0 0
  %77 = vmatpush1.bf16.xpose.msra.mxu0 %v63
  %78 = vmatprep.subr.bf16.mxu0 0
  %79 = vmatpush1.bf16.xpose.msra.mxu0 %v64
  %80 = vmatprep.subr.bf16.mxu0 0
  %81 = vmatpush1.bf16.xpose.msra.mxu0 %v65
  %82 = vmatprep.subr.bf16.mxu0 0
  %83 = vmatpush1.bf16.xpose.msra.mxu0 0
  %84 = vmatprep.subr.bf16.mxu0 0
  %85 = vmatpush1.bf16.xpose.msra.mxu0 0
  %86 = vmatprep.subr.bf16.mxu0 0
  %87 = vmatpush1.bf16.xpose.msra.mxu0 0
  %88 = vmatprep.subr.bf16.mxu0 0
  %89 = vmatpush1.bf16.xpose.msra.mxu0 0
  %90 = vmatprep.subr.bf16.mxu0 0
  %91 = vmatpush1.bf16.xpose.msra.mxu0 0
  %92 = vmatprep.subr.bf16.mxu0 0
  %93 = vmatpush1.bf16.xpose.msra.mxu0 0
  %94 = vmatprep.subr.bf16.mxu0 0
  %95 = vmatpush1.bf16.xpose.msra.mxu0 0
  %96 = vmatprep.subr.bf16.mxu0 0
  %97 = vmatpush1.bf16.xpose.msra.mxu0 0
  %98 = vmatprep.mubr.bf16.mxu0 0
  %99 = vmatmul.mubr.bf16.gmra.mrb[0].mxu0 %v50
  %v100 = vpop.f32.mrb[0].mxu0
  %v101 = vadd.f32 0.0, %v100
  %v102 = vpop.f32.mrb[0].mxu0
  %v103 = vpop.f32.mrb[0].mxu0
  %v104 = vadd.f32 0.0, %v103
  %v105 = vpop.f32.mrb[0].mxu0
  %106 = vmatprep.mubr.bf16.mxu0 0
  %107 = vmatmul.mubr.bf16.gmra.mrb[0].mxu0 %v51
  %v108 = vpop.f32.mrb[0].mxu0
  %v109 = vadd.f32 0.0, %v108
  %v110 = vpop.f32.mrb[0].mxu0
  %v111 = vpop.f32.mrb[0].mxu0
  %v112 = vadd.f32 0.0, %v111
  %v113 = vpop.f32.mrb[0].mxu0
  %114 = vmatprep.mubr.bf16.mxu0 0
  %115 = vmatmul.mubr.bf16.gmra.mrb[0].mxu0 %v52
  %v116 = vpop.f32.mrb[0].mxu0
  %v117 = vadd.f32 0.0, %v116
  %v118 = vpop.f32.mrb[0].mxu0
  %v119 = vpop.f32.mrb[0].mxu0
  %v120 = vadd.f32 0.0, %v119
  %v121 = vpop.f32.mrb[0].mxu0
  %122 = vmatprep.mubr.bf16.mxu0 0
  %123 = vmatmul.mubr.bf16.gmra.mrb[0].mxu0 %v53
  %v124 = vpop.f32.mrb[0].mxu0
  %v125 = vadd.f32 0.0, %v124
  %v126 = vpop.f32.mrb[0].mxu0
  %v127 = vpop.f32.mrb[0].mxu0
  %v128 = vadd.f32 0.0, %v127
  %v129 = vpop.f32.mrb[0].mxu0
  %130 = vmatprep.mubr.bf16.mxu0 0
  %131 = vmatmul.mubr.bf16.gmra.mrb[0].mxu0 %v54
  %v132 = vpop.f32.mrb[0].mxu0
  %v133 = vadd.f32 0.0, %v132
  %v134 = vpop.f32.mrb[0].mxu0
  %v135 = vpop.f32.mrb[0].mxu0
  %v136 = vadd.f32 0.0, %v135
  %v137 = vpop.f32.mrb[0].mxu0
  %138 = vmatprep.mubr.bf16.mxu0 0
  %139 = vmatmul.mubr.bf16.gmra.mrb[0].mxu0 %v55
  %v140 = vpop.f32.mrb[0].mxu0
  %v141 = vadd.f32 0.0, %v140
  %v142 = vpop.f32.mrb[0].mxu0
  %v143 = vpop.f32.mrb[0].mxu0
  %v144 = vadd.f32 0.0, %v143
  %v145 = vpop.f32.mrb[0].mxu0
  %146 = vmatprep.mubr.bf16.mxu0 0
  %147 = vmatmul.mubr.bf16.gmra.mrb[0].mxu0 %v56
  %v148 = vpop.f32.mrb[0].mxu0
  %v149 = vadd.f32 0.0, %v148
  %v150 = vpop.f32.mrb[0].mxu0
  %v151 = vpop.f32.mrb[0].mxu0
  %v152 = vadd.f32 0.0, %v151
  %v153 = vpop.f32.mrb[0].mxu0
  %154 = vmatprep.mubr.bf16.mxu0 0
  %155 = vmatmul.mubr.bf16.gmra.mrb[0].mxu0 %v57
  %v156 = vpop.f32.mrb[0].mxu0
  %v157 = vadd.f32 0.0, %v156
  %v158 = vpop.f32.mrb[0].mxu0
  %v159 = vpop.f32.mrb[0].mxu0
  %v160 = vadd.f32 0.0, %v159
  %v161 = vpop.f32.mrb[0].mxu0
  %162 = vdwg.mxu0
  %v163 = vld [vmem:[%s2] sm:$0x1]
  %v164 = vmul.f32 %v101, 2.0
  %v165 = vmul.f32 %v104, 2.0
  %v166 = vmul.f32 %v109, 2.0
  %v167 = vmul.f32 %v112, 2.0
  %v168 = vmul.f32 %v117, 2.0
  %v169 = vmul.f32 %v120, 2.0
  %v170 = vmul.f32 %v125, 2.0
  %v171 = vmul.f32 %v128, 2.0
  %v172 = vmul.f32 %v133, 2.0
  %v173 = vmul.f32 %v136, 2.0
  %v174 = vmul.f32 %v141, 2.0
  %v175 = vmul.f32 %v144, 2.0
  %v176 = vmul.f32 %v149, 2.0
  %v177 = vmul.f32 %v152, 2.0
  %v178 = vmul.f32 %v157, 2.0
  %v179 = vmul.f32 %v160, 2.0
  %v181 = vlaneseq
  %v182 = vshrl.u32 %v181, 7
  %v183 = vsub.s32 0, %v182
  %v184 = vrot.slane %v163, %v183
  %v186 = vsub.f32 %v184, %v164
  %v187 = vsub.f32 %v184, %v165
  %v188 = vsub.f32 %v184, %v166
  %v189 = vsub.f32 %v184, %v167
  %v190 = vsub.f32 %v184, %v168
  %v191 = vsub.f32 %v184, %v169
  %v192 = vsub.f32 %v184, %v170
  %v193 = vsub.f32 %v184, %v171
  %v194 = vsub.f32 %v184, %v172
  %v195 = vsub.f32 %v184, %v173
  %v196 = vsub.f32 %v184, %v174
  %v197 = vsub.f32 %v184, %v175
  %v198 = vsub.f32 %v184, %v176
  %v199 = vsub.f32 %v184, %v177
  %v200 = vsub.f32 %v184, %v178
  %v201 = vsub.f32 %v184, %v179
  %v202 = vlaneseq
  %v203 = vand.u32 %v202, 127
  %vm204 = vcmp.lt.s32.totalorder %v203, 64
  %v205 = vsel %vm204, %v186, 1e+30
  %v206 = vsel %vm204, %v187, 1e+30
  %v207 = vsel %vm204, %v188, 1e+30
  %v208 = vsel %vm204, %v189, 1e+30
  %v209 = vsel %vm204, %v190, 1e+30
  %v210 = vsel %vm204, %v191, 1e+30
  %v211 = vsel %vm204, %v192, 1e+30
  %v212 = vsel %vm204, %v193, 1e+30
  %v213 = vsel %vm204, %v194, 1e+30
  %v214 = vsel %vm204, %v195, 1e+30
  %v215 = vsel %vm204, %v196, 1e+30
  %v216 = vsel %vm204, %v197, 1e+30
  %v217 = vsel %vm204, %v198, 1e+30
  %v218 = vsel %vm204, %v199, 1e+30
  %v219 = vsel %vm204, %v200, 1e+30
  %v220 = vsel %vm204, %v201, 1e+30
  %221 = vmin.index.xlane.f32.xlu0 %v205
  %v222 = vpop.xlane.xlu0 %221
  %223 = vmin.index.xlane.f32.xlu0 %v206
  %v224 = vpop.xlane.xlu0 %223
  %225 = vmin.index.xlane.f32.xlu0 %v207
  %v226 = vpop.xlane.xlu0 %225
  %227 = vmin.index.xlane.f32.xlu0 %v208
  %v228 = vpop.xlane.xlu0 %227
  %229 = vmin.index.xlane.f32.xlu0 %v209
  %v230 = vpop.xlane.xlu0 %229
  %231 = vmin.index.xlane.f32.xlu0 %v210
  %v232 = vpop.xlane.xlu0 %231
  %233 = vmin.index.xlane.f32.xlu0 %v211
  %v234 = vpop.xlane.xlu0 %233
  %235 = vmin.index.xlane.f32.xlu0 %v212
  %v236 = vpop.xlane.xlu0 %235
  %237 = vmin.index.xlane.f32.xlu0 %v213
  %v238 = vpop.xlane.xlu0 %237
  %239 = vmin.index.xlane.f32.xlu0 %v214
  %v240 = vpop.xlane.xlu0 %239
  %241 = vmin.index.xlane.f32.xlu0 %v215
  %v242 = vpop.xlane.xlu0 %241
  %243 = vmin.index.xlane.f32.xlu0 %v216
  %v244 = vpop.xlane.xlu0 %243
  %245 = vmin.index.xlane.f32.xlu0 %v217
  %v246 = vpop.xlane.xlu0 %245
  %247 = vmin.index.xlane.f32.xlu0 %v218
  %v248 = vpop.xlane.xlu0 %247
  %249 = vmin.index.xlane.f32.xlu0 %v219
  %v250 = vpop.xlane.xlu0 %249
  %251 = vmin.index.xlane.f32.xlu0 %v220
  %v252 = vpop.xlane.xlu0 %251
  %vm253 = vcmp.eq.s32.totalorder %v203, %v222
  %vm254 = vcmp.eq.s32.totalorder %v203, %v224
  %vm255 = vcmp.eq.s32.totalorder %v203, %v226
  %vm256 = vcmp.eq.s32.totalorder %v203, %v228
  %vm257 = vcmp.eq.s32.totalorder %v203, %v230
  %vm258 = vcmp.eq.s32.totalorder %v203, %v232
  %vm259 = vcmp.eq.s32.totalorder %v203, %v234
  %vm260 = vcmp.eq.s32.totalorder %v203, %v236
  %vm261 = vcmp.eq.s32.totalorder %v203, %v238
  %vm262 = vcmp.eq.s32.totalorder %v203, %v240
  %vm263 = vcmp.eq.s32.totalorder %v203, %v242
  %vm264 = vcmp.eq.s32.totalorder %v203, %v244
  %vm265 = vcmp.eq.s32.totalorder %v203, %v246
  %vm266 = vcmp.eq.s32.totalorder %v203, %v248
  %vm267 = vcmp.eq.s32.totalorder %v203, %v250
  %vm268 = vcmp.eq.s32.totalorder %v203, %v252
  %v269 = vsel %vm253, 1, 0
  %v270 = vsel %vm254, 1, 0
  %v271 = vsel %vm255, 1, 0
  %v272 = vsel %vm256, 1, 0
  %v273 = vsel %vm257, 1, 0
  %v274 = vsel %vm258, 1, 0
  %v275 = vsel %vm259, 1, 0
  %v276 = vsel %vm260, 1, 0
  %v277 = vsel %vm261, 1, 0
  %v278 = vsel %vm262, 1, 0
  %v279 = vsel %vm263, 1, 0
  %v280 = vsel %vm264, 1, 0
  %v281 = vsel %vm265, 1, 0
  %v282 = vsel %vm266, 1, 0
  %v283 = vsel %vm267, 1, 0
  %v284 = vsel %vm268, 1, 0
  %v285 = vcvt.s32.f32 %v269
  %v286 = vcvt.s32.f32 %v270
  %v287 = vcvt.s32.f32 %v271
  %v288 = vcvt.s32.f32 %v272
  %v289 = vcvt.s32.f32 %v273
  %v290 = vcvt.s32.f32 %v274
  %v291 = vcvt.s32.f32 %v275
  %v292 = vcvt.s32.f32 %v276
  %v293 = vcvt.s32.f32 %v277
  %v294 = vcvt.s32.f32 %v278
  %v295 = vcvt.s32.f32 %v279
  %v296 = vcvt.s32.f32 %v280
  %v297 = vcvt.s32.f32 %v281
  %v298 = vcvt.s32.f32 %v282
  %v299 = vcvt.s32.f32 %v283
  %v300 = vcvt.s32.f32 %v284
  %301 = vmatprep.subr.mxu0 0.0
  %302 = vmatpush1.msra.mxu0 %v34
  %303 = vmatprep.subr.mxu0 0.0
  %304 = vmatpush1.msra.mxu0 %v35
  %305 = vmatprep.subr.mxu0 0.0
  %306 = vmatpush1.msra.mxu0 %v36
  %307 = vmatprep.subr.mxu0 0.0
  %308 = vmatpush1.msra.mxu0 %v37
  %309 = vmatprep.subr.mxu0 0.0
  %310 = vmatpush1.msra.mxu0 %v38
  %311 = vmatprep.subr.mxu0 0.0
  %312 = vmatpush1.msra.mxu0 %v39
  %313 = vmatprep.subr.mxu0 0.0
  %314 = vmatpush1.msra.mxu0 %v40
  %315 = vmatprep.subr.mxu0 0.0
  %316 = vmatpush1.msra.mxu0 %v41
  %317 = vmatprep.subr.mxu0 0.0
  %318 = vmatpush1.msra.mxu0 %v42
  %319 = vmatprep.subr.mxu0 0.0
  %320 = vmatpush1.msra.mxu0 %v43
  %321 = vmatprep.subr.mxu0 0.0
  %322 = vmatpush1.msra.mxu0 %v44
  %323 = vmatprep.subr.mxu0 0.0
  %324 = vmatpush1.msra.mxu0 %v45
  %325 = vmatprep.subr.mxu0 0.0
  %326 = vmatpush1.msra.mxu0 %v46
  %327 = vmatprep.subr.mxu0 0.0
  %328 = vmatpush1.msra.mxu0 %v47
  %329 = vmatprep.subr.mxu0 0.0
  %330 = vmatpush1.msra.mxu0 %v48
  %331 = vmatprep.subr.mxu0 0.0
  %332 = vmatpush1.msra.mxu0 %v49
  %333 = vmatprep.subr.mxu0 0.0
  %334 = vmatpush1.msra.mxu0 0.0
  %335 = vmatprep.subr.mxu0 0.0
  %336 = vmatpush1.msra.mxu0 0.0
  %337 = vmatprep.subr.mxu0 0.0
  %338 = vmatpush1.msra.mxu0 0.0
  %339 = vmatprep.subr.mxu0 0.0
  %340 = vmatpush1.msra.mxu0 0.0
  %341 = vmatprep.subr.mxu0 0.0
  %342 = vmatpush1.msra.mxu0 0.0
  %343 = vmatprep.subr.mxu0 0.0
  %344 = vmatpush1.msra.mxu0 0.0
  %345 = vmatprep.subr.mxu0 0.0
  %346 = vmatpush1.msra.mxu0 0.0
  %347 = vmatprep.subr.mxu0 0.0
  %348 = vmatpush1.msra.mxu0 0.0
  %349 = vmatprep.subr.mxu0 0.0
  %350 = vmatpush1.msra.mxu0 0.0
  %351 = vmatprep.subr.mxu0 0.0
  %352 = vmatpush1.msra.mxu0 0.0
  %353 = vmatprep.subr.mxu0 0.0
  %354 = vmatpush1.msra.mxu0 0.0
  %355 = vmatprep.subr.mxu0 0.0
  %356 = vmatpush1.msra.mxu0 0.0
  %357 = vmatprep.subr.mxu0 0.0
  %358 = vmatpush1.msra.mxu0 0.0
  %359 = vmatprep.subr.mxu0 0.0
  %360 = vmatpush1.msra.mxu0 0.0
  %361 = vmatprep.subr.mxu0 0.0
  %362 = vmatpush1.msra.mxu0 0.0
  %363 = vmatprep.subr.mxu0 0.0
  %364 = vmatpush1.msra.mxu0 0.0
  %365 = vmatprep.mubr.f32.mxu0 0.0
  %366 = vmatmul.mubr.f32.gmra.mrb[0].mxu0 %v285
  %v367 = vpop.f32.mrb[0].mxu0
  %v368 = vadd.f32 0.0, %v367
  %v369 = vpop.f32.mrb[0].mxu0
  %370 = vmatprep.mubr.f32.mxu0 0.0
  %371 = vmatmul.mubr.f32.gmra.mrb[0].mxu0 %v286
  %v372 = vpop.f32.mrb[0].mxu0
  %v373 = vadd.f32 0.0, %v372
  %v374 = vpop.f32.mrb[0].mxu0
  %375 = vmatprep.mubr.f32.mxu0 0.0
  %376 = vmatmul.mubr.f32.gmra.mrb[0].mxu0 %v287
  %v377 = vpop.f32.mrb[0].mxu0
  %v378 = vadd.f32 0.0, %v377
  %v379 = vpop.f32.mrb[0].mxu0
  %380 = vmatprep.mubr.f32.mxu0 0.0
  %381 = vmatmul.mubr.f32.gmra.mrb[0].mxu0 %v288
  %v382 = vpop.f32.mrb[0].mxu0
  %v383 = vadd.f32 0.0, %v382
  %v384 = vpop.f32.mrb[0].mxu0
  %385 = vmatprep.mubr.f32.mxu0 0.0
  %386 = vmatmul.mubr.f32.gmra.mrb[0].mxu0 %v289
  %v387 = vpop.f32.mrb[0].mxu0
  %v388 = vadd.f32 0.0, %v387
  %v389 = vpop.f32.mrb[0].mxu0
  %390 = vmatprep.mubr.f32.mxu0 0.0
  %391 = vmatmul.mubr.f32.gmra.mrb[0].mxu0 %v290
  %v392 = vpop.f32.mrb[0].mxu0
  %v393 = vadd.f32 0.0, %v392
  %v394 = vpop.f32.mrb[0].mxu0
  %395 = vmatprep.mubr.f32.mxu0 0.0
  %396 = vmatmul.mubr.f32.gmra.mrb[0].mxu0 %v291
  %v397 = vpop.f32.mrb[0].mxu0
  %v398 = vadd.f32 0.0, %v397
  %v399 = vpop.f32.mrb[0].mxu0
  %400 = vmatprep.mubr.f32.mxu0 0.0
  %401 = vmatmul.mubr.f32.gmra.mrb[0].mxu0 %v292
  %v402 = vpop.f32.mrb[0].mxu0
  %v403 = vadd.f32 0.0, %v402
  %v404 = vpop.f32.mrb[0].mxu0
  %405 = vmatprep.mubr.f32.mxu0 0.0
  %406 = vmatmul.mubr.f32.gmra.mrb[0].mxu0 %v293
  %v407 = vpop.f32.mrb[0].mxu0
  %v408 = vadd.f32 0.0, %v407
  %v409 = vpop.f32.mrb[0].mxu0
  %410 = vmatprep.mubr.f32.mxu0 0.0
  %411 = vmatmul.mubr.f32.gmra.mrb[0].mxu0 %v294
  %v412 = vpop.f32.mrb[0].mxu0
  %v413 = vadd.f32 0.0, %v412
  %v414 = vpop.f32.mrb[0].mxu0
  %415 = vmatprep.mubr.f32.mxu0 0.0
  %416 = vmatmul.mubr.f32.gmra.mrb[0].mxu0 %v295
  %v417 = vpop.f32.mrb[0].mxu0
  %v418 = vadd.f32 0.0, %v417
  %v419 = vpop.f32.mrb[0].mxu0
  %420 = vmatprep.mubr.f32.mxu0 0.0
  %421 = vmatmul.mubr.f32.gmra.mrb[0].mxu0 %v296
  %v422 = vpop.f32.mrb[0].mxu0
  %v423 = vadd.f32 0.0, %v422
  %v424 = vpop.f32.mrb[0].mxu0
  %425 = vmatprep.mubr.f32.mxu0 0.0
  %426 = vmatmul.mubr.f32.gmra.mrb[0].mxu0 %v297
  %v427 = vpop.f32.mrb[0].mxu0
  %v428 = vadd.f32 0.0, %v427
  %v429 = vpop.f32.mrb[0].mxu0
  %430 = vmatprep.mubr.f32.mxu0 0.0
  %431 = vmatmul.mubr.f32.gmra.mrb[0].mxu0 %v298
  %v432 = vpop.f32.mrb[0].mxu0
  %v433 = vadd.f32 0.0, %v432
  %v434 = vpop.f32.mrb[0].mxu0
  %435 = vmatprep.mubr.f32.mxu0 0.0
  %436 = vmatmul.mubr.f32.gmra.mrb[0].mxu0 %v299
  %v437 = vpop.f32.mrb[0].mxu0
  %v438 = vadd.f32 0.0, %v437
  %v439 = vpop.f32.mrb[0].mxu0
  %440 = vmatprep.mubr.f32.mxu0 0.0
  %441 = vmatmul.mubr.f32.gmra.mrb[0].mxu0 %v300
  %v442 = vpop.f32.mrb[0].mxu0
  %v443 = vadd.f32 0.0, %v442
  %v444 = vpop.f32.mrb[0].mxu0
  %445 = vdwg.mxu0
  %446 = vst [vmem:[%s3] sm:$0xff] %v368
  %447 = vst [vmem:[%s3 + $0x8] sm:$0xff] %v373
  %448 = vst [vmem:[%s3 + $0x10] sm:$0xff] %v378
  %449 = vst [vmem:[%s3 + $0x18] sm:$0xff] %v383
  %450 = vst [vmem:[%s3 + $0x20] sm:$0xff] %v388
  %451 = vst [vmem:[%s3 + $0x28] sm:$0xff] %v393
  %452 = vst [vmem:[%s3 + $0x30] sm:$0xff] %v398
  %453 = vst [vmem:[%s3 + $0x38] sm:$0xff] %v403
  %454 = vst [vmem:[%s3 + $0x40] sm:$0xff] %v408
  %455 = vst [vmem:[%s3 + $0x48] sm:$0xff] %v413
  %456 = vst [vmem:[%s3 + $0x50] sm:$0xff] %v418
  %457 = vst [vmem:[%s3 + $0x58] sm:$0xff] %v423
  %458 = vst [vmem:[%s3 + $0x60] sm:$0xff] %v428
  %459 = vst [vmem:[%s3 + $0x68] sm:$0xff] %v433
  %460 = vst [vmem:[%s3 + $0x70] sm:$0xff] %v438
  %461 = vst [vmem:[%s3 + $0x78] sm:$0xff] %v443
  %v462 = vlaneseq
  %v463 = vshrl.u32 %v462, 7
  %v464 = vadd.s32 %v463, 8
  %v465 = vadd.s32 %v463, 16
  %v466 = vadd.s32 %v463, 24
  %v467 = vadd.s32 %v463, 32
  %v468 = vadd.s32 %v463, 40
  %v469 = vadd.s32 %v463, 48
  %v470 = vadd.s32 %v463, 56
  %v471 = vadd.s32 %v463, 64
  %v472 = vadd.s32 %v463, 72
  %v473 = vadd.s32 %v463, 80
  %v474 = vadd.s32 %v463, 88
  %v475 = vadd.s32 %v463, 96
  %v476 = vadd.s32 %v463, 104
  %v477 = vadd.s32 %v463, 112
  %v478 = vadd.s32 %v463, 120
  %s479 = smul.u32 0, 128
  %v480 = vstv %s479
  %v481 = vadd.s32 %v463, %v480
  %v482 = vadd.s32 %v464, %v480
  %v483 = vadd.s32 %v465, %v480
  %v484 = vadd.s32 %v466, %v480
  %v485 = vadd.s32 %v467, %v480
  %v486 = vadd.s32 %v468, %v480
  %v487 = vadd.s32 %v469, %v480
  %v488 = vadd.s32 %v470, %v480
  %v489 = vadd.s32 %v471, %v480
  %v490 = vadd.s32 %v472, %v480
  %v491 = vadd.s32 %v473, %v480
  %v492 = vadd.s32 %v474, %v480
  %v493 = vadd.s32 %v475, %v480
  %v494 = vadd.s32 %v476, %v480
  %v495 = vadd.s32 %v477, %v480
  %v496 = vadd.s32 %v478, %v480
  %vm497 = vcmp.lt.s32.totalorder %v481, 8
  %vm498 = vcmp.lt.s32.totalorder %v482, 8
  %vm499 = vcmp.lt.s32.totalorder %v483, 8
  %vm500 = vcmp.lt.s32.totalorder %v484, 8
  %vm501 = vcmp.lt.s32.totalorder %v485, 8
  %vm502 = vcmp.lt.s32.totalorder %v486, 8
  %vm503 = vcmp.lt.s32.totalorder %v487, 8
  %vm504 = vcmp.lt.s32.totalorder %v488, 8
  %vm505 = vcmp.lt.s32.totalorder %v489, 8
  %vm506 = vcmp.lt.s32.totalorder %v490, 8
  %vm507 = vcmp.lt.s32.totalorder %v491, 8
  %vm508 = vcmp.lt.s32.totalorder %v492, 8
  %vm509 = vcmp.lt.s32.totalorder %v493, 8
  %vm510 = vcmp.lt.s32.totalorder %v494, 8
  %vm511 = vcmp.lt.s32.totalorder %v495, 8
  %vm512 = vcmp.lt.s32.totalorder %v496, 8
  %v513 = vsel %vm497, 1, 0
  %v514 = vsel %vm498, 1, 0
  %v515 = vsel %vm499, 1, 0
  %v516 = vsel %vm500, 1, 0
  %v517 = vsel %vm501, 1, 0
  %v518 = vsel %vm502, 1, 0
  %v519 = vsel %vm503, 1, 0
  %v520 = vsel %vm504, 1, 0
  %v521 = vsel %vm505, 1, 0
  %v522 = vsel %vm506, 1, 0
  %v523 = vsel %vm507, 1, 0
  %v524 = vsel %vm508, 1, 0
  %v525 = vsel %vm509, 1, 0
  %v526 = vsel %vm510, 1, 0
  %v527 = vsel %vm511, 1, 0
  %v528 = vsel %vm512, 1, 0
  %v529 = vcvt.s32.f32 %v513
  %v530 = vcvt.s32.f32 %v514
  %v531 = vcvt.s32.f32 %v515
  %v532 = vcvt.s32.f32 %v516
  %v533 = vcvt.s32.f32 %v517
  %v534 = vcvt.s32.f32 %v518
  %v535 = vcvt.s32.f32 %v519
  %v536 = vcvt.s32.f32 %v520
  %v537 = vcvt.s32.f32 %v521
  %v538 = vcvt.s32.f32 %v522
  %v539 = vcvt.s32.f32 %v523
  %v540 = vcvt.s32.f32 %v524
  %v541 = vcvt.s32.f32 %v525
  %v542 = vcvt.s32.f32 %v526
  %v543 = vcvt.s32.f32 %v527
  %v544 = vcvt.s32.f32 %v528
  %v545 = vmul.f32 %v285, %v529
  %v546 = vmul.f32 %v286, %v530
  %v547 = vmul.f32 %v287, %v531
  %v548 = vmul.f32 %v288, %v532
  %v549 = vmul.f32 %v289, %v533
  %v550 = vmul.f32 %v290, %v534
  %v551 = vmul.f32 %v291, %v535
  %v552 = vmul.f32 %v292, %v536
  %v553 = vmul.f32 %v293, %v537
  %v554 = vmul.f32 %v294, %v538
  %v555 = vmul.f32 %v295, %v539
  %v556 = vmul.f32 %v296, %v540
  %v557 = vmul.f32 %v297, %v541
  %v558 = vmul.f32 %v298, %v542
  %v559 = vmul.f32 %v299, %v543
  %v560 = vmul.f32 %v300, %v544
  %v561 = vadd.f32 %v545, %v546
  %v562 = vadd.f32 %v561, %v547
  %v563 = vadd.f32 %v562, %v548
  %v564 = vadd.f32 %v563, %v549
  %v565 = vadd.f32 %v564, %v550
  %v566 = vadd.f32 %v565, %v551
  %v567 = vadd.f32 %v566, %v552
  %v568 = vadd.f32 %v567, %v553
  %v569 = vadd.f32 %v568, %v554
  %v570 = vadd.f32 %v569, %v555
  %v571 = vadd.f32 %v570, %v556
  %v572 = vadd.f32 %v571, %v557
  %v573 = vadd.f32 %v572, %v558
  %v574 = vadd.f32 %v573, %v559
  %v575 = vadd.f32 %v574, %v560
  %v576 = vrot.slane %v575, 4
  %v577 = vadd.f32 %v575, %v576
  %v578 = vrot.slane %v577, 2
  %v579 = vadd.f32 %v577, %v578
  %v580 = vrot.slane %v579, 1
  %v581 = vadd.f32 %v579, %v580
  %vm582 = vcmp.eq.s32.totalorder %v463, 0
  %v583 = vsel %vm582, 1, 0
  %v584 = vcvt.s32.f32 %v583
  %v585 = vmul.f32 %v581, %v584
  %586 = vst [vmem:[%s4] sm:$0xff] %v585
  %v587 = vsub.f32 %v368, %v18
  %v588 = vsub.f32 %v373, %v19
  %v589 = vsub.f32 %v378, %v20
  %v590 = vsub.f32 %v383, %v21
  %v591 = vsub.f32 %v388, %v22
  %v592 = vsub.f32 %v393, %v23
  %v593 = vsub.f32 %v398, %v24
  %v594 = vsub.f32 %v403, %v25
  %v595 = vsub.f32 %v408, %v26
  %v596 = vsub.f32 %v413, %v27
  %v597 = vsub.f32 %v418, %v28
  %v598 = vsub.f32 %v423, %v29
  %v599 = vsub.f32 %v428, %v30
  %v600 = vsub.f32 %v433, %v31
  %v601 = vsub.f32 %v438, %v32
  %v602 = vsub.f32 %v443, %v33
  %v603 = vmul.f32 %v587, %v529
  %v604 = vmul.f32 %v588, %v530
  %v605 = vmul.f32 %v589, %v531
  %v606 = vmul.f32 %v590, %v532
  %v607 = vmul.f32 %v591, %v533
  %v608 = vmul.f32 %v592, %v534
  %v609 = vmul.f32 %v593, %v535
  %v610 = vmul.f32 %v594, %v536
  %v611 = vmul.f32 %v595, %v537
  %v612 = vmul.f32 %v596, %v538
  %v613 = vmul.f32 %v597, %v539
  %v614 = vmul.f32 %v598, %v540
  %v615 = vmul.f32 %v599, %v541
  %v616 = vmul.f32 %v600, %v542
  %v617 = vmul.f32 %v601, %v543
  %v618 = vmul.f32 %v602, %v544
  %v619 = vmul.f32 %v603, %v603
  %v620 = vmul.f32 %v604, %v604
  %v621 = vmul.f32 %v605, %v605
  %v622 = vmul.f32 %v606, %v606
  %v623 = vmul.f32 %v607, %v607
  %v624 = vmul.f32 %v608, %v608
  %v625 = vmul.f32 %v609, %v609
  %v626 = vmul.f32 %v610, %v610
  %v627 = vmul.f32 %v611, %v611
  %v628 = vmul.f32 %v612, %v612
  %v629 = vmul.f32 %v613, %v613
  %v630 = vmul.f32 %v614, %v614
  %v631 = vmul.f32 %v615, %v615
  %v632 = vmul.f32 %v616, %v616
  %v633 = vmul.f32 %v617, %v617
  %v634 = vmul.f32 %v618, %v618
  %v635 = vadd.f32 %v619, %v620
  %v636 = vadd.f32 %v635, %v621
  %v637 = vadd.f32 %v636, %v622
  %v638 = vadd.f32 %v637, %v623
  %v639 = vadd.f32 %v638, %v624
  %v640 = vadd.f32 %v639, %v625
  %v641 = vadd.f32 %v640, %v626
  %v642 = vadd.f32 %v641, %v627
  %v643 = vadd.f32 %v642, %v628
  %v644 = vadd.f32 %v643, %v629
  %v645 = vadd.f32 %v644, %v630
  %v646 = vadd.f32 %v645, %v631
  %v647 = vadd.f32 %v646, %v632
  %v648 = vadd.f32 %v647, %v633
  %v649 = vadd.f32 %v648, %v634
  %650 = vadd.xlane.f32.xlu0 %v649
  %v651 = vpop.xlane.xlu0 %650
  %v652 = vrot.slane %v651, 4
  %v653 = vadd.f32 %v651, %v652
  %v654 = vrot.slane %v653, 2
  %v655 = vadd.f32 %v653, %v654
  %v656 = vrot.slane %v655, 1
  %v657 = vadd.f32 %v655, %v656
  %s658 = vtos %v657
  %vm659 = vcmp.eq.s32.totalorder %v203, 0
  %vm660 = vmand %vm582, %vm659
  %v661 = vsel %vm660, 1, 0
  %v662 = vcvt.s32.f32 %v661
  %v663 = vstv %s658
  %v664 = vmul.f32 %v663, %v662
  %665 = vst [vmem:[%s5] sm:$0xff] %v664
  // Predicated region
  $region14: #{_lambda_.30} parent=0 // pred_check
    _
  $region15: #{_lambda_.30} parent=0 // pred_check_branch
    %667 = sbr.rel (0) target = $region17
  $region16: #{_lambda_.30} parent=0 // pred_region
    _
  $region17: #{_lambda_.30} parent=0 // pred_fallthru
    _
  // Predicated region
  $region18: #{_lambda_.30} parent=0 // pred_check
    _
  $region19: #{_lambda_.30} parent=0 // pred_check_branch
    %669 = sbr.rel (0) target = $region21
  $region20: #{_lambda_.30} parent=0 // pred_region
    _
  $region21: #{_lambda_.30} parent=0 // pred_fallthru
    _
  // Predicated region
  $region22: #{_lambda_.30} parent=0 // pred_check
    _
  $region23: #{_lambda_.30} parent=0 // pred_check_branch
    %671 = sbr.rel (0) target = $region25
  $region24: #{_lambda_.30} parent=0 // pred_region
    _
  $region25: #{_lambda_.30} parent=0 // pred_fallthru
    _
  // Predicated region
  $region26: #{_lambda_.30} parent=0 // pred_check
    _
  $region27: #{_lambda_.30} parent=0 // pred_check_branch
    %673 = sbr.rel (0) target = $region29
  $region28: #{_lambda_.30} parent=0 // pred_region
    _
  $region29: #{_lambda_.30} parent=0 // pred_fallthru
    _
  // Predicated region
  $region30: #{_lambda_.30} parent=0 // pred_check
    _
  $region31: #{_lambda_.30} parent=0 // pred_check_branch
    %675 = sbr.rel (0) target = $region33
  $region32: #{_lambda_.30} parent=0 // pred_region
    _
  $region33: #{_lambda_.30} parent=0 // pred_fallthru
    _
  // Predicated region
  $region34: #{_lambda_.30} parent=0 // pred_check
    _
  $region35: #{_lambda_.30} parent=0 // pred_check_branch
    %677 = sbr.rel (0) target = $region37
  $region36: #{_lambda_.30} parent=0 // pred_region
    _
  $region37: #{_lambda_.30} parent=0 // pred_fallthru
    _

// kernel: _lambda_.31
$region0: #{_lambda_.31}
  #allocation0 [shape = 'u32[]', space=smem, size = 0x4, offset = 0x4, fixed_abs, tag = 'smem constant byte address 0x4 - core index']
  #allocation1 [shape = 'u32[144,128]{1,0:T(1,128)}', space=vmem, size = 0x12000, scoped, tag = 'internal scratch']
  %s0 = inlined_call_operand.vmem [shape: bf16[8,384], index: 0, kind: input, shape index: {}]
  %s1 = inlined_call_operand.vmem [shape: bf16[384,128], index: 1, kind: input, shape index: {}]
  %s2 = inlined_call_operand.vmem [shape: f32[1,128], index: 2, kind: input, shape index: {}]
  %s3 = inlined_call_operand.vmem [shape: f32[8,128], index: 3, kind: output, shape index: {}]
  %s4 = sld [smem:[#allocation0]]
  $region22: #{_lambda_.31} parent=0
    _
  %s6 = ssub.s32 1, %s4
  %s7 = scalar_select 0, %s6, %s4
  // Predicated region
  $region2: #{_lambda_.31} parent=0 // pred_check
    _
  $region3: #{_lambda_.31} parent=0 // pred_check_branch
    %9 = sbr.rel (0) target = $region5
  $region4: #{_lambda_.31} parent=0 // pred_region
    _
  $region5: #{_lambda_.31} parent=0 // pred_fallthru
    _
  // Predicated region
  $region6: #{_lambda_.31} parent=0 // pred_check
    _
  $region7: #{_lambda_.31} parent=0 // pred_check_branch
    %11 = sbr.rel (0) target = $region9
  $region8: #{_lambda_.31} parent=0 // pred_region
    _
  $region9: #{_lambda_.31} parent=0 // pred_fallthru
    _
  // Predicated region
  $region10: #{_lambda_.31} parent=0 // pred_check
    _
  $region11: #{_lambda_.31} parent=0 // pred_check_branch
    %13 = sbr.rel (0) target = $region13
  $region12: #{_lambda_.31} parent=0 // pred_region
    _
  $region13: #{_lambda_.31} parent=0 // pred_fallthru
    _
  %v15 = vld [vmem:[%s0] sm:$0xff]
  %v16 = vld [vmem:[%s0 + $0x8] sm:$0xf]
  %v17 = vld [vmem:[%s1] sm:$0xf]
  %v18 = vld [vmem:[%s1 + $0x4] sm:$0xf]
  %v19 = vld [vmem:[%s1 + $0x8] sm:$0xf]
  %v20 = vld [vmem:[%s1 + $0xc] sm:$0xf]
  %v21 = vld [vmem:[%s1 + $0x10] sm:$0xf]
  %v22 = vld [vmem:[%s1 + $0x14] sm:$0xf]
  %v23 = vld [vmem:[%s1 + $0x18] sm:$0xf]
  %v24 = vld [vmem:[%s1 + $0x1c] sm:$0xf]
  %v25 = vld [vmem:[%s1 + $0x20] sm:$0xf]
  %v26 = vld [vmem:[%s1 + $0x24] sm:$0xf]
  %v27 = vld [vmem:[%s1 + $0x28] sm:$0xf]
  %v28 = vld [vmem:[%s1 + $0x2c] sm:$0xf]
  %v29 = vld [vmem:[%s1 + $0x30] sm:$0xf]
  %v30 = vld [vmem:[%s1 + $0x34] sm:$0xf]
  %v31 = vld [vmem:[%s1 + $0x38] sm:$0xf]
  %v32 = vld [vmem:[%s1 + $0x3c] sm:$0xf]
  %v33 = vld [vmem:[%s1 + $0x40] sm:$0xf]
  %v34 = vld [vmem:[%s1 + $0x44] sm:$0xf]
  %v35 = vld [vmem:[%s1 + $0x48] sm:$0xf]
  %v36 = vld [vmem:[%s1 + $0x4c] sm:$0xf]
  %v37 = vld [vmem:[%s1 + $0x50] sm:$0xf]
  %v38 = vld [vmem:[%s1 + $0x54] sm:$0xf]
  %v39 = vld [vmem:[%s1 + $0x58] sm:$0xf]
  %v40 = vld [vmem:[%s1 + $0x5c] sm:$0xf]
  %v41 = vld [vmem:[%s1 + $0x60] sm:$0xf]
  %v42 = vld [vmem:[%s1 + $0x64] sm:$0xf]
  %v43 = vld [vmem:[%s1 + $0x68] sm:$0xf]
  %v44 = vld [vmem:[%s1 + $0x6c] sm:$0xf]
  %v45 = vld [vmem:[%s1 + $0x70] sm:$0xf]
  %v46 = vld [vmem:[%s1 + $0x74] sm:$0xf]
  %v47 = vld [vmem:[%s1 + $0x78] sm:$0xf]
  %v48 = vld [vmem:[%s1 + $0x7c] sm:$0xf]
  %v49 = vld [vmem:[%s1 + $0x80] sm:$0xf]
  %v50 = vld [vmem:[%s1 + $0x84] sm:$0xf]
  %v51 = vld [vmem:[%s1 + $0x88] sm:$0xf]
  %v52 = vld [vmem:[%s1 + $0x8c] sm:$0xf]
  %v53 = vld [vmem:[%s1 + $0x90] sm:$0xf]
  %v54 = vld [vmem:[%s1 + $0x94] sm:$0xf]
  %v55 = vld [vmem:[%s1 + $0x98] sm:$0xf]
  %v56 = vld [vmem:[%s1 + $0x9c] sm:$0xf]
  %v57 = vld [vmem:[%s1 + $0xa0] sm:$0xf]
  %v58 = vld [vmem:[%s1 + $0xa4] sm:$0xf]
  %v59 = vld [vmem:[%s1 + $0xa8] sm:$0xf]
  %v60 = vld [vmem:[%s1 + $0xac] sm:$0xf]
  %v61 = vld [vmem:[%s1 + $0xb0] sm:$0xf]
  %v62 = vld [vmem:[%s1 + $0xb4] sm:$0xf]
  %v63 = vld [vmem:[%s1 + $0xb8] sm:$0xf]
  %v64 = vld [vmem:[%s1 + $0xbc] sm:$0xf]
  %v65 = vld [vmem:[%s2] sm:$0x1]
  %v67 = vlaneseq
  %v68 = vshrl.u32 %v67, 7
  %v69 = vsub.s32 0, %v68
  %v70 = vrot.slane %v65, %v69
  %v74 = vunpack.c.l.b16 %v15
  %v75 = vunpack.c.h.b16 %v15
  %v76 = vunpack.c.l.b16 %v16
  %v77 = vpack.c.b16 %v74, %v74
  %v78 = vpack.c.b16 %v75, %v75
  %v79 = vpack.c.b16 %v76, %v76
  %v131 = vunpack.c.l.b16 %v17
  %v132 = vunpack.c.l.b16 %v18
  %v133 = vunpack.c.l.b16 %v19
  %v134 = vunpack.c.l.b16 %v20
  %v135 = vunpack.c.l.b16 %v21
  %v136 = vunpack.c.l.b16 %v22
  %v137 = vunpack.c.l.b16 %v23
  %v138 = vunpack.c.l.b16 %v24
  %v139 = vunpack.c.l.b16 %v25
  %v140 = vunpack.c.l.b16 %v26
  %v141 = vunpack.c.l.b16 %v27
  %v142 = vunpack.c.l.b16 %v28
  %v143 = vunpack.c.l.b16 %v29
  %v144 = vunpack.c.l.b16 %v30
  %v145 = vunpack.c.l.b16 %v31
  %v146 = vunpack.c.l.b16 %v32
  %v147 = vunpack.c.l.b16 %v33
  %v148 = vunpack.c.l.b16 %v34
  %v149 = vunpack.c.l.b16 %v35
  %v150 = vunpack.c.l.b16 %v36
  %v151 = vunpack.c.l.b16 %v37
  %v152 = vunpack.c.l.b16 %v38
  %v153 = vunpack.c.l.b16 %v39
  %v154 = vunpack.c.l.b16 %v40
  %v155 = vunpack.c.l.b16 %v41
  %v156 = vunpack.c.l.b16 %v42
  %v157 = vunpack.c.l.b16 %v43
  %v158 = vunpack.c.l.b16 %v44
  %v159 = vunpack.c.l.b16 %v45
  %v160 = vunpack.c.l.b16 %v46
  %v161 = vunpack.c.l.b16 %v47
  %v162 = vunpack.c.l.b16 %v48
  %v163 = vunpack.c.l.b16 %v49
  %v164 = vunpack.c.l.b16 %v50
  %v165 = vunpack.c.l.b16 %v51
  %v166 = vunpack.c.l.b16 %v52
  %v167 = vunpack.c.l.b16 %v53
  %v168 = vunpack.c.l.b16 %v54
  %v169 = vunpack.c.l.b16 %v55
  %v170 = vunpack.c.l.b16 %v56
  %v171 = vunpack.c.l.b16 %v57
  %v172 = vunpack.c.l.b16 %v58
  %v173 = vunpack.c.l.b16 %v59
  %v174 = vunpack.c.l.b16 %v60
  %v175 = vunpack.c.l.b16 %v61
  %v176 = vunpack.c.l.b16 %v62
  %v177 = vunpack.c.l.b16 %v63
  %v178 = vunpack.c.l.b16 %v64
  %v179 = vpack.c.b16 %v132, %v131
  %v180 = vpack.c.b16 %v134, %v133
  %v181 = vpack.c.b16 %v136, %v135
  %v182 = vpack.c.b16 %v138, %v137
  %v183 = vpack.c.b16 %v140, %v139
  %v184 = vpack.c.b16 %v142, %v141
  %v185 = vpack.c.b16 %v144, %v143
  %v186 = vpack.c.b16 %v146, %v145
  %v187 = vpack.c.b16 %v148, %v147
  %v188 = vpack.c.b16 %v150, %v149
  %v189 = vpack.c.b16 %v152, %v151
  %v190 = vpack.c.b16 %v154, %v153
  %v191 = vpack.c.b16 %v156, %v155
  %v192 = vpack.c.b16 %v158, %v157
  %v193 = vpack.c.b16 %v160, %v159
  %v194 = vpack.c.b16 %v162, %v161
  %v195 = vpack.c.b16 %v164, %v163
  %v196 = vpack.c.b16 %v166, %v165
  %v197 = vpack.c.b16 %v168, %v167
  %v198 = vpack.c.b16 %v170, %v169
  %v199 = vpack.c.b16 %v172, %v171
  %v200 = vpack.c.b16 %v174, %v173
  %v201 = vpack.c.b16 %v176, %v175
  %v202 = vpack.c.b16 %v178, %v177
  %227 = vmatprep.subr.bf16.mxu0 0
  %228 = vmatpush1.bf16.msra.mxu0 %v179
  %229 = vmatprep.subr.bf16.mxu0 0
  %230 = vmatpush1.bf16.msra.mxu0 %v180
  %231 = vmatprep.subr.bf16.mxu0 0
  %232 = vmatpush1.bf16.msra.mxu0 %v181
  %233 = vmatprep.subr.bf16.mxu0 0
  %234 = vmatpush1.bf16.msra.mxu0 %v182
  %235 = vmatprep.subr.bf16.mxu0 0
  %236 = vmatpush1.bf16.msra.mxu0 %v183
  %237 = vmatprep.subr.bf16.mxu0 0
  %238 = vmatpush1.bf16.msra.mxu0 %v184
  %239 = vmatprep.subr.bf16.mxu0 0
  %240 = vmatpush1.bf16.msra.mxu0 %v185
  %241 = vmatprep.subr.bf16.mxu0 0
  %242 = vmatpush1.bf16.msra.mxu0 %v186
  %243 = vmatprep.subr.bf16.mxu0 0
  %244 = vmatpush1.bf16.msra.mxu0 %v187
  %245 = vmatprep.subr.bf16.mxu0 0
  %246 = vmatpush1.bf16.msra.mxu0 %v188
  %247 = vmatprep.subr.bf16.mxu0 0
  %248 = vmatpush1.bf16.msra.mxu0 %v189
  %249 = vmatprep.subr.bf16.mxu0 0
  %250 = vmatpush1.bf16.msra.mxu0 %v190
  %251 = vmatprep.subr.bf16.mxu0 0
  %252 = vmatpush1.bf16.msra.mxu0 %v191
  %253 = vmatprep.subr.bf16.mxu0 0
  %254 = vmatpush1.bf16.msra.mxu0 %v192
  %255 = vmatprep.subr.bf16.mxu0 0
  %256 = vmatpush1.bf16.msra.mxu0 %v193
  %257 = vmatprep.subr.bf16.mxu0 0
  %258 = vmatpush1.bf16.msra.mxu0 %v194
  %259 = vmatprep.mubr.bf16.mxu0 %v78
  %260 = vmatmul.mubr.bf16.gmra.mrb[0].mxu0 %v77
  %v261 = vpop.f32.mrb[0].mxu0
  %v262 = vadd.f32 %v70, %v261
  %v263 = vpop.f32.mrb[0].mxu0
  %v264 = vpop.f32.mrb[0].mxu0
  %v265 = vpop.f32.mrb[0].mxu0
  %266 = vdwg.mxu0
  %267 = vmatprep.subr.bf16.mxu0 0
  %268 = vmatpush1.bf16.msra.mxu0 %v195
  %269 = vmatprep.subr.bf16.mxu0 0
  %270 = vmatpush1.bf16.msra.mxu0 %v196
  %271 = vmatprep.subr.bf16.mxu0 0
  %272 = vmatpush1.bf16.msra.mxu0 %v197
  %273 = vmatprep.subr.bf16.mxu0 0
  %274 = vmatpush1.bf16.msra.mxu0 %v198
  %275 = vmatprep.subr.bf16.mxu0 0
  %276 = vmatpush1.bf16.msra.mxu0 %v199
  %277 = vmatprep.subr.bf16.mxu0 0
  %278 = vmatpush1.bf16.msra.mxu0 %v200
  %279 = vmatprep.subr.bf16.mxu0 0
  %280 = vmatpush1.bf16.msra.mxu0 %v201
  %281 = vmatprep.subr.bf16.mxu0 0
  %282 = vmatpush1.bf16.msra.mxu0 %v202
  %283 = vmatprep.subr.bf16.mxu0 0
  %284 = vmatpush1.bf16.msra.mxu0 0
  %285 = vmatprep.subr.bf16.mxu0 0
  %286 = vmatpush1.bf16.msra.mxu0 0
  %287 = vmatprep.subr.bf16.mxu0 0
  %288 = vmatpush1.bf16.msra.mxu0 0
  %289 = vmatprep.subr.bf16.mxu0 0
  %290 = vmatpush1.bf16.msra.mxu0 0
  %291 = vmatprep.subr.bf16.mxu0 0
  %292 = vmatpush1.bf16.msra.mxu0 0
  %293 = vmatprep.subr.bf16.mxu0 0
  %294 = vmatpush1.bf16.msra.mxu0 0
  %295 = vmatprep.subr.bf16.mxu0 0
  %296 = vmatpush1.bf16.msra.mxu0 0
  %297 = vmatprep.subr.bf16.mxu0 0
  %298 = vmatpush1.bf16.msra.mxu0 0
  %299 = vmatprep.mubr.bf16.mxu0 0
  %300 = vmatmul.mubr.bf16.gmra.mrb[0].mxu0 %v79
  %v301 = vpop.f32.mrb[0].mxu0
  %v302 = vadd.f32 %v262, %v301
  %v303 = vpop.f32.mrb[0].mxu0
  %v304 = vpop.f32.mrb[0].mxu0
  %v305 = vpop.f32.mrb[0].mxu0
  %306 = vdwg.mxu0
  %307 = vst [vmem:[%s3] sm:$0xff] %v302
  // Predicated region
  $region14: #{_lambda_.31} parent=0 // pred_check
    _
  $region15: #{_lambda_.31} parent=0 // pred_check_branch
    %309 = sbr.rel (0) target = $region17
  $region16: #{_lambda_.31} parent=0 // pred_region
    _
  $region17: #{_lambda_.31} parent=0 // pred_fallthru
    _
  // Predicated region
  $region18: #{_lambda_.31} parent=0 // pred_check
    _
  $region19: #{_lambda_.31} parent=0 // pred_check_branch
    %311 = sbr.rel (0) target = $region21
  $region20: #{_lambda_.31} parent=0 // pred_region
    _
  $region21: #{_lambda_.31} parent=0 // pred_fallthru
    _

// kernel: _lambda_.36
$region0: #{_lambda_.36}
  #allocation0 [shape = 'u32[]', space=smem, size = 0x4, offset = 0x4, fixed_abs, tag = 'smem constant byte address 0x4 - core index']
  #allocation1 [shape = 'u32[144,128]{1,0:T(1,128)}', space=vmem, size = 0x12000, scoped, tag = 'internal scratch']
  %s0 = inlined_call_operand.vmem [shape: bf16[32,128], index: 0, kind: input, shape index: {}]
  %s1 = inlined_call_operand.vmem [shape: bf16[128,128], index: 1, kind: input, shape index: {}]
  %s2 = inlined_call_operand.vmem [shape: f32[1,128], index: 2, kind: input, shape index: {}]
  %s3 = inlined_call_operand.vmem [shape: f32[32,128], index: 3, kind: output, shape index: {}]
  %s4 = sld [smem:[#allocation0]]
  $region22: #{_lambda_.36} parent=0
    _
  %s6 = ssub.s32 1, %s4
  %s7 = scalar_select 0, %s6, %s4
  // Predicated region
  $region2: #{_lambda_.36} parent=0 // pred_check
    _
  $region3: #{_lambda_.36} parent=0 // pred_check_branch
    %9 = sbr.rel (0) target = $region5
  $region4: #{_lambda_.36} parent=0 // pred_region
    _
  $region5: #{_lambda_.36} parent=0 // pred_fallthru
    _
  // Predicated region
  $region6: #{_lambda_.36} parent=0 // pred_check
    _
  $region7: #{_lambda_.36} parent=0 // pred_check_branch
    %11 = sbr.rel (0) target = $region9
  $region8: #{_lambda_.36} parent=0 // pred_region
    _
  $region9: #{_lambda_.36} parent=0 // pred_fallthru
    _
  // Predicated region
  $region10: #{_lambda_.36} parent=0 // pred_check
    _
  $region11: #{_lambda_.36} parent=0 // pred_check_branch
    %13 = sbr.rel (0) target = $region13
  $region12: #{_lambda_.36} parent=0 // pred_region
    _
  $region13: #{_lambda_.36} parent=0 // pred_fallthru
    _
  %v15 = vld [vmem:[%s0] sm:$0xf]
  %v16 = vld [vmem:[%s0 + $0x4] sm:$0xf]
  %v17 = vld [vmem:[%s0 + $0x8] sm:$0xf]
  %v18 = vld [vmem:[%s0 + $0xc] sm:$0xf]
  %v19 = vld [vmem:[%s1] sm:$0xf]
  %v20 = vld [vmem:[%s1 + $0x4] sm:$0xf]
  %v21 = vld [vmem:[%s1 + $0x8] sm:$0xf]
  %v22 = vld [vmem:[%s1 + $0xc] sm:$0xf]
  %v23 = vld [vmem:[%s1 + $0x10] sm:$0xf]
  %v24 = vld [vmem:[%s1 + $0x14] sm:$0xf]
  %v25 = vld [vmem:[%s1 + $0x18] sm:$0xf]
  %v26 = vld [vmem:[%s1 + $0x1c] sm:$0xf]
  %v27 = vld [vmem:[%s1 + $0x20] sm:$0xf]
  %v28 = vld [vmem:[%s1 + $0x24] sm:$0xf]
  %v29 = vld [vmem:[%s1 + $0x28] sm:$0xf]
  %v30 = vld [vmem:[%s1 + $0x2c] sm:$0xf]
  %v31 = vld [vmem:[%s1 + $0x30] sm:$0xf]
  %v32 = vld [vmem:[%s1 + $0x34] sm:$0xf]
  %v33 = vld [vmem:[%s1 + $0x38] sm:$0xf]
  %v34 = vld [vmem:[%s1 + $0x3c] sm:$0xf]
  %v35 = vld [vmem:[%s2] sm:$0x1]
  %v37 = vlaneseq
  %v38 = vshrl.u32 %v37, 7
  %v39 = vsub.s32 0, %v38
  %v40 = vrot.slane %v35, %v39
  %v46 = vunpack.c.l.b16 %v15
  %v47 = vunpack.c.l.b16 %v16
  %v48 = vunpack.c.l.b16 %v17
  %v49 = vunpack.c.l.b16 %v18
  %v50 = vpack.c.b16 %v47, %v46
  %v51 = vpack.c.b16 %v49, %v48
  %v70 = vunpack.c.l.b16 %v19
  %v71 = vunpack.c.l.b16 %v20
  %v72 = vunpack.c.l.b16 %v21
  %v73 = vunpack.c.l.b16 %v22
  %v74 = vunpack.c.l.b16 %v23
  %v75 = vunpack.c.l.b16 %v24
  %v76 = vunpack.c.l.b16 %v25
  %v77 = vunpack.c.l.b16 %v26
  %v78 = vunpack.c.l.b16 %v27
  %v79 = vunpack.c.l.b16 %v28
  %v80 = vunpack.c.l.b16 %v29
  %v81 = vunpack.c.l.b16 %v30
  %v82 = vunpack.c.l.b16 %v31
  %v83 = vunpack.c.l.b16 %v32
  %v84 = vunpack.c.l.b16 %v33
  %v85 = vunpack.c.l.b16 %v34
  %v86 = vpack.c.b16 %v71, %v70
  %v87 = vpack.c.b16 %v73, %v72
  %v88 = vpack.c.b16 %v75, %v74
  %v89 = vpack.c.b16 %v77, %v76
  %v90 = vpack.c.b16 %v79, %v78
  %v91 = vpack.c.b16 %v81, %v80
  %v92 = vpack.c.b16 %v83, %v82
  %v93 = vpack.c.b16 %v85, %v84
  %102 = vmatprep.subr.bf16.mxu0 0
  %103 = vmatpush1.bf16.msra.mxu0 %v86
  %104 = vmatprep.subr.bf16.mxu0 0
  %105 = vmatpush1.bf16.msra.mxu0 %v87
  %106 = vmatprep.subr.bf16.mxu0 0
  %107 = vmatpush1.bf16.msra.mxu0 %v88
  %108 = vmatprep.subr.bf16.mxu0 0
  %109 = vmatpush1.bf16.msra.mxu0 %v89
  %110 = vmatprep.subr.bf16.mxu0 0
  %111 = vmatpush1.bf16.msra.mxu0 %v90
  %112 = vmatprep.subr.bf16.mxu0 0
  %113 = vmatpush1.bf16.msra.mxu0 %v91
  %114 = vmatprep.subr.bf16.mxu0 0
  %115 = vmatpush1.bf16.msra.mxu0 %v92
  %116 = vmatprep.subr.bf16.mxu0 0
  %117 = vmatpush1.bf16.msra.mxu0 %v93
  %118 = vmatprep.subr.bf16.mxu0 0
  %119 = vmatpush1.bf16.msra.mxu0 0
  %120 = vmatprep.subr.bf16.mxu0 0
  %121 = vmatpush1.bf16.msra.mxu0 0
  %122 = vmatprep.subr.bf16.mxu0 0
  %123 = vmatpush1.bf16.msra.mxu0 0
  %124 = vmatprep.subr.bf16.mxu0 0
  %125 = vmatpush1.bf16.msra.mxu0 0
  %126 = vmatprep.subr.bf16.mxu0 0
  %127 = vmatpush1.bf16.msra.mxu0 0
  %128 = vmatprep.subr.bf16.mxu0 0
  %129 = vmatpush1.bf16.msra.mxu0 0
  %130 = vmatprep.subr.bf16.mxu0 0
  %131 = vmatpush1.bf16.msra.mxu0 0
  %132 = vmatprep.subr.bf16.mxu0 0
  %133 = vmatpush1.bf16.msra.mxu0 0
  %134 = vmatprep.mubr.bf16.mxu0 0
  %135 = vmatmul.mubr.bf16.gmra.mrb[0].mxu0 %v50
  %v136 = vpop.f32.mrb[0].mxu0
  %v137 = vadd.f32 %v40, %v136
  %v138 = vpop.f32.mrb[0].mxu0
  %v139 = vpop.f32.mrb[0].mxu0
  %v140 = vadd.f32 %v40, %v139
  %v141 = vpop.f32.mrb[0].mxu0
  %142 = vmatprep.mubr.bf16.mxu0 0
  %143 = vmatmul.mubr.bf16.gmra.mrb[0].mxu0 %v51
  %v144 = vpop.f32.mrb[0].mxu0
  %v145 = vadd.f32 %v40, %v144
  %v146 = vpop.f32.mrb[0].mxu0
  %v147 = vpop.f32.mrb[0].mxu0
  %v148 = vadd.f32 %v40, %v147
  %v149 = vpop.f32.mrb[0].mxu0
  %150 = vdwg.mxu0
  %v151 = vmax.f32 %v137, 0.0
  %v152 = vmax.f32 %v140, 0.0
  %v153 = vmax.f32 %v145, 0.0
  %v154 = vmax.f32 %v148, 0.0
  %155 = vst [vmem:[%s3] sm:$0xff] %v151
  %156 = vst [vmem:[%s3 + $0x8] sm:$0xff] %v152
  %157 = vst [vmem:[%s3 + $0x10] sm:$0xff] %v153
  %158 = vst [vmem:[%s3 + $0x18] sm:$0xff] %v154
  // Predicated region
  $region14: #{_lambda_.36} parent=0 // pred_check
    _
  $region15: #{_lambda_.36} parent=0 // pred_check_branch
    %160 = sbr.rel (0) target = $region17
  $region16: #{_lambda_.36} parent=0 // pred_region
    _
  $region17: #{_lambda_.36} parent=0 // pred_fallthru
    _
  // Predicated region
  $region18: #{_lambda_.36} parent=0 // pred_check
    _
  $region19: #{_lambda_.36} parent=0 // pred_check_branch
    %162 = sbr.rel (0) target = $region21
  $region20: #{_lambda_.36} parent=0 // pred_region
    _
  $region21: #{_lambda_.36} parent=0 // pred_fallthru
    _

// kernel: _lambda_.40
$region0: #{_lambda_.40}
  #allocation0 [shape = 'u32[]', space=smem, size = 0x4, offset = 0x4, fixed_abs, tag = 'smem constant byte address 0x4 - core index']
  #allocation1 [shape = 'u32[144,128]{1,0:T(1,128)}', space=vmem, size = 0x12000, scoped, tag = 'internal scratch']
  %s0 = inlined_call_operand.vmem [shape: bf16[128,128], index: 0, kind: input, shape index: {}]
  %s1 = inlined_call_operand.vmem [shape: bf16[128,128], index: 1, kind: input, shape index: {}]
  %s2 = inlined_call_operand.vmem [shape: f32[1,128], index: 2, kind: input, shape index: {}]
  %s3 = inlined_call_operand.vmem [shape: f32[128,128], index: 3, kind: output, shape index: {}]
  %s4 = sld [smem:[#allocation0]]
  $region22: #{_lambda_.40} parent=0
    _
  %s6 = ssub.s32 1, %s4
  %s7 = scalar_select 0, %s6, %s4
  // Predicated region
  $region2: #{_lambda_.40} parent=0 // pred_check
    _
  $region3: #{_lambda_.40} parent=0 // pred_check_branch
    %9 = sbr.rel (0) target = $region5
  $region4: #{_lambda_.40} parent=0 // pred_region
    _
  $region5: #{_lambda_.40} parent=0 // pred_fallthru
    _
  // Predicated region
  $region6: #{_lambda_.40} parent=0 // pred_check
    _
  $region7: #{_lambda_.40} parent=0 // pred_check_branch
    %11 = sbr.rel (0) target = $region9
  $region8: #{_lambda_.40} parent=0 // pred_region
    _
  $region9: #{_lambda_.40} parent=0 // pred_fallthru
    _
  // Predicated region
  $region10: #{_lambda_.40} parent=0 // pred_check
    _
  $region11: #{_lambda_.40} parent=0 // pred_check_branch
    %13 = sbr.rel (0) target = $region13
  $region12: #{_lambda_.40} parent=0 // pred_region
    _
  $region13: #{_lambda_.40} parent=0 // pred_fallthru
    _
  %v15 = vld [vmem:[%s0] sm:$0xf]
  %v16 = vld [vmem:[%s0 + $0x4] sm:$0xf]
  %v17 = vld [vmem:[%s0 + $0x8] sm:$0xf]
  %v18 = vld [vmem:[%s0 + $0xc] sm:$0xf]
  %v19 = vld [vmem:[%s0 + $0x10] sm:$0xf]
  %v20 = vld [vmem:[%s0 + $0x14] sm:$0xf]
  %v21 = vld [vmem:[%s0 + $0x18] sm:$0xf]
  %v22 = vld [vmem:[%s0 + $0x1c] sm:$0xf]
  %v23 = vld [vmem:[%s0 + $0x20] sm:$0xf]
  %v24 = vld [vmem:[%s0 + $0x24] sm:$0xf]
  %v25 = vld [vmem:[%s0 + $0x28] sm:$0xf]
  %v26 = vld [vmem:[%s0 + $0x2c] sm:$0xf]
  %v27 = vld [vmem:[%s0 + $0x30] sm:$0xf]
  %v28 = vld [vmem:[%s0 + $0x34] sm:$0xf]
  %v29 = vld [vmem:[%s0 + $0x38] sm:$0xf]
  %v30 = vld [vmem:[%s0 + $0x3c] sm:$0xf]
  %v31 = vld [vmem:[%s1] sm:$0xf]
  %v32 = vld [vmem:[%s1 + $0x4] sm:$0xf]
  %v33 = vld [vmem:[%s1 + $0x8] sm:$0xf]
  %v34 = vld [vmem:[%s1 + $0xc] sm:$0xf]
  %v35 = vld [vmem:[%s1 + $0x10] sm:$0xf]
  %v36 = vld [vmem:[%s1 + $0x14] sm:$0xf]
  %v37 = vld [vmem:[%s1 + $0x18] sm:$0xf]
  %v38 = vld [vmem:[%s1 + $0x1c] sm:$0xf]
  %v39 = vld [vmem:[%s1 + $0x20] sm:$0xf]
  %v40 = vld [vmem:[%s1 + $0x24] sm:$0xf]
  %v41 = vld [vmem:[%s1 + $0x28] sm:$0xf]
  %v42 = vld [vmem:[%s1 + $0x2c] sm:$0xf]
  %v43 = vld [vmem:[%s1 + $0x30] sm:$0xf]
  %v44 = vld [vmem:[%s1 + $0x34] sm:$0xf]
  %v45 = vld [vmem:[%s1 + $0x38] sm:$0xf]
  %v46 = vld [vmem:[%s1 + $0x3c] sm:$0xf]
  %v47 = vld [vmem:[%s2] sm:$0x1]
  %v49 = vlaneseq
  %v50 = vshrl.u32 %v49, 7
  %v51 = vsub.s32 0, %v50
  %v52 = vrot.slane %v47, %v51
  %v70 = vunpack.c.l.b16 %v15
  %v71 = vunpack.c.l.b16 %v16
  %v72 = vunpack.c.l.b16 %v17
  %v73 = vunpack.c.l.b16 %v18
  %v74 = vunpack.c.l.b16 %v19
  %v75 = vunpack.c.l.b16 %v20
  %v76 = vunpack.c.l.b16 %v21
  %v77 = vunpack.c.l.b16 %v22
  %v78 = vunpack.c.l.b16 %v23
  %v79 = vunpack.c.l.b16 %v24
  %v80 = vunpack.c.l.b16 %v25
  %v81 = vunpack.c.l.b16 %v26
  %v82 = vunpack.c.l.b16 %v27
  %v83 = vunpack.c.l.b16 %v28
  %v84 = vunpack.c.l.b16 %v29
  %v85 = vunpack.c.l.b16 %v30
  %v86 = vpack.c.b16 %v71, %v70
  %v87 = vpack.c.b16 %v73, %v72
  %v88 = vpack.c.b16 %v75, %v74
  %v89 = vpack.c.b16 %v77, %v76
  %v90 = vpack.c.b16 %v79, %v78
  %v91 = vpack.c.b16 %v81, %v80
  %v92 = vpack.c.b16 %v83, %v82
  %v93 = vpack.c.b16 %v85, %v84
  %v118 = vunpack.c.l.b16 %v31
  %v119 = vunpack.c.l.b16 %v32
  %v120 = vunpack.c.l.b16 %v33
  %v121 = vunpack.c.l.b16 %v34
  %v122 = vunpack.c.l.b16 %v35
  %v123 = vunpack.c.l.b16 %v36
  %v124 = vunpack.c.l.b16 %v37
  %v125 = vunpack.c.l.b16 %v38
  %v126 = vunpack.c.l.b16 %v39
  %v127 = vunpack.c.l.b16 %v40
  %v128 = vunpack.c.l.b16 %v41
  %v129 = vunpack.c.l.b16 %v42
  %v130 = vunpack.c.l.b16 %v43
  %v131 = vunpack.c.l.b16 %v44
  %v132 = vunpack.c.l.b16 %v45
  %v133 = vunpack.c.l.b16 %v46
  %v134 = vpack.c.b16 %v119, %v118
  %v135 = vpack.c.b16 %v121, %v120
  %v136 = vpack.c.b16 %v123, %v122
  %v137 = vpack.c.b16 %v125, %v124
  %v138 = vpack.c.b16 %v127, %v126
  %v139 = vpack.c.b16 %v129, %v128
  %v140 = vpack.c.b16 %v131, %v130
  %v141 = vpack.c.b16 %v133, %v132
  %150 = vmatprep.subr.bf16.mxu0 0
  %151 = vmatpush1.bf16.msra.mxu0 %v134
  %152 = vmatprep.subr.bf16.mxu0 0
  %153 = vmatpush1.bf16.msra.mxu0 %v135
  %154 = vmatprep.subr.bf16.mxu0 0
  %155 = vmatpush1.bf16.msra.mxu0 %v136
  %156 = vmatprep.subr.bf16.mxu0 0
  %157 = vmatpush1.bf16.msra.mxu0 %v137
  %158 = vmatprep.subr.bf16.mxu0 0
  %159 = vmatpush1.bf16.msra.mxu0 %v138
  %160 = vmatprep.subr.bf16.mxu0 0
  %161 = vmatpush1.bf16.msra.mxu0 %v139
  %162 = vmatprep.subr.bf16.mxu0 0
  %163 = vmatpush1.bf16.msra.mxu0 %v140
  %164 = vmatprep.subr.bf16.mxu0 0
  %165 = vmatpush1.bf16.msra.mxu0 %v141
  %166 = vmatprep.subr.bf16.mxu0 0
  %167 = vmatpush1.bf16.msra.mxu0 0
  %168 = vmatprep.subr.bf16.mxu0 0
  %169 = vmatpush1.bf16.msra.mxu0 0
  %170 = vmatprep.subr.bf16.mxu0 0
  %171 = vmatpush1.bf16.msra.mxu0 0
  %172 = vmatprep.subr.bf16.mxu0 0
  %173 = vmatpush1.bf16.msra.mxu0 0
  %174 = vmatprep.subr.bf16.mxu0 0
  %175 = vmatpush1.bf16.msra.mxu0 0
  %176 = vmatprep.subr.bf16.mxu0 0
  %177 = vmatpush1.bf16.msra.mxu0 0
  %178 = vmatprep.subr.bf16.mxu0 0
  %179 = vmatpush1.bf16.msra.mxu0 0
  %180 = vmatprep.subr.bf16.mxu0 0
  %181 = vmatpush1.bf16.msra.mxu0 0
  %182 = vmatprep.mubr.bf16.mxu0 0
  %183 = vmatmul.mubr.bf16.gmra.mrb[0].mxu0 %v86
  %v184 = vpop.f32.mrb[0].mxu0
  %v185 = vadd.f32 %v52, %v184
  %v186 = vpop.f32.mrb[0].mxu0
  %v187 = vpop.f32.mrb[0].mxu0
  %v188 = vadd.f32 %v52, %v187
  %v189 = vpop.f32.mrb[0].mxu0
  %190 = vmatprep.mubr.bf16.mxu0 0
  %191 = vmatmul.mubr.bf16.gmra.mrb[0].mxu0 %v87
  %v192 = vpop.f32.mrb[0].mxu0
  %v193 = vadd.f32 %v52, %v192
  %v194 = vpop.f32.mrb[0].mxu0
  %v195 = vpop.f32.mrb[0].mxu0
  %v196 = vadd.f32 %v52, %v195
  %v197 = vpop.f32.mrb[0].mxu0
  %198 = vmatprep.mubr.bf16.mxu0 0
  %199 = vmatmul.mubr.bf16.gmra.mrb[0].mxu0 %v88
  %v200 = vpop.f32.mrb[0].mxu0
  %v201 = vadd.f32 %v52, %v200
  %v202 = vpop.f32.mrb[0].mxu0
  %v203 = vpop.f32.mrb[0].mxu0
  %v204 = vadd.f32 %v52, %v203
  %v205 = vpop.f32.mrb[0].mxu0
  %206 = vmatprep.mubr.bf16.mxu0 0
  %207 = vmatmul.mubr.bf16.gmra.mrb[0].mxu0 %v89
  %v208 = vpop.f32.mrb[0].mxu0
  %v209 = vadd.f32 %v52, %v208
  %v210 = vpop.f32.mrb[0].mxu0
  %v211 = vpop.f32.mrb[0].mxu0
  %v212 = vadd.f32 %v52, %v211
  %v213 = vpop.f32.mrb[0].mxu0
  %214 = vmatprep.mubr.bf16.mxu0 0
  %215 = vmatmul.mubr.bf16.gmra.mrb[0].mxu0 %v90
  %v216 = vpop.f32.mrb[0].mxu0
  %v217 = vadd.f32 %v52, %v216
  %v218 = vpop.f32.mrb[0].mxu0
  %v219 = vpop.f32.mrb[0].mxu0
  %v220 = vadd.f32 %v52, %v219
  %v221 = vpop.f32.mrb[0].mxu0
  %222 = vmatprep.mubr.bf16.mxu0 0
  %223 = vmatmul.mubr.bf16.gmra.mrb[0].mxu0 %v91
  %v224 = vpop.f32.mrb[0].mxu0
  %v225 = vadd.f32 %v52, %v224
  %v226 = vpop.f32.mrb[0].mxu0
  %v227 = vpop.f32.mrb[0].mxu0
  %v228 = vadd.f32 %v52, %v227
  %v229 = vpop.f32.mrb[0].mxu0
  %230 = vmatprep.mubr.bf16.mxu0 0
  %231 = vmatmul.mubr.bf16.gmra.mrb[0].mxu0 %v92
  %v232 = vpop.f32.mrb[0].mxu0
  %v233 = vadd.f32 %v52, %v232
  %v234 = vpop.f32.mrb[0].mxu0
  %v235 = vpop.f32.mrb[0].mxu0
  %v236 = vadd.f32 %v52, %v235
  %v237 = vpop.f32.mrb[0].mxu0
  %238 = vmatprep.mubr.bf16.mxu0 0
  %239 = vmatmul.mubr.bf16.gmra.mrb[0].mxu0 %v93
  %v240 = vpop.f32.mrb[0].mxu0
  %v241 = vadd.f32 %v52, %v240
  %v242 = vpop.f32.mrb[0].mxu0
  %v243 = vpop.f32.mrb[0].mxu0
  %v244 = vadd.f32 %v52, %v243
  %v245 = vpop.f32.mrb[0].mxu0
  %246 = vdwg.mxu0
  %247 = vst [vmem:[%s3] sm:$0xff] %v185
  %248 = vst [vmem:[%s3 + $0x8] sm:$0xff] %v188
  %249 = vst [vmem:[%s3 + $0x10] sm:$0xff] %v193
  %250 = vst [vmem:[%s3 + $0x18] sm:$0xff] %v196
  %251 = vst [vmem:[%s3 + $0x20] sm:$0xff] %v201
  %252 = vst [vmem:[%s3 + $0x28] sm:$0xff] %v204
  %253 = vst [vmem:[%s3 + $0x30] sm:$0xff] %v209
  %254 = vst [vmem:[%s3 + $0x38] sm:$0xff] %v212
  %255 = vst [vmem:[%s3 + $0x40] sm:$0xff] %v217
  %256 = vst [vmem:[%s3 + $0x48] sm:$0xff] %v220
  %257 = vst [vmem:[%s3 + $0x50] sm:$0xff] %v225
  %258 = vst [vmem:[%s3 + $0x58] sm:$0xff] %v228
  %259 = vst [vmem:[%s3 + $0x60] sm:$0xff] %v233
  %260 = vst [vmem:[%s3 + $0x68] sm:$0xff] %v236
  %261 = vst [vmem:[%s3 + $0x70] sm:$0xff] %v241
  %262 = vst [vmem:[%s3 + $0x78] sm:$0xff] %v244
  // Predicated region
  $region14: #{_lambda_.40} parent=0 // pred_check
    _
  $region15: #{_lambda_.40} parent=0 // pred_check_branch
    %264 = sbr.rel (0) target = $region17
  $region16: #{_lambda_.40} parent=0 // pred_region
    _
  $region17: #{_lambda_.40} parent=0 // pred_fallthru
    _
  // Predicated region
  $region18: #{_lambda_.40} parent=0 // pred_check
    _
  $region19: #{_lambda_.40} parent=0 // pred_check_branch
    %266 = sbr.rel (0) target = $region21
  $region20: #{_lambda_.40} parent=0 // pred_region
    _
  $region21: #{_lambda_.40} parent=0 // pred_fallthru
    _

</llo_original>
